<compile_context>
chip_gen: v6e
topology: v6e:2x2x1
jax: 0.10.0
libtpu: 0.0.40
codegen_flags: <defaults>
</compile_context>

<pallas_src>
import functools

import jax
import jax.numpy as jnp
from jax.experimental import pallas as pl
from jax.experimental.pallas import tpu as pltpu

MAIN = 64                      # predictor main_planes
HIDDEN = 640                   # RNA-FM hidden size (predictor in_planes)
STRIDES = (2, 1, 2, 1, 2, 1)   # ResBlock strides, in order
COMPUTE_DTYPE = jnp.bfloat16   # matmul operand dtype (accumulation stays f32)


# ----------------------------------------------------------------------------
# Static layout helpers
# ----------------------------------------------------------------------------
def _layer_lengths(L):
    """Sequence length entering each ResBlock (lens[0]) and after each (lens[i+1])."""
    lens = [L]
    for s in STRIDES:
        lens.append(lens[-1] if s == 1 else (lens[-1] - 1) // 2 + 1)
    return lens


def _vec_layout():
    """Row layout of the packed (nv, 64) per-channel vector table."""
    idx, n = {}, 0

    def add(name):
        nonlocal n
        idx[name] = n
        n += 1

    add("conv0_b")
    for i in range(6):
        for nm in ("bn1_scale", "bn1_shift", "bn2_scale", "bn2_shift"):
            add(f"{nm}_{i}")
    for i in (0, 2, 4):
        add(f"bnd_shift_{i}")          # bnd_scale is folded into wd at pack time
    return idx, n


def _pick_batch_tile(B, L):
    """Batch elements per grid step: target ~256 matmul rows, bound kernel unrolling."""
    cap = max(1, min(32, 256 // max(L, 1)))
    return B if B <= cap else cap


# ----------------------------------------------------------------------------
# Fused predictor kernel (conv0 + 6 ResBlocks + pool + linear).  One grid step
# handles Bt batch elements; all activations stay in VMEM values / scratch.
# ----------------------------------------------------------------------------
def _make_predictor_kernel(Bt, L, Cin, lens, vec_idx):
    Lp = L + 2          # per-batch slab stride (rows) inside the padded scratch
    CDT = COMPUTE_DTYPE

    def kernel(h_ref, w0_ref, w3_ref, wd_ref, vecs_ref, lw_ref, lb_ref,
               o_ref, xp_h, xp_m):
        def vrow(name):
            i = vec_idx[name]
            return vecs_ref[i:i + 1, :]                            # (1, 64) f32

        def fill_slab(xp, vals, Lin, C):
            """Write batch-stacked (Bt*Lin, C) f32 `vals` into zero-padded slabs."""
            for b in range(Bt):
                base = b * Lp
                xp[base:base + 1, :] = jnp.zeros((1, C), jnp.float32)
                xp[base + Lin + 1:base + Lin + 2, :] = jnp.zeros((1, C), jnp.float32)
                xp[base + 1:base + 1 + Lin, :] = vals[b * Lin:(b + 1) * Lin, :]

        def read_tap(xp, k, Lout, stride):
            """Batch-stacked tap k: (Bt*Lout, C) f32 read from the padded slabs."""
            if stride == 1:
                parts = [xp[b * Lp + k:b * Lp + k + Lout, :] for b in range(Bt)]
            else:
                parts = [xp[pl.ds(b * Lp + k, Lout, stride=2), :] for b in range(Bt)]
            return parts[0] if Bt == 1 else jnp.concatenate(parts, axis=0)

        def conv3_main(h_val, Lin, stride, w):
            """K=3, pad=1 Conv1d on 64 channels as one im2col matmul.

            h_val: (Bt*Lin, 64) f32 batch-stacked rows; w: (192, 64) bf16.
            Returns (Bt*Lout, 64) f32."""
            Lout = Lin if stride == 1 else (Lin - 1) // 2 + 1
            fill_slab(xp_m, h_val, Lin, MAIN)
            if stride == 1:
                taps = [read_tap(xp_m, 0, Lout, 1), h_val,
                        read_tap(xp_m, 2, Lout, 1)]
            else:
                taps = [read_tap(xp_m, k, Lout, 2) for k in range(3)]
            patches = jnp.concatenate(taps, axis=-1).astype(CDT)   # (Bt*Lout, 192)
            return jnp.dot(patches, w, preferred_element_type=jnp.float32)

        # ---- conv0: Conv1d(640 -> 64, k=3, pad=1) + bias --------------------
        # Three accumulated 640-deep dots over shifted slab views (no 3x im2col
        # expansion of the 640-channel activation).
        for b in range(Bt):
            base = b * Lp
            xp_h[base:base + 1, :] = jnp.zeros((1, Cin), jnp.float32)
            xp_h[base + L + 1:base + L + 2, :] = jnp.zeros((1, Cin), jnp.float32)
            xp_h[base + 1:base + 1 + L, :] = h_ref[b].astype(jnp.float32)
        x = None
        for k in range(3):
            tap = read_tap(xp_h, k, L, 1).astype(CDT)              # (Bt*L, 640)
            part = jnp.dot(tap, w0_ref[k], preferred_element_type=jnp.float32)
            x = part if x is None else x + part
        x = x + vrow("conv0_b")                                    # (Bt*L, 64) f32

        # ---- 6 pre-activation ResBlocks (strides 2,1,2,1,2,1) ---------------
        for i, stride in enumerate(STRIDES):
            Lin, Lout = lens[i], lens[i + 1]
            if stride == 2:
                d = i // 2
                # downsample: Conv1d(k=1, stride=2, bias=False) + BN on raw x.
                # BN scale is pre-folded into wd; only the shift remains.
                fill_slab(xp_m, x, Lin, MAIN)
                x_even = read_tap(xp_m, 1, Lout, 2).astype(CDT)    # rows 0,2,...
                idn = jnp.dot(x_even, wd_ref[d],
                              preferred_element_type=jnp.float32)
                idn = idn + vrow(f"bnd_shift_{i}")
            else:
                idn = x
            h1 = jnp.maximum(x * vrow(f"bn1_scale_{i}")
                             + vrow(f"bn1_shift_{i}"), 0.0)
            o1 = conv3_main(h1, Lin, stride, w3_ref[2 * i])
            h2 = jnp.maximum(o1 * vrow(f"bn2_scale_{i}")
                             + vrow(f"bn2_shift_{i}"), 0.0)
            o2 = conv3_main(h2, Lout, 1, w3_ref[2 * i + 1])
            x = o2 + idn                                           # (Bt*Lout, 64) f32

        # ---- head: AdaptiveAvgPool1d(1) + Flatten + Dropout(eval) + Linear --
        Lfin = lens[-1]
        parts = [jnp.mean(x[b * Lfin:(b + 1) * Lfin, :], axis=0, keepdims=True)
                 for b in range(Bt)]
        pooled = parts[0] if Bt == 1 else jnp.concatenate(parts, axis=0)   # (Bt, 64)
        res = jnp.dot(pooled, lw_ref[...],
                      preferred_element_type=jnp.float32) + lb_ref[...]    # (Bt, 128)
        for b in range(Bt):
            o_ref[b:b + 1, :, :] = res[b:b + 1, :].reshape(1, 1, 128)

    return kernel


def predictor_pallas(hidden, pp):
    """hidden: (B, L, 640) bf16 representations; pp: packed params.  Returns (B,) f32."""
    B, L, Cin = hidden.shape
    lens = _layer_lengths(L)
    vec_idx, nv = _vec_layout()
    Bt = _pick_batch_tile(B, L)
    kernel = _make_predictor_kernel(Bt, L, Cin, lens, vec_idx)

    out = pl.pallas_call(
        kernel,
        out_shape=jax.ShapeDtypeStruct((B, 1, 128), jnp.float32),
        grid=(pl.cdiv(B, Bt),),
        in_specs=[
            pl.BlockSpec((Bt, L, Cin), lambda b: (b, 0, 0)),           # hidden (batch tile)
            pl.BlockSpec((3, Cin, MAIN), lambda b: (0, 0, 0)),         # conv0 weight (per tap)
            pl.BlockSpec((12, 3 * MAIN, MAIN), lambda b: (0, 0, 0)),   # 12 ResBlock k=3 weights
            pl.BlockSpec((3, MAIN, MAIN), lambda b: (0, 0, 0)),        # 3 downsample k=1 weights
            pl.BlockSpec((nv, MAIN), lambda b: (0, 0)),                # bias + folded-BN vectors
            pl.BlockSpec((MAIN, 128), lambda b: (0, 0)),               # linear weight (lane padded)
            pl.BlockSpec((1, 128), lambda b: (0, 0)),                  # linear bias (lane padded)
        ],
        out_specs=pl.BlockSpec((Bt, 1, 128), lambda b: (b, 0, 0)),
        scratch_shapes=[
            pltpu.VMEM((Bt * (L + 2), Cin), jnp.float32),   # padded conv0 slabs
            pltpu.VMEM((Bt * (L + 2), MAIN), jnp.float32),  # padded ResBlock conv slabs
        ],
        compiler_params=pltpu.CompilerParams(
            dimension_semantics=("parallel",),
            vmem_limit_bytes=64 * 1024 * 1024),
    )(hidden, pp["w0"], pp["w3"], pp["wd"], pp["vecs"], pp["lin_w"], pp["lin_b"])
    return out[:, 0, 0]


# ----------------------------------------------------------------------------
# RNAFmForReg.forward
# ----------------------------------------------------------------------------
def rnafm_for_reg_forward(input_ids, params):
    ids = input_ids[:, 1:]                                       # input_ids[:, 1:]
    # TODO(synk): self.bert is an external pretrained RNA-FM transformer (eval mode,
    # layer-12 representations); it is stubbed with a deterministic embedding lookup
    # producing representations of shape (B, L, 640) in bf16.
    hidden = jnp.take(params["emb"], ids, axis=0)                # (B, L, 640) bf16
    return predictor_pallas(hidden, params)                      # .squeeze(-1) -> (B,)


# ----------------------------------------------------------------------------
# Parameters (deterministic synthetic init; eval-mode BN folded to scale/shift)
# ----------------------------------------------------------------------------
def init_raw_params(key, vocab=25, hidden=HIDDEN, main=MAIN):
    keys = jax.random.split(key, 160)
    it = iter(keys)

    def nrm(shape, s=0.05):
        return s * jax.random.normal(next(it), shape, jnp.float32)

    def bn(c):
        gamma = 1.0 + 0.1 * jax.random.normal(next(it), (c,), jnp.float32)
        beta = 0.1 * jax.random.normal(next(it), (c,), jnp.float32)
        mean = 0.1 * jax.random.normal(next(it), (c,), jnp.float32)
        var = 0.5 + jax.random.uniform(next(it), (c,), jnp.float32)
        scale = gamma / jnp.sqrt(var + 1e-5)
        shift = beta - mean * scale
        return scale, shift

    p = {"emb": nrm((vocab, hidden), 0.02),
         "conv0_w": nrm((3, hidden, main)),     # (K, Cin, Cout) == torch weight.permute(2,1,0)
         "conv0_b": nrm((main,))}
    for i, stride in enumerate(STRIDES):
        rb = {}
        rb["bn1_scale"], rb["bn1_shift"] = bn(main)
        rb["w1"] = nrm((3, main, main))
        rb["bn2_scale"], rb["bn2_shift"] = bn(main)
        rb["w2"] = nrm((3, main, main))
        if stride > 1:
            rb["wd"] = nrm((1, main, main))
            rb["bnd_scale"], rb["bnd_shift"] = bn(main)
        p[f"rb{i}"] = rb
    p["lin_w"] = nrm((main, 1))                 # PyTorch Linear(64,1).weight.T
    p["lin_b"] = nrm((1,))
    return p


def pack_predictor_params(raw):
    """Pack per-layer weights into a few VMEM-friendly arrays for the fused kernel."""
    vec_idx, nv = _vec_layout()
    rows = [None] * nv
    rows[vec_idx["conv0_b"]] = raw["conv0_b"]
    wd_list = []
    for i, stride in enumerate(STRIDES):
        rb = raw[f"rb{i}"]
        rows[vec_idx[f"bn1_scale_{i}"]] = rb["bn1_scale"]
        rows[vec_idx[f"bn1_shift_{i}"]] = rb["bn1_shift"]
        rows[vec_idx[f"bn2_scale_{i}"]] = rb["bn2_scale"]
        rows[vec_idx[f"bn2_shift_{i}"]] = rb["bn2_shift"]
        if stride > 1:
            rows[vec_idx[f"bnd_shift_{i}"]] = rb["bnd_shift"]
            # fold the downsample BN scale (per output channel) into the k=1 weight
            wd_list.append(rb["wd"][0] * rb["bnd_scale"][None, :])
    vecs = jnp.stack(rows, axis=0).astype(jnp.float32)             # (nv, 64) f32
    w0 = raw["conv0_w"].astype(COMPUTE_DTYPE)                      # (3, 640, 64) bf16
    w3 = jnp.stack([raw[f"rb{i}"][n].reshape(3 * MAIN, MAIN)
                    for i in range(6) for n in ("w1", "w2")],
                   axis=0).astype(COMPUTE_DTYPE)                   # (12, 192, 64) bf16
    wd = jnp.stack(wd_list, axis=0).astype(COMPUTE_DTYPE)          # (3, 64, 64) bf16
    lin_w = jnp.zeros((MAIN, 128), jnp.float32).at[:, 0:1].set(raw["lin_w"])
    lin_b = jnp.zeros((1, 128), jnp.float32).at[0, 0].set(raw["lin_b"][0])
    emb = raw["emb"].astype(COMPUTE_DTYPE)                         # bf16 representations
    return {"emb": emb, "w0": w0, "w3": w3, "wd": wd, "vecs": vecs,
            "lin_w": lin_w, "lin_b": lin_b}


# ----------------------------------------------------------------------------
# Pure-JAX f32 reference (independent formulation) for correctness checking
# ----------------------------------------------------------------------------
def _conv1d_ref(x, w_kio, stride=1, bias=None):
    """NLC Conv1d with padding=K//2.  x:(B,L,C), w:(K,Cin,Cout)."""
    K = w_kio.shape[0]
    pad = K // 2
    L = x.shape[1]
    Lout = (L + 2 * pad - K) // stride + 1
    xp = jnp.pad(x, ((0, 0), (pad, pad), (0, 0)))
    y = 0.0
    for k in range(K):
        xk = xp[:, k:k + 1 + stride * (Lout - 1):stride, :]
        y = y + jnp.einsum("blc,co->blo", xk, w_kio[k], precision="highest")
    if bias is not None:
        y = y + bias
    return y


def reference_forward(input_ids, raw):
    ids = input_ids[:, 1:]
    # The stubbed "bert" emits bf16 representations (same data the kernel consumes);
    # all predictor math below stays in f32.
    emb = raw["emb"].astype(jnp.bfloat16).astype(jnp.float32)
    x = jnp.take(emb, ids, axis=0)
    x = _conv1d_ref(x, raw["conv0_w"], 1, bias=raw["conv0_b"])
    for i, stride in enumerate(STRIDES):
        rb = raw[f"rb{i}"]
        if stride > 1:
            idn = _conv1d_ref(x, rb["wd"], stride)
            idn = idn * rb["bnd_scale"] + rb["bnd_shift"]
        else:
            idn = x
        h = jnp.maximum(x * rb["bn1_scale"] + rb["bn1_shift"], 0.0)
        h = _conv1d_ref(h, rb["w1"], stride)
        h = jnp.maximum(h * rb["bn2_scale"] + rb["bn2_shift"], 0.0)
        h = _conv1d_ref(h, rb["w2"], 1)
        x = h + idn
    pooled = jnp.mean(x, axis=1)                                        # (B, 64)
    out = jnp.dot(pooled, raw["lin_w"], precision="highest") + raw["lin_b"]
    return out[:, 0]


if __name__ == "__main__":
    key = jax.random.PRNGKey(0)
    pkey, dkey = jax.random.split(key)
    raw = init_raw_params(pkey)
    params = pack_predictor_params(raw)

    B, S = 2, 9                       # 9 tokens; [:, 1:] -> L = 8
    input_ids = jax.random.randint(dkey, (B, S), 1, 25, dtype=jnp.int32)

    fwd = jax.jit(functools.partial(rnafm_for_reg_forward, params=params))
    out = jax.block_until_ready(fwd(input_ids))

    ref = reference_forward(input_ids, raw)
    assert out.shape == (B,) and out.dtype == jnp.float32
    assert bool(jnp.all(jnp.isfinite(out)))
    # bf16 conv-weight/operand rounding (f32 accumulation) vs f32 reference ->
    # slightly relaxed tolerance (documented precision tradeoff per perf review).
    assert bool(jnp.allclose(out, ref, rtol=5e-2, atol=5e-3)), (out, ref)
    print("KERNEL_OK")
</pallas_src>

<mosaic_0001>
module attributes {stable_mosaic.version = 11 : i64} {
  func.func @kernel(%arg0: i32, %arg1: memref<2x8x640xbf16, #tpu.memory_space<vmem>>, %arg2: memref<3x640x64xbf16, #tpu.memory_space<vmem>>, %arg3: memref<12x192x64xbf16, #tpu.memory_space<vmem>>, %arg4: memref<3x64x64xbf16, #tpu.memory_space<vmem>>, %arg5: memref<28x64xf32, #tpu.memory_space<vmem>>, %arg6: memref<64x128xf32, #tpu.memory_space<vmem>>, %arg7: memref<1x128xf32, #tpu.memory_space<vmem>>, %arg8: memref<2x1x128xf32, #tpu.memory_space<vmem>>, %arg9: memref<20x640xf32, #tpu.memory_space<vmem>>, %arg10: memref<20x64xf32, #tpu.memory_space<vmem>>) attributes {dimension_semantics = [#tpu.dimension_semantics<parallel>], iteration_bounds = array<i64: 1>, scalar_prefetch = 0 : i64, scratch_operands = 2 : i64, tpu.core_type = #tpu.core_type<tc>, window_params = [{transform_indices = @transform_0, window_bounds = array<i64: 2, 8, 640>}, {pipeline_mode = #tpu.pipeline_mode<synchronous>, transform_indices = @transform_1, window_bounds = array<i64: 3, 640, 64>}, {pipeline_mode = #tpu.pipeline_mode<synchronous>, transform_indices = @transform_2, window_bounds = array<i64: 12, 192, 64>}, {pipeline_mode = #tpu.pipeline_mode<synchronous>, transform_indices = @transform_3, window_bounds = array<i64: 3, 64, 64>}, {pipeline_mode = #tpu.pipeline_mode<synchronous>, transform_indices = @transform_4, window_bounds = array<i64: 28, 64>}, {pipeline_mode = #tpu.pipeline_mode<synchronous>, transform_indices = @transform_5, window_bounds = array<i64: 64, 128>}, {pipeline_mode = #tpu.pipeline_mode<synchronous>, transform_indices = @transform_6, window_bounds = array<i64: 1, 128>}, {transform_indices = @transform_7, window_bounds = array<i64: 2, 1, 128>}]} {
    %cst = arith.constant 0.000000e+00 : f32
    %0 = vector.broadcast %cst : f32 to vector<1x640xf32>
    %c0 = arith.constant 0 : index
    %c0_0 = arith.constant 0 : index
    %1 = vector.load %arg9[%c0, %c0_0] : memref<20x640xf32, #tpu.memory_space<vmem>>, vector<1x640xf32>
    tpu.vector_store %arg9[%c0, %c0_0], %0 {strides = array<i32>} : memref<20x640xf32, #tpu.memory_space<vmem>>, vector<1x640xf32>,
    %cst_1 = arith.constant 0.000000e+00 : f32
    %2 = vector.broadcast %cst_1 : f32 to vector<1x640xf32>
    %c9 = arith.constant 9 : index
    %c0_2 = arith.constant 0 : index
    %3 = vector.load %arg9[%c9, %c0_2] : memref<20x640xf32, #tpu.memory_space<vmem>>, vector<1x640xf32>
    tpu.vector_store %arg9[%c9, %c0_2], %2 {strides = array<i32>} : memref<20x640xf32, #tpu.memory_space<vmem>>, vector<1x640xf32>,
    %c0_3 = arith.constant 0 : index
    %c0_4 = arith.constant 0 : index
    %c0_5 = arith.constant 0 : index
    %4 = vector.load %arg1[%c0_3, %c0_4, %c0_5] : memref<2x8x640xbf16, #tpu.memory_space<vmem>>, vector<1x8x640xbf16>
    %5 = vector.shape_cast %4 : vector<1x8x640xbf16> to vector<8x640xbf16>
    %6 = arith.extf %5 : vector<8x640xbf16> to vector<8x640xf32>
    %c1 = arith.constant 1 : index
    %c0_6 = arith.constant 0 : index
    %7 = vector.load %arg9[%c1, %c0_6] : memref<20x640xf32, #tpu.memory_space<vmem>>, vector<8x640xf32>
    tpu.vector_store %arg9[%c1, %c0_6], %6 {strides = array<i32>} : memref<20x640xf32, #tpu.memory_space<vmem>>, vector<8x640xf32>,
    %cst_7 = arith.constant 0.000000e+00 : f32
    %8 = vector.broadcast %cst_7 : f32 to vector<1x640xf32>
    %c10 = arith.constant 10 : index
    %c0_8 = arith.constant 0 : index
    %9 = vector.load %arg9[%c10, %c0_8] : memref<20x640xf32, #tpu.memory_space<vmem>>, vector<1x640xf32>
    tpu.vector_store %arg9[%c10, %c0_8], %8 {strides = array<i32>} : memref<20x640xf32, #tpu.memory_space<vmem>>, vector<1x640xf32>,
    %cst_9 = arith.constant 0.000000e+00 : f32
    %10 = vector.broadcast %cst_9 : f32 to vector<1x640xf32>
    %c19 = arith.constant 19 : index
    %c0_10 = arith.constant 0 : index
    %11 = vector.load %arg9[%c19, %c0_10] : memref<20x640xf32, #tpu.memory_space<vmem>>, vector<1x640xf32>
    tpu.vector_store %arg9[%c19, %c0_10], %10 {strides = array<i32>} : memref<20x640xf32, #tpu.memory_space<vmem>>, vector<1x640xf32>,
    %c1_11 = arith.constant 1 : index
    %c0_12 = arith.constant 0 : index
    %c0_13 = arith.constant 0 : index
    %12 = vector.load %arg1[%c1_11, %c0_12, %c0_13] : memref<2x8x640xbf16, #tpu.memory_space<vmem>>, vector<1x8x640xbf16>
    %13 = vector.shape_cast %12 : vector<1x8x640xbf16> to vector<8x640xbf16>
    %14 = arith.extf %13 : vector<8x640xbf16> to vector<8x640xf32>
    %c11 = arith.constant 11 : index
    %c0_14 = arith.constant 0 : index
    %15 = vector.load %arg9[%c11, %c0_14] : memref<20x640xf32, #tpu.memory_space<vmem>>, vector<8x640xf32>
    tpu.vector_store %arg9[%c11, %c0_14], %14 {strides = array<i32>} : memref<20x640xf32, #tpu.memory_space<vmem>>, vector<8x640xf32>,
    %c0_15 = arith.constant 0 : index
    %c0_16 = arith.constant 0 : index
    %16 = vector.load %arg9[%c0_15, %c0_16] : memref<20x640xf32, #tpu.memory_space<vmem>>, vector<8x640xf32>
    %c10_17 = arith.constant 10 : index
    %c0_18 = arith.constant 0 : index
    %17 = vector.load %arg9[%c10_17, %c0_18] : memref<20x640xf32, #tpu.memory_space<vmem>>, vector<8x640xf32>
    %18 = tpu.concatenate %16, %17 in 0 : vector<8x640xf32>, vector<8x640xf32> -> vector<16x640xf32>
    %19 = arith.truncf %18 : vector<16x640xf32> to vector<16x640xbf16>
    %c0_19 = arith.constant 0 : index
    %c0_20 = arith.constant 0 : index
    %c0_21 = arith.constant 0 : index
    %20 = vector.load %arg2[%c0_19, %c0_20, %c0_21] : memref<3x640x64xbf16, #tpu.memory_space<vmem>>, vector<1x640x64xbf16>
    %21 = vector.shape_cast %20 : vector<1x640x64xbf16> to vector<640x64xbf16>
    %cst_22 = arith.constant dense<0.000000e+00> : vector<16x64xf32>
    %22 = tpu.matmul %19, %21, %cst_22 {dimension_numbers = #tpu.dot_dimension_numbers<[1], [0], [0], [1], [0, 0, 1, 1], [], []>} : vector<16x640xbf16>, vector<640x64xbf16>, vector<16x64xf32> -> vector<16x64xf32>
    %c1_23 = arith.constant 1 : index
    %c0_24 = arith.constant 0 : index
    %23 = vector.load %arg9[%c1_23, %c0_24] : memref<20x640xf32, #tpu.memory_space<vmem>>, vector<8x640xf32>
    %c11_25 = arith.constant 11 : index
    %c0_26 = arith.constant 0 : index
    %24 = vector.load %arg9[%c11_25, %c0_26] : memref<20x640xf32, #tpu.memory_space<vmem>>, vector<8x640xf32>
    %25 = tpu.concatenate %23, %24 in 0 : vector<8x640xf32>, vector<8x640xf32> -> vector<16x640xf32>
    %26 = arith.truncf %25 : vector<16x640xf32> to vector<16x640xbf16>
    %c1_27 = arith.constant 1 : index
    %c0_28 = arith.constant 0 : index
    %c0_29 = arith.constant 0 : index
    %27 = vector.load %arg2[%c1_27, %c0_28, %c0_29] : memref<3x640x64xbf16, #tpu.memory_space<vmem>>, vector<1x640x64xbf16>
    %28 = vector.shape_cast %27 : vector<1x640x64xbf16> to vector<640x64xbf16>
    %cst_30 = arith.constant dense<0.000000e+00> : vector<16x64xf32>
    %29 = tpu.matmul %26, %28, %cst_30 {dimension_numbers = #tpu.dot_dimension_numbers<[1], [0], [0], [1], [0, 0, 1, 1], [], []>} : vector<16x640xbf16>, vector<640x64xbf16>, vector<16x64xf32> -> vector<16x64xf32>
    %30 = arith.addf %22, %29 : vector<16x64xf32>
    %c2 = arith.constant 2 : index
    %c0_31 = arith.constant 0 : index
    %31 = vector.load %arg9[%c2, %c0_31] : memref<20x640xf32, #tpu.memory_space<vmem>>, vector<8x640xf32>
    %c12 = arith.constant 12 : index
    %c0_32 = arith.constant 0 : index
    %32 = vector.load %arg9[%c12, %c0_32] : memref<20x640xf32, #tpu.memory_space<vmem>>, vector<8x640xf32>
    %33 = tpu.concatenate %31, %32 in 0 : vector<8x640xf32>, vector<8x640xf32> -> vector<16x640xf32>
    %34 = arith.truncf %33 : vector<16x640xf32> to vector<16x640xbf16>
    %c2_33 = arith.constant 2 : index
    %c0_34 = arith.constant 0 : index
    %c0_35 = arith.constant 0 : index
    %35 = vector.load %arg2[%c2_33, %c0_34, %c0_35] : memref<3x640x64xbf16, #tpu.memory_space<vmem>>, vector<1x640x64xbf16>
    %36 = vector.shape_cast %35 : vector<1x640x64xbf16> to vector<640x64xbf16>
    %cst_36 = arith.constant dense<0.000000e+00> : vector<16x64xf32>
    %37 = tpu.matmul %34, %36, %cst_36 {dimension_numbers = #tpu.dot_dimension_numbers<[1], [0], [0], [1], [0, 0, 1, 1], [], []>} : vector<16x640xbf16>, vector<640x64xbf16>, vector<16x64xf32> -> vector<16x64xf32>
    %38 = arith.addf %30, %37 : vector<16x64xf32>
    %c0_37 = arith.constant 0 : index
    %c0_38 = arith.constant 0 : index
    %39 = vector.load %arg5[%c0_37, %c0_38] : memref<28x64xf32, #tpu.memory_space<vmem>>, vector<1x64xf32>
    %40 = vector.broadcast %39 : vector<1x64xf32> to vector<16x64xf32>
    %41 = arith.addf %38, %40 : vector<16x64xf32>
    %cst_39 = arith.constant 0.000000e+00 : f32
    %42 = vector.broadcast %cst_39 : f32 to vector<1x64xf32>
    %c0_40 = arith.constant 0 : index
    %c0_41 = arith.constant 0 : index
    %43 = vector.load %arg10[%c0_40, %c0_41] : memref<20x64xf32, #tpu.memory_space<vmem>>, vector<1x64xf32>
    tpu.vector_store %arg10[%c0_40, %c0_41], %42 {strides = array<i32>} : memref<20x64xf32, #tpu.memory_space<vmem>>, vector<1x64xf32>,
    %cst_42 = arith.constant 0.000000e+00 : f32
    %44 = vector.broadcast %cst_42 : f32 to vector<1x64xf32>
    %c9_43 = arith.constant 9 : index
    %c0_44 = arith.constant 0 : index
    %45 = vector.load %arg10[%c9_43, %c0_44] : memref<20x64xf32, #tpu.memory_space<vmem>>, vector<1x64xf32>
    tpu.vector_store %arg10[%c9_43, %c0_44], %44 {strides = array<i32>} : memref<20x64xf32, #tpu.memory_space<vmem>>, vector<1x64xf32>,
    %46 = vector.extract_strided_slice %41 {offsets = [0, 0], sizes = [8, 64], strides = [1, 1]} : vector<16x64xf32> to vector<8x64xf32>
    %c1_45 = arith.constant 1 : index
    %c0_46 = arith.constant 0 : index
    %47 = vector.load %arg10[%c1_45, %c0_46] : memref<20x64xf32, #tpu.memory_space<vmem>>, vector<8x64xf32>
    tpu.vector_store %arg10[%c1_45, %c0_46], %46 {strides = array<i32>} : memref<20x64xf32, #tpu.memory_space<vmem>>, vector<8x64xf32>,
    %cst_47 = arith.constant 0.000000e+00 : f32
    %48 = vector.broadcast %cst_47 : f32 to vector<1x64xf32>
    %c10_48 = arith.constant 10 : index
    %c0_49 = arith.constant 0 : index
    %49 = vector.load %arg10[%c10_48, %c0_49] : memref<20x64xf32, #tpu.memory_space<vmem>>, vector<1x64xf32>
    tpu.vector_store %arg10[%c10_48, %c0_49], %48 {strides = array<i32>} : memref<20x64xf32, #tpu.memory_space<vmem>>, vector<1x64xf32>,
    %cst_50 = arith.constant 0.000000e+00 : f32
    %50 = vector.broadcast %cst_50 : f32 to vector<1x64xf32>
    %c19_51 = arith.constant 19 : index
    %c0_52 = arith.constant 0 : index
    %51 = vector.load %arg10[%c19_51, %c0_52] : memref<20x64xf32, #tpu.memory_space<vmem>>, vector<1x64xf32>
    tpu.vector_store %arg10[%c19_51, %c0_52], %50 {strides = array<i32>} : memref<20x64xf32, #tpu.memory_space<vmem>>, vector<1x64xf32>,
    %52 = vector.extract_strided_slice %41 {offsets = [8, 0], sizes = [8, 64], strides = [1, 1]} : vector<16x64xf32> to vector<8x64xf32>
    %c11_53 = arith.constant 11 : index
    %c0_54 = arith.constant 0 : index
    %53 = vector.load %arg10[%c11_53, %c0_54] : memref<20x64xf32, #tpu.memory_space<vmem>>, vector<8x64xf32>
    tpu.vector_store %arg10[%c11_53, %c0_54], %52 {strides = array<i32>} : memref<20x64xf32, #tpu.memory_space<vmem>>, vector<8x64xf32>,
    %c1_55 = arith.constant 1 : index
    %c0_56 = arith.constant 0 : index
    %54 = tpu.strided_load %arg10[%c1_55, %c0_56] {strides = array<i32: 2, 1>} : memref<20x64xf32, #tpu.memory_space<vmem>>, vector<4x64xf32>
    %c11_57 = arith.constant 11 : index
    %c0_58 = arith.constant 0 : index
    %55 = tpu.strided_load %arg10[%c11_57, %c0_58] {strides = array<i32: 2, 1>} : memref<20x64xf32, #tpu.memory_space<vmem>>, vector<4x64xf32>
    %56 = tpu.concatenate %54, %55 in 0 : vector<4x64xf32>, vector<4x64xf32> -> vector<8x64xf32>
    %57 = arith.truncf %56 : vector<8x64xf32> to vector<8x64xbf16>
    %c0_59 = arith.constant 0 : index
    %c0_60 = arith.constant 0 : index
    %c0_61 = arith.constant 0 : index
    %58 = vector.load %arg4[%c0_59, %c0_60, %c0_61] : memref<3x64x64xbf16, #tpu.memory_space<vmem>>, vector<1x64x64xbf16>
    %59 = vector.shape_cast %58 : vector<1x64x64xbf16> to vector<64x64xbf16>
    %cst_62 = arith.constant dense<0.000000e+00> : vector<8x64xf32>
    %60 = tpu.matmul %57, %59, %cst_62 {dimension_numbers = #tpu.dot_dimension_numbers<[1], [0], [0], [1], [0, 0, 1, 1], [], []>} : vector<8x64xbf16>, vector<64x64xbf16>, vector<8x64xf32> -> vector<8x64xf32>
    %c25 = arith.constant 25 : index
    %c0_63 = arith.constant 0 : index
    %61 = vector.load %arg5[%c25, %c0_63] : memref<28x64xf32, #tpu.memory_space<vmem>>, vector<1x64xf32>
    %62 = vector.broadcast %61 : vector<1x64xf32> to vector<8x64xf32>
    %63 = arith.addf %60, %62 : vector<8x64xf32>
    %c1_64 = arith.constant 1 : index
    %c0_65 = arith.constant 0 : index
    %64 = vector.load %arg5[%c1_64, %c0_65] : memref<28x64xf32, #tpu.memory_space<vmem>>, vector<1x64xf32>
    %65 = vector.broadcast %64 : vector<1x64xf32> to vector<16x64xf32>
    %66 = arith.mulf %41, %65 : vector<16x64xf32>
    %c2_66 = arith.constant 2 : index
    %c0_67 = arith.constant 0 : index
    %67 = vector.load %arg5[%c2_66, %c0_67] : memref<28x64xf32, #tpu.memory_space<vmem>>, vector<1x64xf32>
    %68 = vector.broadcast %67 : vector<1x64xf32> to vector<16x64xf32>
    %69 = arith.addf %66, %68 : vector<16x64xf32>
    %cst_68 = arith.constant 0.000000e+00 : f32
    %70 = vector.broadcast %cst_68 : f32 to vector<16x64xf32>
    %71 = arith.maximumf %69, %70 : vector<16x64xf32>
    %c0_69 = arith.constant 0 : index
    %c0_70 = arith.constant 0 : index
    %c0_71 = arith.constant 0 : index
    %72 = vector.load %arg3[%c0_69, %c0_70, %c0_71] : memref<12x192x64xbf16, #tpu.memory_space<vmem>>, vector<1x192x64xbf16>
    %73 = vector.shape_cast %72 : vector<1x192x64xbf16> to vector<192x64xbf16>
    %cst_72 = arith.constant 0.000000e+00 : f32
    %74 = vector.broadcast %cst_72 : f32 to vector<1x64xf32>
    %c0_73 = arith.constant 0 : index
    %c0_74 = arith.constant 0 : index
    %75 = vector.load %arg10[%c0_73, %c0_74] : memref<20x64xf32, #tpu.memory_space<vmem>>, vector<1x64xf32>
    tpu.vector_store %arg10[%c0_73, %c0_74], %74 {strides = array<i32>} : memref<20x64xf32, #tpu.memory_space<vmem>>, vector<1x64xf32>,
    %cst_75 = arith.constant 0.000000e+00 : f32
    %76 = vector.broadcast %cst_75 : f32 to vector<1x64xf32>
    %c9_76 = arith.constant 9 : index
    %c0_77 = arith.constant 0 : index
    %77 = vector.load %arg10[%c9_76, %c0_77] : memref<20x64xf32, #tpu.memory_space<vmem>>, vector<1x64xf32>
    tpu.vector_store %arg10[%c9_76, %c0_77], %76 {strides = array<i32>} : memref<20x64xf32, #tpu.memory_space<vmem>>, vector<1x64xf32>,
    %78 = vector.extract_strided_slice %71 {offsets = [0, 0], sizes = [8, 64], strides = [1, 1]} : vector<16x64xf32> to vector<8x64xf32>
    %c1_78 = arith.constant 1 : index
    %c0_79 = arith.constant 0 : index
    %79 = vector.load %arg10[%c1_78, %c0_79] : memref<20x64xf32, #tpu.memory_space<vmem>>, vector<8x64xf32>
    tpu.vector_store %arg10[%c1_78, %c0_79], %78 {strides = array<i32>} : memref<20x64xf32, #tpu.memory_space<vmem>>, vector<8x64xf32>,
    %cst_80 = arith.constant 0.000000e+00 : f32
    %80 = vector.broadcast %cst_80 : f32 to vector<1x64xf32>
    %c10_81 = arith.constant 10 : index
    %c0_82 = arith.constant 0 : index
    %81 = vector.load %arg10[%c10_81, %c0_82] : memref<20x64xf32, #tpu.memory_space<vmem>>, vector<1x64xf32>
    tpu.vector_store %arg10[%c10_81, %c0_82], %80 {strides = array<i32>} : memref<20x64xf32, #tpu.memory_space<vmem>>, vector<1x64xf32>,
    %cst_83 = arith.constant 0.000000e+00 : f32
    %82 = vector.broadcast %cst_83 : f32 to vector<1x64xf32>
    %c19_84 = arith.constant 19 : index
    %c0_85 = arith.constant 0 : index
    %83 = vector.load %arg10[%c19_84, %c0_85] : memref<20x64xf32, #tpu.memory_space<vmem>>, vector<1x64xf32>
    tpu.vector_store %arg10[%c19_84, %c0_85], %82 {strides = array<i32>} : memref<20x64xf32, #tpu.memory_space<vmem>>, vector<1x64xf32>,
    %84 = vector.extract_strided_slice %71 {offsets = [8, 0], sizes = [8, 64], strides = [1, 1]} : vector<16x64xf32> to vector<8x64xf32>
    %c11_86 = arith.constant 11 : index
    %c0_87 = arith.constant 0 : index
    %85 = vector.load %arg10[%c11_86, %c0_87] : memref<20x64xf32, #tpu.memory_space<vmem>>, vector<8x64xf32>
    tpu.vector_store %arg10[%c11_86, %c0_87], %84 {strides = array<i32>} : memref<20x64xf32, #tpu.memory_space<vmem>>, vector<8x64xf32>,
    %c0_88 = arith.constant 0 : index
    %c0_89 = arith.constant 0 : index
    %86 = tpu.strided_load %arg10[%c0_88, %c0_89] {strides = array<i32: 2, 1>} : memref<20x64xf32, #tpu.memory_space<vmem>>, vector<4x64xf32>
    %c10_90 = arith.constant 10 : index
    %c0_91 = arith.constant 0 : index
    %87 = tpu.strided_load %arg10[%c10_90, %c0_91] {strides = array<i32: 2, 1>} : memref<20x64xf32, #tpu.memory_space<vmem>>, vector<4x64xf32>
    %88 = tpu.concatenate %86, %87 in 0 : vector<4x64xf32>, vector<4x64xf32> -> vector<8x64xf32>
    %c1_92 = arith.constant 1 : index
    %c0_93 = arith.constant 0 : index
    %89 = tpu.strided_load %arg10[%c1_92, %c0_93] {strides = array<i32: 2, 1>} : memref<20x64xf32, #tpu.memory_space<vmem>>, vector<4x64xf32>
    %c11_94 = arith.constant 11 : index
    %c0_95 = arith.constant 0 : index
    %90 = tpu.strided_load %arg10[%c11_94, %c0_95] {strides = array<i32: 2, 1>} : memref<20x64xf32, #tpu.memory_space<vmem>>, vector<4x64xf32>
    %91 = tpu.concatenate %89, %90 in 0 : vector<4x64xf32>, vector<4x64xf32> -> vector<8x64xf32>
    %c2_96 = arith.constant 2 : index
    %c0_97 = arith.constant 0 : index
    %92 = tpu.strided_load %arg10[%c2_96, %c0_97] {strides = array<i32: 2, 1>} : memref<20x64xf32, #tpu.memory_space<vmem>>, vector<4x64xf32>
    %c12_98 = arith.constant 12 : index
    %c0_99 = arith.constant 0 : index
    %93 = tpu.strided_load %arg10[%c12_98, %c0_99] {strides = array<i32: 2, 1>} : memref<20x64xf32, #tpu.memory_space<vmem>>, vector<4x64xf32>
    %94 = tpu.concatenate %92, %93 in 0 : vector<4x64xf32>, vector<4x64xf32> -> vector<8x64xf32>
    %95 = tpu.concatenate %88, %91, %94 in 1 : vector<8x64xf32>, vector<8x64xf32>, vector<8x64xf32> -> vector<8x192xf32>
    %96 = arith.truncf %95 : vector<8x192xf32> to vector<8x192xbf16>
    %cst_100 = arith.constant dense<0.000000e+00> : vector<8x64xf32>
    %97 = tpu.matmul %96, %73, %cst_100 {dimension_numbers = #tpu.dot_dimension_numbers<[1], [0], [0], [1], [0, 0, 1, 1], [], []>} : vector<8x192xbf16>, vector<192x64xbf16>, vector<8x64xf32> -> vector<8x64xf32>
    %c3 = arith.constant 3 : index
    %c0_101 = arith.constant 0 : index
    %98 = vector.load %arg5[%c3, %c0_101] : memref<28x64xf32, #tpu.memory_space<vmem>>, vector<1x64xf32>
    %99 = vector.broadcast %98 : vector<1x64xf32> to vector<8x64xf32>
    %100 = arith.mulf %97, %99 : vector<8x64xf32>
    %c4 = arith.constant 4 : index
    %c0_102 = arith.constant 0 : index
    %101 = vector.load %arg5[%c4, %c0_102] : memref<28x64xf32, #tpu.memory_space<vmem>>, vector<1x64xf32>
    %102 = vector.broadcast %101 : vector<1x64xf32> to vector<8x64xf32>
    %103 = arith.addf %100, %102 : vector<8x64xf32>
    %cst_103 = arith.constant 0.000000e+00 : f32
    %104 = vector.broadcast %cst_103 : f32 to vector<8x64xf32>
    %105 = arith.maximumf %103, %104 : vector<8x64xf32>
    %c1_104 = arith.constant 1 : index
    %c0_105 = arith.constant 0 : index
    %c0_106 = arith.constant 0 : index
    %106 = vector.load %arg3[%c1_104, %c0_105, %c0_106] : memref<12x192x64xbf16, #tpu.memory_space<vmem>>, vector<1x192x64xbf16>
    %107 = vector.shape_cast %106 : vector<1x192x64xbf16> to vector<192x64xbf16>
    %cst_107 = arith.constant 0.000000e+00 : f32
    %108 = vector.broadcast %cst_107 : f32 to vector<1x64xf32>
    %c0_108 = arith.constant 0 : index
    %c0_109 = arith.constant 0 : index
    %109 = vector.load %arg10[%c0_108, %c0_109] : memref<20x64xf32, #tpu.memory_space<vmem>>, vector<1x64xf32>
    tpu.vector_store %arg10[%c0_108, %c0_109], %108 {strides = array<i32>} : memref<20x64xf32, #tpu.memory_space<vmem>>, vector<1x64xf32>,
    %cst_110 = arith.constant 0.000000e+00 : f32
    %110 = vector.broadcast %cst_110 : f32 to vector<1x64xf32>
    %c5 = arith.constant 5 : index
    %c0_111 = arith.constant 0 : index
    %111 = vector.load %arg10[%c5, %c0_111] : memref<20x64xf32, #tpu.memory_space<vmem>>, vector<1x64xf32>
    tpu.vector_store %arg10[%c5, %c0_111], %110 {strides = array<i32>} : memref<20x64xf32, #tpu.memory_space<vmem>>, vector<1x64xf32>,
    %112 = vector.extract_strided_slice %105 {offsets = [0, 0], sizes = [4, 64], strides = [1, 1]} : vector<8x64xf32> to vector<4x64xf32>
    %c1_112 = arith.constant 1 : index
    %c0_113 = arith.constant 0 : index
    %113 = vector.load %arg10[%c1_112, %c0_113] : memref<20x64xf32, #tpu.memory_space<vmem>>, vector<4x64xf32>
    tpu.vector_store %arg10[%c1_112, %c0_113], %112 {strides = array<i32>} : memref<20x64xf32, #tpu.memory_space<vmem>>, vector<4x64xf32>,
    %cst_114 = arith.constant 0.000000e+00 : f32
    %114 = vector.broadcast %cst_114 : f32 to vector<1x64xf32>
    %c10_115 = arith.constant 10 : index
    %c0_116 = arith.constant 0 : index
    %115 = vector.load %arg10[%c10_115, %c0_116] : memref<20x64xf32, #tpu.memory_space<vmem>>, vector<1x64xf32>
    tpu.vector_store %arg10[%c10_115, %c0_116], %114 {strides = array<i32>} : memref<20x64xf32, #tpu.memory_space<vmem>>, vector<1x64xf32>,
    %cst_117 = arith.constant 0.000000e+00 : f32
    %116 = vector.broadcast %cst_117 : f32 to vector<1x64xf32>
    %c15 = arith.constant 15 : index
    %c0_118 = arith.constant 0 : index
    %117 = vector.load %arg10[%c15, %c0_118] : memref<20x64xf32, #tpu.memory_space<vmem>>, vector<1x64xf32>
    tpu.vector_store %arg10[%c15, %c0_118], %116 {strides = array<i32>} : memref<20x64xf32, #tpu.memory_space<vmem>>, vector<1x64xf32>,
    %118 = vector.extract_strided_slice %105 {offsets = [4, 0], sizes = [4, 64], strides = [1, 1]} : vector<8x64xf32> to vector<4x64xf32>
    %c11_119 = arith.constant 11 : index
    %c0_120 = arith.constant 0 : index
    %119 = vector.load %arg10[%c11_119, %c0_120] : memref<20x64xf32, #tpu.memory_space<vmem>>, vector<4x64xf32>
    tpu.vector_store %arg10[%c11_119, %c0_120], %118 {strides = array<i32>} : memref<20x64xf32, #tpu.memory_space<vmem>>, vector<4x64xf32>,
    %c0_121 = arith.constant 0 : index
    %c0_122 = arith.constant 0 : index
    %120 = vector.load %arg10[%c0_121, %c0_122] : memref<20x64xf32, #tpu.memory_space<vmem>>, vector<4x64xf32>
    %c10_123 = arith.constant 10 : index
    %c0_124 = arith.constant 0 : index
    %121 = vector.load %arg10[%c10_123, %c0_124] : memref<20x64xf32, #tpu.memory_space<vmem>>, vector<4x64xf32>
    %122 = tpu.concatenate %120, %121 in 0 : vector<4x64xf32>, vector<4x64xf32> -> vector<8x64xf32>
    %c2_125 = arith.constant 2 : index
    %c0_126 = arith.constant 0 : index
    %123 = vector.load %arg10[%c2_125, %c0_126] : memref<20x64xf32, #tpu.memory_space<vmem>>, vector<4x64xf32>
    %c12_127 = arith.constant 12 : index
    %c0_128 = arith.constant 0 : index
    %124 = vector.load %arg10[%c12_127, %c0_128] : memref<20x64xf32, #tpu.memory_space<vmem>>, vector<4x64xf32>
    %125 = tpu.concatenate %123, %124 in 0 : vector<4x64xf32>, vector<4x64xf32> -> vector<8x64xf32>
    %126 = tpu.concatenate %122, %105, %125 in 1 : vector<8x64xf32>, vector<8x64xf32>, vector<8x64xf32> -> vector<8x192xf32>
    %127 = arith.truncf %126 : vector<8x192xf32> to vector<8x192xbf16>
    %cst_129 = arith.constant dense<0.000000e+00> : vector<8x64xf32>
    %128 = tpu.matmul %127, %107, %cst_129 {dimension_numbers = #tpu.dot_dimension_numbers<[1], [0], [0], [1], [0, 0, 1, 1], [], []>} : vector<8x192xbf16>, vector<192x64xbf16>, vector<8x64xf32> -> vector<8x64xf32>
    %129 = arith.addf %128, %63 : vector<8x64xf32>
    %c5_130 = arith.constant 5 : index
    %c0_131 = arith.constant 0 : index
    %130 = vector.load %arg5[%c5_130, %c0_131] : memref<28x64xf32, #tpu.memory_space<vmem>>, vector<1x64xf32>
    %131 = vector.broadcast %130 : vector<1x64xf32> to vector<8x64xf32>
    %132 = arith.mulf %129, %131 : vector<8x64xf32>
    %c6 = arith.constant 6 : index
    %c0_132 = arith.constant 0 : index
    %133 = vector.load %arg5[%c6, %c0_132] : memref<28x64xf32, #tpu.memory_space<vmem>>, vector<1x64xf32>
    %134 = vector.broadcast %133 : vector<1x64xf32> to vector<8x64xf32>
    %135 = arith.addf %132, %134 : vector<8x64xf32>
    %cst_133 = arith.constant 0.000000e+00 : f32
    %136 = vector.broadcast %cst_133 : f32 to vector<8x64xf32>
    %137 = arith.maximumf %135, %136 : vector<8x64xf32>
    %c2_134 = arith.constant 2 : index
    %c0_135 = arith.constant 0 : index
    %c0_136 = arith.constant 0 : index
    %138 = vector.load %arg3[%c2_134, %c0_135, %c0_136] : memref<12x192x64xbf16, #tpu.memory_space<vmem>>, vector<1x192x64xbf16>
    %139 = vector.shape_cast %138 : vector<1x192x64xbf16> to vector<192x64xbf16>
    %cst_137 = arith.constant 0.000000e+00 : f32
    %140 = vector.broadcast %cst_137 : f32 to vector<1x64xf32>
    %c0_138 = arith.constant 0 : index
    %c0_139 = arith.constant 0 : index
    %141 = vector.load %arg10[%c0_138, %c0_139] : memref<20x64xf32, #tpu.memory_space<vmem>>, vector<1x64xf32>
    tpu.vector_store %arg10[%c0_138, %c0_139], %140 {strides = array<i32>} : memref<20x64xf32, #tpu.memory_space<vmem>>, vector<1x64xf32>,
    %cst_140 = arith.constant 0.000000e+00 : f32
    %142 = vector.broadcast %cst_140 : f32 to vector<1x64xf32>
    %c5_141 = arith.constant 5 : index
    %c0_142 = arith.constant 0 : index
    %143 = vector.load %arg10[%c5_141, %c0_142] : memref<20x64xf32, #tpu.memory_space<vmem>>, vector<1x64xf32>
    tpu.vector_store %arg10[%c5_141, %c0_142], %142 {strides = array<i32>} : memref<20x64xf32, #tpu.memory_space<vmem>>, vector<1x64xf32>,
    %144 = vector.extract_strided_slice %137 {offsets = [0, 0], sizes = [4, 64], strides = [1, 1]} : vector<8x64xf32> to vector<4x64xf32>
    %c1_143 = arith.constant 1 : index
    %c0_144 = arith.constant 0 : index
    %145 = vector.load %arg10[%c1_143, %c0_144] : memref<20x64xf32, #tpu.memory_space<vmem>>, vector<4x64xf32>
    tpu.vector_store %arg10[%c1_143, %c0_144], %144 {strides = array<i32>} : memref<20x64xf32, #tpu.memory_space<vmem>>, vector<4x64xf32>,
    %cst_145 = arith.constant 0.000000e+00 : f32
    %146 = vector.broadcast %cst_145 : f32 to vector<1x64xf32>
    %c10_146 = arith.constant 10 : index
    %c0_147 = arith.constant 0 : index
    %147 = vector.load %arg10[%c10_146, %c0_147] : memref<20x64xf32, #tpu.memory_space<vmem>>, vector<1x64xf32>
    tpu.vector_store %arg10[%c10_146, %c0_147], %146 {strides = array<i32>} : memref<20x64xf32, #tpu.memory_space<vmem>>, vector<1x64xf32>,
    %cst_148 = arith.constant 0.000000e+00 : f32
    %148 = vector.broadcast %cst_148 : f32 to vector<1x64xf32>
    %c15_149 = arith.constant 15 : index
    %c0_150 = arith.constant 0 : index
    %149 = vector.load %arg10[%c15_149, %c0_150] : memref<20x64xf32, #tpu.memory_space<vmem>>, vector<1x64xf32>
    tpu.vector_store %arg10[%c15_149, %c0_150], %148 {strides = array<i32>} : memref<20x64xf32, #tpu.memory_space<vmem>>, vector<1x64xf32>,
    %150 = vector.extract_strided_slice %137 {offsets = [4, 0], sizes = [4, 64], strides = [1, 1]} : vector<8x64xf32> to vector<4x64xf32>
    %c11_151 = arith.constant 11 : index
    %c0_152 = arith.constant 0 : index
    %151 = vector.load %arg10[%c11_151, %c0_152] : memref<20x64xf32, #tpu.memory_space<vmem>>, vector<4x64xf32>
    tpu.vector_store %arg10[%c11_151, %c0_152], %150 {strides = array<i32>} : memref<20x64xf32, #tpu.memory_space<vmem>>, vector<4x64xf32>,
    %c0_153 = arith.constant 0 : index
    %c0_154 = arith.constant 0 : index
    %152 = vector.load %arg10[%c0_153, %c0_154] : memref<20x64xf32, #tpu.memory_space<vmem>>, vector<4x64xf32>
    %c10_155 = arith.constant 10 : index
    %c0_156 = arith.constant 0 : index
    %153 = vector.load %arg10[%c10_155, %c0_156] : memref<20x64xf32, #tpu.memory_space<vmem>>, vector<4x64xf32>
    %154 = tpu.concatenate %152, %153 in 0 : vector<4x64xf32>, vector<4x64xf32> -> vector<8x64xf32>
    %c2_157 = arith.constant 2 : index
    %c0_158 = arith.constant 0 : index
    %155 = vector.load %arg10[%c2_157, %c0_158] : memref<20x64xf32, #tpu.memory_space<vmem>>, vector<4x64xf32>
    %c12_159 = arith.constant 12 : index
    %c0_160 = arith.constant 0 : index
    %156 = vector.load %arg10[%c12_159, %c0_160] : memref<20x64xf32, #tpu.memory_space<vmem>>, vector<4x64xf32>
    %157 = tpu.concatenate %155, %156 in 0 : vector<4x64xf32>, vector<4x64xf32> -> vector<8x64xf32>
    %158 = tpu.concatenate %154, %137, %157 in 1 : vector<8x64xf32>, vector<8x64xf32>, vector<8x64xf32> -> vector<8x192xf32>
    %159 = arith.truncf %158 : vector<8x192xf32> to vector<8x192xbf16>
    %cst_161 = arith.constant dense<0.000000e+00> : vector<8x64xf32>
    %160 = tpu.matmul %159, %139, %cst_161 {dimension_numbers = #tpu.dot_dimension_numbers<[1], [0], [0], [1], [0, 0, 1, 1], [], []>} : vector<8x192xbf16>, vector<192x64xbf16>, vector<8x64xf32> -> vector<8x64xf32>
    %c7 = arith.constant 7 : index
    %c0_162 = arith.constant 0 : index
    %161 = vector.load %arg5[%c7, %c0_162] : memref<28x64xf32, #tpu.memory_space<vmem>>, vector<1x64xf32>
    %162 = vector.broadcast %161 : vector<1x64xf32> to vector<8x64xf32>
    %163 = arith.mulf %160, %162 : vector<8x64xf32>
    %c8 = arith.constant 8 : index
    %c0_163 = arith.constant 0 : index
    %164 = vector.load %arg5[%c8, %c0_163] : memref<28x64xf32, #tpu.memory_space<vmem>>, vector<1x64xf32>
    %165 = vector.broadcast %164 : vector<1x64xf32> to vector<8x64xf32>
    %166 = arith.addf %163, %165 : vector<8x64xf32>
    %cst_164 = arith.constant 0.000000e+00 : f32
    %167 = vector.broadcast %cst_164 : f32 to vector<8x64xf32>
    %168 = arith.maximumf %166, %167 : vector<8x64xf32>
    %c3_165 = arith.constant 3 : index
    %c0_166 = arith.constant 0 : index
    %c0_167 = arith.constant 0 : index
    %169 = vector.load %arg3[%c3_165, %c0_166, %c0_167] : memref<12x192x64xbf16, #tpu.memory_space<vmem>>, vector<1x192x64xbf16>
    %170 = vector.shape_cast %169 : vector<1x192x64xbf16> to vector<192x64xbf16>
    %cst_168 = arith.constant 0.000000e+00 : f32
    %171 = vector.broadcast %cst_168 : f32 to vector<1x64xf32>
    %c0_169 = arith.constant 0 : index
    %c0_170 = arith.constant 0 : index
    %172 = vector.load %arg10[%c0_169, %c0_170] : memref<20x64xf32, #tpu.memory_space<vmem>>, vector<1x64xf32>
    tpu.vector_store %arg10[%c0_169, %c0_170], %171 {strides = array<i32>} : memref<20x64xf32, #tpu.memory_space<vmem>>, vector<1x64xf32>,
    %cst_171 = arith.constant 0.000000e+00 : f32
    %173 = vector.broadcast %cst_171 : f32 to vector<1x64xf32>
    %c5_172 = arith.constant 5 : index
    %c0_173 = arith.constant 0 : index
    %174 = vector.load %arg10[%c5_172, %c0_173] : memref<20x64xf32, #tpu.memory_space<vmem>>, vector<1x64xf32>
    tpu.vector_store %arg10[%c5_172, %c0_173], %173 {strides = array<i32>} : memref<20x64xf32, #tpu.memory_space<vmem>>, vector<1x64xf32>,
    %175 = vector.extract_strided_slice %168 {offsets = [0, 0], sizes = [4, 64], strides = [1, 1]} : vector<8x64xf32> to vector<4x64xf32>
    %c1_174 = arith.constant 1 : index
    %c0_175 = arith.constant 0 : index
    %176 = vector.load %arg10[%c1_174, %c0_175] : memref<20x64xf32, #tpu.memory_space<vmem>>, vector<4x64xf32>
    tpu.vector_store %arg10[%c1_174, %c0_175], %175 {strides = array<i32>} : memref<20x64xf32, #tpu.memory_space<vmem>>, vector<4x64xf32>,
    %cst_176 = arith.constant 0.000000e+00 : f32
    %177 = vector.broadcast %cst_176 : f32 to vector<1x64xf32>
    %c10_177 = arith.constant 10 : index
    %c0_178 = arith.constant 0 : index
    %178 = vector.load %arg10[%c10_177, %c0_178] : memref<20x64xf32, #tpu.memory_space<vmem>>, vector<1x64xf32>
    tpu.vector_store %arg10[%c10_177, %c0_178], %177 {strides = array<i32>} : memref<20x64xf32, #tpu.memory_space<vmem>>, vector<1x64xf32>,
    %cst_179 = arith.constant 0.000000e+00 : f32
    %179 = vector.broadcast %cst_179 : f32 to vector<1x64xf32>
    %c15_180 = arith.constant 15 : index
    %c0_181 = arith.constant 0 : index
    %180 = vector.load %arg10[%c15_180, %c0_181] : memref<20x64xf32, #tpu.memory_space<vmem>>, vector<1x64xf32>
    tpu.vector_store %arg10[%c15_180, %c0_181], %179 {strides = array<i32>} : memref<20x64xf32, #tpu.memory_space<vmem>>, vector<1x64xf32>,
    %181 = vector.extract_strided_slice %168 {offsets = [4, 0], sizes = [4, 64], strides = [1, 1]} : vector<8x64xf32> to vector<4x64xf32>
    %c11_182 = arith.constant 11 : index
    %c0_183 = arith.constant 0 : index
    %182 = vector.load %arg10[%c11_182, %c0_183] : memref<20x64xf32, #tpu.memory_space<vmem>>, vector<4x64xf32>
    tpu.vector_store %arg10[%c11_182, %c0_183], %181 {strides = array<i32>} : memref<20x64xf32, #tpu.memory_space<vmem>>, vector<4x64xf32>,
    %c0_184 = arith.constant 0 : index
    %c0_185 = arith.constant 0 : index
    %183 = vector.load %arg10[%c0_184, %c0_185] : memref<20x64xf32, #tpu.memory_space<vmem>>, vector<4x64xf32>
    %c10_186 = arith.constant 10 : index
    %c0_187 = arith.constant 0 : index
    %184 = vector.load %arg10[%c10_186, %c0_187] : memref<20x64xf32, #tpu.memory_space<vmem>>, vector<4x64xf32>
    %185 = tpu.concatenate %183, %184 in 0 : vector<4x64xf32>, vector<4x64xf32> -> vector<8x64xf32>
    %c2_188 = arith.constant 2 : index
    %c0_189 = arith.constant 0 : index
    %186 = vector.load %arg10[%c2_188, %c0_189] : memref<20x64xf32, #tpu.memory_space<vmem>>, vector<4x64xf32>
    %c12_190 = arith.constant 12 : index
    %c0_191 = arith.constant 0 : index
    %187 = vector.load %arg10[%c12_190, %c0_191] : memref<20x64xf32, #tpu.memory_space<vmem>>, vector<4x64xf32>
    %188 = tpu.concatenate %186, %187 in 0 : vector<4x64xf32>, vector<4x64xf32> -> vector<8x64xf32>
    %189 = tpu.concatenate %185, %168, %188 in 1 : vector<8x64xf32>, vector<8x64xf32>, vector<8x64xf32> -> vector<8x192xf32>
    %190 = arith.truncf %189 : vector<8x192xf32> to vector<8x192xbf16>
    %cst_192 = arith.constant dense<0.000000e+00> : vector<8x64xf32>
    %191 = tpu.matmul %190, %170, %cst_192 {dimension_numbers = #tpu.dot_dimension_numbers<[1], [0], [0], [1], [0, 0, 1, 1], [], []>} : vector<8x192xbf16>, vector<192x64xbf16>, vector<8x64xf32> -> vector<8x64xf32>
    %192 = arith.addf %191, %129 : vector<8x64xf32>
    %cst_193 = arith.constant 0.000000e+00 : f32
    %193 = vector.broadcast %cst_193 : f32 to vector<1x64xf32>
    %c0_194 = arith.constant 0 : index
    %c0_195 = arith.constant 0 : index
    %194 = vector.load %arg10[%c0_194, %c0_195] : memref<20x64xf32, #tpu.memory_space<vmem>>, vector<1x64xf32>
    tpu.vector_store %arg10[%c0_194, %c0_195], %193 {strides = array<i32>} : memref<20x64xf32, #tpu.memory_space<vmem>>, vector<1x64xf32>,
    %cst_196 = arith.constant 0.000000e+00 : f32
    %195 = vector.broadcast %cst_196 : f32 to vector<1x64xf32>
    %c5_197 = arith.constant 5 : index
    %c0_198 = arith.constant 0 : index
    %196 = vector.load %arg10[%c5_197, %c0_198] : memref<20x64xf32, #tpu.memory_space<vmem>>, vector<1x64xf32>
    tpu.vector_store %arg10[%c5_197, %c0_198], %195 {strides = array<i32>} : memref<20x64xf32, #tpu.memory_space<vmem>>, vector<1x64xf32>,
    %197 = vector.extract_strided_slice %192 {offsets = [0, 0], sizes = [4, 64], strides = [1, 1]} : vector<8x64xf32> to vector<4x64xf32>
    %c1_199 = arith.constant 1 : index
    %c0_200 = arith.constant 0 : index
    %198 = vector.load %arg10[%c1_199, %c0_200] : memref<20x64xf32, #tpu.memory_space<vmem>>, vector<4x64xf32>
    tpu.vector_store %arg10[%c1_199, %c0_200], %197 {strides = array<i32>} : memref<20x64xf32, #tpu.memory_space<vmem>>, vector<4x64xf32>,
    %cst_201 = arith.constant 0.000000e+00 : f32
    %199 = vector.broadcast %cst_201 : f32 to vector<1x64xf32>
    %c10_202 = arith.constant 10 : index
    %c0_203 = arith.constant 0 : index
    %200 = vector.load %arg10[%c10_202, %c0_203] : memref<20x64xf32, #tpu.memory_space<vmem>>, vector<1x64xf32>
    tpu.vector_store %arg10[%c10_202, %c0_203], %199 {strides = array<i32>} : memref<20x64xf32, #tpu.memory_space<vmem>>, vector<1x64xf32>,
    %cst_204 = arith.constant 0.000000e+00 : f32
    %201 = vector.broadcast %cst_204 : f32 to vector<1x64xf32>
    %c15_205 = arith.constant 15 : index
    %c0_206 = arith.constant 0 : index
    %202 = vector.load %arg10[%c15_205, %c0_206] : memref<20x64xf32, #tpu.memory_space<vmem>>, vector<1x64xf32>
    tpu.vector_store %arg10[%c15_205, %c0_206], %201 {strides = array<i32>} : memref<20x64xf32, #tpu.memory_space<vmem>>, vector<1x64xf32>,
    %203 = vector.extract_strided_slice %192 {offsets = [4, 0], sizes = [4, 64], strides = [1, 1]} : vector<8x64xf32> to vector<4x64xf32>
    %c11_207 = arith.constant 11 : index
    %c0_208 = arith.constant 0 : index
    %204 = vector.load %arg10[%c11_207, %c0_208] : memref<20x64xf32, #tpu.memory_space<vmem>>, vector<4x64xf32>
    tpu.vector_store %arg10[%c11_207, %c0_208], %203 {strides = array<i32>} : memref<20x64xf32, #tpu.memory_space<vmem>>, vector<4x64xf32>,
    %c1_209 = arith.constant 1 : index
    %c0_210 = arith.constant 0 : index
    %205 = tpu.strided_load %arg10[%c1_209, %c0_210] {strides = array<i32: 2, 1>} : memref<20x64xf32, #tpu.memory_space<vmem>>, vector<2x64xf32>
    %c11_211 = arith.constant 11 : index
    %c0_212 = arith.constant 0 : index
    %206 = tpu.strided_load %arg10[%c11_211, %c0_212] {strides = array<i32: 2, 1>} : memref<20x64xf32, #tpu.memory_space<vmem>>, vector<2x64xf32>
    %207 = tpu.concatenate %205, %206 in 0 : vector<2x64xf32>, vector<2x64xf32> -> vector<4x64xf32>
    %208 = arith.truncf %207 : vector<4x64xf32> to vector<4x64xbf16>
    %c1_213 = arith.constant 1 : index
    %c0_214 = arith.constant 0 : index
    %c0_215 = arith.constant 0 : index
    %209 = vector.load %arg4[%c1_213, %c0_214, %c0_215] : memref<3x64x64xbf16, #tpu.memory_space<vmem>>, vector<1x64x64xbf16>
    %210 = vector.shape_cast %209 : vector<1x64x64xbf16> to vector<64x64xbf16>
    %cst_216 = arith.constant dense<0.000000e+00> : vector<4x64xf32>
    %211 = tpu.matmul %208, %210, %cst_216 {dimension_numbers = #tpu.dot_dimension_numbers<[1], [0], [0], [1], [0, 0, 1, 1], [], []>} : vector<4x64xbf16>, vector<64x64xbf16>, vector<4x64xf32> -> vector<4x64xf32>
    %c26 = arith.constant 26 : index
    %c0_217 = arith.constant 0 : index
    %212 = vector.load %arg5[%c26, %c0_217] : memref<28x64xf32, #tpu.memory_space<vmem>>, vector<1x64xf32>
    %213 = vector.broadcast %212 : vector<1x64xf32> to vector<4x64xf32>
    %214 = arith.addf %211, %213 : vector<4x64xf32>
    %c9_218 = arith.constant 9 : index
    %c0_219 = arith.constant 0 : index
    %215 = vector.load %arg5[%c9_218, %c0_219] : memref<28x64xf32, #tpu.memory_space<vmem>>, vector<1x64xf32>
    %216 = vector.broadcast %215 : vector<1x64xf32> to vector<8x64xf32>
    %217 = arith.mulf %192, %216 : vector<8x64xf32>
    %c10_220 = arith.constant 10 : index
    %c0_221 = arith.constant 0 : index
    %218 = vector.load %arg5[%c10_220, %c0_221] : memref<28x64xf32, #tpu.memory_space<vmem>>, vector<1x64xf32>
    %219 = vector.broadcast %218 : vector<1x64xf32> to vector<8x64xf32>
    %220 = arith.addf %217, %219 : vector<8x64xf32>
    %cst_222 = arith.constant 0.000000e+00 : f32
    %221 = vector.broadcast %cst_222 : f32 to vector<8x64xf32>
    %222 = arith.maximumf %220, %221 : vector<8x64xf32>
    %c4_223 = arith.constant 4 : index
    %c0_224 = arith.constant 0 : index
    %c0_225 = arith.constant 0 : index
    %223 = vector.load %arg3[%c4_223, %c0_224, %c0_225] : memref<12x192x64xbf16, #tpu.memory_space<vmem>>, vector<1x192x64xbf16>
    %224 = vector.shape_cast %223 : vector<1x192x64xbf16> to vector<192x64xbf16>
    %cst_226 = arith.constant 0.000000e+00 : f32
    %225 = vector.broadcast %cst_226 : f32 to vector<1x64xf32>
    %c0_227 = arith.constant 0 : index
    %c0_228 = arith.constant 0 : index
    %226 = vector.load %arg10[%c0_227, %c0_228] : memref<20x64xf32, #tpu.memory_space<vmem>>, vector<1x64xf32>
    tpu.vector_store %arg10[%c0_227, %c0_228], %225 {strides = array<i32>} : memref<20x64xf32, #tpu.memory_space<vmem>>, vector<1x64xf32>,
    %cst_229 = arith.constant 0.000000e+00 : f32
    %227 = vector.broadcast %cst_229 : f32 to vector<1x64xf32>
    %c5_230 = arith.constant 5 : index
    %c0_231 = arith.constant 0 : index
    %228 = vector.load %arg10[%c5_230, %c0_231] : memref<20x64xf32, #tpu.memory_space<vmem>>, vector<1x64xf32>
    tpu.vector_store %arg10[%c5_230, %c0_231], %227 {strides = array<i32>} : memref<20x64xf32, #tpu.memory_space<vmem>>, vector<1x64xf32>,
    %229 = vector.extract_strided_slice %222 {offsets = [0, 0], sizes = [4, 64], strides = [1, 1]} : vector<8x64xf32> to vector<4x64xf32>
    %c1_232 = arith.constant 1 : index
    %c0_233 = arith.constant 0 : index
    %230 = vector.load %arg10[%c1_232, %c0_233] : memref<20x64xf32, #tpu.memory_space<vmem>>, vector<4x64xf32>
    tpu.vector_store %arg10[%c1_232, %c0_233], %229 {strides = array<i32>} : memref<20x64xf32, #tpu.memory_space<vmem>>, vector<4x64xf32>,
    %cst_234 = arith.constant 0.000000e+00 : f32
    %231 = vector.broadcast %cst_234 : f32 to vector<1x64xf32>
    %c10_235 = arith.constant 10 : index
    %c0_236 = arith.constant 0 : index
    %232 = vector.load %arg10[%c10_235, %c0_236] : memref<20x64xf32, #tpu.memory_space<vmem>>, vector<1x64xf32>
    tpu.vector_store %arg10[%c10_235, %c0_236], %231 {strides = array<i32>} : memref<20x64xf32, #tpu.memory_space<vmem>>, vector<1x64xf32>,
    %cst_237 = arith.constant 0.000000e+00 : f32
    %233 = vector.broadcast %cst_237 : f32 to vector<1x64xf32>
    %c15_238 = arith.constant 15 : index
    %c0_239 = arith.constant 0 : index
    %234 = vector.load %arg10[%c15_238, %c0_239] : memref<20x64xf32, #tpu.memory_space<vmem>>, vector<1x64xf32>
    tpu.vector_store %arg10[%c15_238, %c0_239], %233 {strides = array<i32>} : memref<20x64xf32, #tpu.memory_space<vmem>>, vector<1x64xf32>,
    %235 = vector.extract_strided_slice %222 {offsets = [4, 0], sizes = [4, 64], strides = [1, 1]} : vector<8x64xf32> to vector<4x64xf32>
    %c11_240 = arith.constant 11 : index
    %c0_241 = arith.constant 0 : index
    %236 = vector.load %arg10[%c11_240, %c0_241] : memref<20x64xf32, #tpu.memory_space<vmem>>, vector<4x64xf32>
    tpu.vector_store %arg10[%c11_240, %c0_241], %235 {strides = array<i32>} : memref<20x64xf32, #tpu.memory_space<vmem>>, vector<4x64xf32>,
    %c0_242 = arith.constant 0 : index
    %c0_243 = arith.constant 0 : index
    %237 = tpu.strided_load %arg10[%c0_242, %c0_243] {strides = array<i32: 2, 1>} : memref<20x64xf32, #tpu.memory_space<vmem>>, vector<2x64xf32>
    %c10_244 = arith.constant 10 : index
    %c0_245 = arith.constant 0 : index
    %238 = tpu.strided_load %arg10[%c10_244, %c0_245] {strides = array<i32: 2, 1>} : memref<20x64xf32, #tpu.memory_space<vmem>>, vector<2x64xf32>
    %239 = tpu.concatenate %237, %238 in 0 : vector<2x64xf32>, vector<2x64xf32> -> vector<4x64xf32>
    %c1_246 = arith.constant 1 : index
    %c0_247 = arith.constant 0 : index
    %240 = tpu.strided_load %arg10[%c1_246, %c0_247] {strides = array<i32: 2, 1>} : memref<20x64xf32, #tpu.memory_space<vmem>>, vector<2x64xf32>
    %c11_248 = arith.constant 11 : index
    %c0_249 = arith.constant 0 : index
    %241 = tpu.strided_load %arg10[%c11_248, %c0_249] {strides = array<i32: 2, 1>} : memref<20x64xf32, #tpu.memory_space<vmem>>, vector<2x64xf32>
    %242 = tpu.concatenate %240, %241 in 0 : vector<2x64xf32>, vector<2x64xf32> -> vector<4x64xf32>
    %c2_250 = arith.constant 2 : index
    %c0_251 = arith.constant 0 : index
    %243 = tpu.strided_load %arg10[%c2_250, %c0_251] {strides = array<i32: 2, 1>} : memref<20x64xf32, #tpu.memory_space<vmem>>, vector<2x64xf32>
    %c12_252 = arith.constant 12 : index
    %c0_253 = arith.constant 0 : index
    %244 = tpu.strided_load %arg10[%c12_252, %c0_253] {strides = array<i32: 2, 1>} : memref<20x64xf32, #tpu.memory_space<vmem>>, vector<2x64xf32>
    %245 = tpu.concatenate %243, %244 in 0 : vector<2x64xf32>, vector<2x64xf32> -> vector<4x64xf32>
    %246 = tpu.concatenate %239, %242, %245 in 1 : vector<4x64xf32>, vector<4x64xf32>, vector<4x64xf32> -> vector<4x192xf32>
    %247 = arith.truncf %246 : vector<4x192xf32> to vector<4x192xbf16>
    %cst_254 = arith.constant dense<0.000000e+00> : vector<4x64xf32>
    %248 = tpu.matmul %247, %224, %cst_254 {dimension_numbers = #tpu.dot_dimension_numbers<[1], [0], [0], [1], [0, 0, 1, 1], [], []>} : vector<4x192xbf16>, vector<192x64xbf16>, vector<4x64xf32> -> vector<4x64xf32>
    %c11_255 = arith.constant 11 : index
    %c0_256 = arith.constant 0 : index
    %249 = vector.load %arg5[%c11_255, %c0_256] : memref<28x64xf32, #tpu.memory_space<vmem>>, vector<1x64xf32>
    %250 = vector.broadcast %249 : vector<1x64xf32> to vector<4x64xf32>
    %251 = arith.mulf %248, %250 : vector<4x64xf32>
    %c12_257 = arith.constant 12 : index
    %c0_258 = arith.constant 0 : index
    %252 = vector.load %arg5[%c12_257, %c0_258] : memref<28x64xf32, #tpu.memory_space<vmem>>, vector<1x64xf32>
    %253 = vector.broadcast %252 : vector<1x64xf32> to vector<4x64xf32>
    %254 = arith.addf %251, %253 : vector<4x64xf32>
    %cst_259 = arith.constant 0.000000e+00 : f32
    %255 = vector.broadcast %cst_259 : f32 to vector<4x64xf32>
    %256 = arith.maximumf %254, %255 : vector<4x64xf32>
    %c5_260 = arith.constant 5 : index
    %c0_261 = arith.constant 0 : index
    %c0_262 = arith.constant 0 : index
    %257 = vector.load %arg3[%c5_260, %c0_261, %c0_262] : memref<12x192x64xbf16, #tpu.memory_space<vmem>>, vector<1x192x64xbf16>
    %258 = vector.shape_cast %257 : vector<1x192x64xbf16> to vector<192x64xbf16>
    %cst_263 = arith.constant 0.000000e+00 : f32
    %259 = vector.broadcast %cst_263 : f32 to vector<1x64xf32>
    %c0_264 = arith.constant 0 : index
    %c0_265 = arith.constant 0 : index
    %260 = vector.load %arg10[%c0_264, %c0_265] : memref<20x64xf32, #tpu.memory_space<vmem>>, vector<1x64xf32>
    tpu.vector_store %arg10[%c0_264, %c0_265], %259 {strides = array<i32>} : memref<20x64xf32, #tpu.memory_space<vmem>>, vector<1x64xf32>,
    %cst_266 = arith.constant 0.000000e+00 : f32
    %261 = vector.broadcast %cst_266 : f32 to vector<1x64xf32>
    %c3_267 = arith.constant 3 : index
    %c0_268 = arith.constant 0 : index
    %262 = vector.load %arg10[%c3_267, %c0_268] : memref<20x64xf32, #tpu.memory_space<vmem>>, vector<1x64xf32>
    tpu.vector_store %arg10[%c3_267, %c0_268], %261 {strides = array<i32>} : memref<20x64xf32, #tpu.memory_space<vmem>>, vector<1x64xf32>,
    %263 = vector.extract_strided_slice %256 {offsets = [0, 0], sizes = [2, 64], strides = [1, 1]} : vector<4x64xf32> to vector<2x64xf32>
    %c1_269 = arith.constant 1 : index
    %c0_270 = arith.constant 0 : index
    %264 = vector.load %arg10[%c1_269, %c0_270] : memref<20x64xf32, #tpu.memory_space<vmem>>, vector<2x64xf32>
    tpu.vector_store %arg10[%c1_269, %c0_270], %263 {strides = array<i32>} : memref<20x64xf32, #tpu.memory_space<vmem>>, vector<2x64xf32>,
    %cst_271 = arith.constant 0.000000e+00 : f32
    %265 = vector.broadcast %cst_271 : f32 to vector<1x64xf32>
    %c10_272 = arith.constant 10 : index
    %c0_273 = arith.constant 0 : index
    %266 = vector.load %arg10[%c10_272, %c0_273] : memref<20x64xf32, #tpu.memory_space<vmem>>, vector<1x64xf32>
    tpu.vector_store %arg10[%c10_272, %c0_273], %265 {strides = array<i32>} : memref<20x64xf32, #tpu.memory_space<vmem>>, vector<1x64xf32>,
    %cst_274 = arith.constant 0.000000e+00 : f32
    %267 = vector.broadcast %cst_274 : f32 to vector<1x64xf32>
    %c13 = arith.constant 13 : index
    %c0_275 = arith.constant 0 : index
    %268 = vector.load %arg10[%c13, %c0_275] : memref<20x64xf32, #tpu.memory_space<vmem>>, vector<1x64xf32>
    tpu.vector_store %arg10[%c13, %c0_275], %267 {strides = array<i32>} : memref<20x64xf32, #tpu.memory_space<vmem>>, vector<1x64xf32>,
    %269 = vector.extract_strided_slice %256 {offsets = [2, 0], sizes = [2, 64], strides = [1, 1]} : vector<4x64xf32> to vector<2x64xf32>
    %c11_276 = arith.constant 11 : index
    %c0_277 = arith.constant 0 : index
    %270 = vector.load %arg10[%c11_276, %c0_277] : memref<20x64xf32, #tpu.memory_space<vmem>>, vector<2x64xf32>
    tpu.vector_store %arg10[%c11_276, %c0_277], %269 {strides = array<i32>} : memref<20x64xf32, #tpu.memory_space<vmem>>, vector<2x64xf32>,
    %c0_278 = arith.constant 0 : index
    %c0_279 = arith.constant 0 : index
    %271 = vector.load %arg10[%c0_278, %c0_279] : memref<20x64xf32, #tpu.memory_space<vmem>>, vector<2x64xf32>
    %c10_280 = arith.constant 10 : index
    %c0_281 = arith.constant 0 : index
    %272 = vector.load %arg10[%c10_280, %c0_281] : memref<20x64xf32, #tpu.memory_space<vmem>>, vector<2x64xf32>
    %273 = tpu.concatenate %271, %272 in 0 : vector<2x64xf32>, vector<2x64xf32> -> vector<4x64xf32>
    %c2_282 = arith.constant 2 : index
    %c0_283 = arith.constant 0 : index
    %274 = vector.load %arg10[%c2_282, %c0_283] : memref<20x64xf32, #tpu.memory_space<vmem>>, vector<2x64xf32>
    %c12_284 = arith.constant 12 : index
    %c0_285 = arith.constant 0 : index
    %275 = vector.load %arg10[%c12_284, %c0_285] : memref<20x64xf32, #tpu.memory_space<vmem>>, vector<2x64xf32>
    %276 = tpu.concatenate %274, %275 in 0 : vector<2x64xf32>, vector<2x64xf32> -> vector<4x64xf32>
    %277 = tpu.concatenate %273, %256, %276 in 1 : vector<4x64xf32>, vector<4x64xf32>, vector<4x64xf32> -> vector<4x192xf32>
    %278 = arith.truncf %277 : vector<4x192xf32> to vector<4x192xbf16>
    %cst_286 = arith.constant dense<0.000000e+00> : vector<4x64xf32>
    %279 = tpu.matmul %278, %258, %cst_286 {dimension_numbers = #tpu.dot_dimension_numbers<[1], [0], [0], [1], [0, 0, 1, 1], [], []>} : vector<4x192xbf16>, vector<192x64xbf16>, vector<4x64xf32> -> vector<4x64xf32>
    %280 = arith.addf %279, %214 : vector<4x64xf32>
    %c13_287 = arith.constant 13 : index
    %c0_288 = arith.constant 0 : index
    %281 = vector.load %arg5[%c13_287, %c0_288] : memref<28x64xf32, #tpu.memory_space<vmem>>, vector<1x64xf32>
    %282 = vector.broadcast %281 : vector<1x64xf32> to vector<4x64xf32>
    %283 = arith.mulf %280, %282 : vector<4x64xf32>
    %c14 = arith.constant 14 : index
    %c0_289 = arith.constant 0 : index
    %284 = vector.load %arg5[%c14, %c0_289] : memref<28x64xf32, #tpu.memory_space<vmem>>, vector<1x64xf32>
    %285 = vector.broadcast %284 : vector<1x64xf32> to vector<4x64xf32>
    %286 = arith.addf %283, %285 : vector<4x64xf32>
    %cst_290 = arith.constant 0.000000e+00 : f32
    %287 = vector.broadcast %cst_290 : f32 to vector<4x64xf32>
    %288 = arith.maximumf %286, %287 : vector<4x64xf32>
    %c6_291 = arith.constant 6 : index
    %c0_292 = arith.constant 0 : index
    %c0_293 = arith.constant 0 : index
    %289 = vector.load %arg3[%c6_291, %c0_292, %c0_293] : memref<12x192x64xbf16, #tpu.memory_space<vmem>>, vector<1x192x64xbf16>
    %290 = vector.shape_cast %289 : vector<1x192x64xbf16> to vector<192x64xbf16>
    %cst_294 = arith.constant 0.000000e+00 : f32
    %291 = vector.broadcast %cst_294 : f32 to vector<1x64xf32>
    %c0_295 = arith.constant 0 : index
    %c0_296 = arith.constant 0 : index
    %292 = vector.load %arg10[%c0_295, %c0_296] : memref<20x64xf32, #tpu.memory_space<vmem>>, vector<1x64xf32>
    tpu.vector_store %arg10[%c0_295, %c0_296], %291 {strides = array<i32>} : memref<20x64xf32, #tpu.memory_space<vmem>>, vector<1x64xf32>,
    %cst_297 = arith.constant 0.000000e+00 : f32
    %293 = vector.broadcast %cst_297 : f32 to vector<1x64xf32>
    %c3_298 = arith.constant 3 : index
    %c0_299 = arith.constant 0 : index
    %294 = vector.load %arg10[%c3_298, %c0_299] : memref<20x64xf32, #tpu.memory_space<vmem>>, vector<1x64xf32>
    tpu.vector_store %arg10[%c3_298, %c0_299], %293 {strides = array<i32>} : memref<20x64xf32, #tpu.memory_space<vmem>>, vector<1x64xf32>,
    %295 = vector.extract_strided_slice %288 {offsets = [0, 0], sizes = [2, 64], strides = [1, 1]} : vector<4x64xf32> to vector<2x64xf32>
    %c1_300 = arith.constant 1 : index
    %c0_301 = arith.constant 0 : index
    %296 = vector.load %arg10[%c1_300, %c0_301] : memref<20x64xf32, #tpu.memory_space<vmem>>, vector<2x64xf32>
    tpu.vector_store %arg10[%c1_300, %c0_301], %295 {strides = array<i32>} : memref<20x64xf32, #tpu.memory_space<vmem>>, vector<2x64xf32>,
    %cst_302 = arith.constant 0.000000e+00 : f32
    %297 = vector.broadcast %cst_302 : f32 to vector<1x64xf32>
    %c10_303 = arith.constant 10 : index
    %c0_304 = arith.constant 0 : index
    %298 = vector.load %arg10[%c10_303, %c0_304] : memref<20x64xf32, #tpu.memory_space<vmem>>, vector<1x64xf32>
    tpu.vector_store %arg10[%c10_303, %c0_304], %297 {strides = array<i32>} : memref<20x64xf32, #tpu.memory_space<vmem>>, vector<1x64xf32>,
    %cst_305 = arith.constant 0.000000e+00 : f32
    %299 = vector.broadcast %cst_305 : f32 to vector<1x64xf32>
    %c13_306 = arith.constant 13 : index
    %c0_307 = arith.constant 0 : index
    %300 = vector.load %arg10[%c13_306, %c0_307] : memref<20x64xf32, #tpu.memory_space<vmem>>, vector<1x64xf32>
    tpu.vector_store %arg10[%c13_306, %c0_307], %299 {strides = array<i32>} : memref<20x64xf32, #tpu.memory_space<vmem>>, vector<1x64xf32>,
    %301 = vector.extract_strided_slice %288 {offsets = [2, 0], sizes = [2, 64], strides = [1, 1]} : vector<4x64xf32> to vector<2x64xf32>
    %c11_308 = arith.constant 11 : index
    %c0_309 = arith.constant 0 : index
    %302 = vector.load %arg10[%c11_308, %c0_309] : memref<20x64xf32, #tpu.memory_space<vmem>>, vector<2x64xf32>
    tpu.vector_store %arg10[%c11_308, %c0_309], %301 {strides = array<i32>} : memref<20x64xf32, #tpu.memory_space<vmem>>, vector<2x64xf32>,
    %c0_310 = arith.constant 0 : index
    %c0_311 = arith.constant 0 : index
    %303 = vector.load %arg10[%c0_310, %c0_311] : memref<20x64xf32, #tpu.memory_space<vmem>>, vector<2x64xf32>
    %c10_312 = arith.constant 10 : index
    %c0_313 = arith.constant 0 : index
    %304 = vector.load %arg10[%c10_312, %c0_313] : memref<20x64xf32, #tpu.memory_space<vmem>>, vector<2x64xf32>
    %305 = tpu.concatenate %303, %304 in 0 : vector<2x64xf32>, vector<2x64xf32> -> vector<4x64xf32>
    %c2_314 = arith.constant 2 : index
    %c0_315 = arith.constant 0 : index
    %306 = vector.load %arg10[%c2_314, %c0_315] : memref<20x64xf32, #tpu.memory_space<vmem>>, vector<2x64xf32>
    %c12_316 = arith.constant 12 : index
    %c0_317 = arith.constant 0 : index
    %307 = vector.load %arg10[%c12_316, %c0_317] : memref<20x64xf32, #tpu.memory_space<vmem>>, vector<2x64xf32>
    %308 = tpu.concatenate %306, %307 in 0 : vector<2x64xf32>, vector<2x64xf32> -> vector<4x64xf32>
    %309 = tpu.concatenate %305, %288, %308 in 1 : vector<4x64xf32>, vector<4x64xf32>, vector<4x64xf32> -> vector<4x192xf32>
    %310 = arith.truncf %309 : vector<4x192xf32> to vector<4x192xbf16>
    %cst_318 = arith.constant dense<0.000000e+00> : vector<4x64xf32>
    %311 = tpu.matmul %310, %290, %cst_318 {dimension_numbers = #tpu.dot_dimension_numbers<[1], [0], [0], [1], [0, 0, 1, 1], [], []>} : vector<4x192xbf16>, vector<192x64xbf16>, vector<4x64xf32> -> vector<4x64xf32>
    %c15_319 = arith.constant 15 : index
    %c0_320 = arith.constant 0 : index
    %312 = vector.load %arg5[%c15_319, %c0_320] : memref<28x64xf32, #tpu.memory_space<vmem>>, vector<1x64xf32>
    %313 = vector.broadcast %312 : vector<1x64xf32> to vector<4x64xf32>
    %314 = arith.mulf %311, %313 : vector<4x64xf32>
    %c16 = arith.constant 16 : index
    %c0_321 = arith.constant 0 : index
    %315 = vector.load %arg5[%c16, %c0_321] : memref<28x64xf32, #tpu.memory_space<vmem>>, vector<1x64xf32>
    %316 = vector.broadcast %315 : vector<1x64xf32> to vector<4x64xf32>
    %317 = arith.addf %314, %316 : vector<4x64xf32>
    %cst_322 = arith.constant 0.000000e+00 : f32
    %318 = vector.broadcast %cst_322 : f32 to vector<4x64xf32>
    %319 = arith.maximumf %317, %318 : vector<4x64xf32>
    %c7_323 = arith.constant 7 : index
    %c0_324 = arith.constant 0 : index
    %c0_325 = arith.constant 0 : index
    %320 = vector.load %arg3[%c7_323, %c0_324, %c0_325] : memref<12x192x64xbf16, #tpu.memory_space<vmem>>, vector<1x192x64xbf16>
    %321 = vector.shape_cast %320 : vector<1x192x64xbf16> to vector<192x64xbf16>
    %cst_326 = arith.constant 0.000000e+00 : f32
    %322 = vector.broadcast %cst_326 : f32 to vector<1x64xf32>
    %c0_327 = arith.constant 0 : index
    %c0_328 = arith.constant 0 : index
    %323 = vector.load %arg10[%c0_327, %c0_328] : memref<20x64xf32, #tpu.memory_space<vmem>>, vector<1x64xf32>
    tpu.vector_store %arg10[%c0_327, %c0_328], %322 {strides = array<i32>} : memref<20x64xf32, #tpu.memory_space<vmem>>, vector<1x64xf32>,
    %cst_329 = arith.constant 0.000000e+00 : f32
    %324 = vector.broadcast %cst_329 : f32 to vector<1x64xf32>
    %c3_330 = arith.constant 3 : index
    %c0_331 = arith.constant 0 : index
    %325 = vector.load %arg10[%c3_330, %c0_331] : memref<20x64xf32, #tpu.memory_space<vmem>>, vector<1x64xf32>
    tpu.vector_store %arg10[%c3_330, %c0_331], %324 {strides = array<i32>} : memref<20x64xf32, #tpu.memory_space<vmem>>, vector<1x64xf32>,
    %326 = vector.extract_strided_slice %319 {offsets = [0, 0], sizes = [2, 64], strides = [1, 1]} : vector<4x64xf32> to vector<2x64xf32>
    %c1_332 = arith.constant 1 : index
    %c0_333 = arith.constant 0 : index
    %327 = vector.load %arg10[%c1_332, %c0_333] : memref<20x64xf32, #tpu.memory_space<vmem>>, vector<2x64xf32>
    tpu.vector_store %arg10[%c1_332, %c0_333], %326 {strides = array<i32>} : memref<20x64xf32, #tpu.memory_space<vmem>>, vector<2x64xf32>,
    %cst_334 = arith.constant 0.000000e+00 : f32
    %328 = vector.broadcast %cst_334 : f32 to vector<1x64xf32>
    %c10_335 = arith.constant 10 : index
    %c0_336 = arith.constant 0 : index
    %329 = vector.load %arg10[%c10_335, %c0_336] : memref<20x64xf32, #tpu.memory_space<vmem>>, vector<1x64xf32>
    tpu.vector_store %arg10[%c10_335, %c0_336], %328 {strides = array<i32>} : memref<20x64xf32, #tpu.memory_space<vmem>>, vector<1x64xf32>,
    %cst_337 = arith.constant 0.000000e+00 : f32
    %330 = vector.broadcast %cst_337 : f32 to vector<1x64xf32>
    %c13_338 = arith.constant 13 : index
    %c0_339 = arith.constant 0 : index
    %331 = vector.load %arg10[%c13_338, %c0_339] : memref<20x64xf32, #tpu.memory_space<vmem>>, vector<1x64xf32>
    tpu.vector_store %arg10[%c13_338, %c0_339], %330 {strides = array<i32>} : memref<20x64xf32, #tpu.memory_space<vmem>>, vector<1x64xf32>,
    %332 = vector.extract_strided_slice %319 {offsets = [2, 0], sizes = [2, 64], strides = [1, 1]} : vector<4x64xf32> to vector<2x64xf32>
    %c11_340 = arith.constant 11 : index
    %c0_341 = arith.constant 0 : index
    %333 = vector.load %arg10[%c11_340, %c0_341] : memref<20x64xf32, #tpu.memory_space<vmem>>, vector<2x64xf32>
    tpu.vector_store %arg10[%c11_340, %c0_341], %332 {strides = array<i32>} : memref<20x64xf32, #tpu.memory_space<vmem>>, vector<2x64xf32>,
    %c0_342 = arith.constant 0 : index
    %c0_343 = arith.constant 0 : index
    %334 = vector.load %arg10[%c0_342, %c0_343] : memref<20x64xf32, #tpu.memory_space<vmem>>, vector<2x64xf32>
    %c10_344 = arith.constant 10 : index
    %c0_345 = arith.constant 0 : index
    %335 = vector.load %arg10[%c10_344, %c0_345] : memref<20x64xf32, #tpu.memory_space<vmem>>, vector<2x64xf32>
    %336 = tpu.concatenate %334, %335 in 0 : vector<2x64xf32>, vector<2x64xf32> -> vector<4x64xf32>
    %c2_346 = arith.constant 2 : index
    %c0_347 = arith.constant 0 : index
    %337 = vector.load %arg10[%c2_346, %c0_347] : memref<20x64xf32, #tpu.memory_space<vmem>>, vector<2x64xf32>
    %c12_348 = arith.constant 12 : index
    %c0_349 = arith.constant 0 : index
    %338 = vector.load %arg10[%c12_348, %c0_349] : memref<20x64xf32, #tpu.memory_space<vmem>>, vector<2x64xf32>
    %339 = tpu.concatenate %337, %338 in 0 : vector<2x64xf32>, vector<2x64xf32> -> vector<4x64xf32>
    %340 = tpu.concatenate %336, %319, %339 in 1 : vector<4x64xf32>, vector<4x64xf32>, vector<4x64xf32> -> vector<4x192xf32>
    %341 = arith.truncf %340 : vector<4x192xf32> to vector<4x192xbf16>
    %cst_350 = arith.constant dense<0.000000e+00> : vector<4x64xf32>
    %342 = tpu.matmul %341, %321, %cst_350 {dimension_numbers = #tpu.dot_dimension_numbers<[1], [0], [0], [1], [0, 0, 1, 1], [], []>} : vector<4x192xbf16>, vector<192x64xbf16>, vector<4x64xf32> -> vector<4x64xf32>
    %343 = arith.addf %342, %280 : vector<4x64xf32>
    %cst_351 = arith.constant 0.000000e+00 : f32
    %344 = vector.broadcast %cst_351 : f32 to vector<1x64xf32>
    %c0_352 = arith.constant 0 : index
    %c0_353 = arith.constant 0 : index
    %345 = vector.load %arg10[%c0_352, %c0_353] : memref<20x64xf32, #tpu.memory_space<vmem>>, vector<1x64xf32>
    tpu.vector_store %arg10[%c0_352, %c0_353], %344 {strides = array<i32>} : memref<20x64xf32, #tpu.memory_space<vmem>>, vector<1x64xf32>,
    %cst_354 = arith.constant 0.000000e+00 : f32
    %346 = vector.broadcast %cst_354 : f32 to vector<1x64xf32>
    %c3_355 = arith.constant 3 : index
    %c0_356 = arith.constant 0 : index
    %347 = vector.load %arg10[%c3_355, %c0_356] : memref<20x64xf32, #tpu.memory_space<vmem>>, vector<1x64xf32>
    tpu.vector_store %arg10[%c3_355, %c0_356], %346 {strides = array<i32>} : memref<20x64xf32, #tpu.memory_space<vmem>>, vector<1x64xf32>,
    %348 = vector.extract_strided_slice %343 {offsets = [0, 0], sizes = [2, 64], strides = [1, 1]} : vector<4x64xf32> to vector<2x64xf32>
    %c1_357 = arith.constant 1 : index
    %c0_358 = arith.constant 0 : index
    %349 = vector.load %arg10[%c1_357, %c0_358] : memref<20x64xf32, #tpu.memory_space<vmem>>, vector<2x64xf32>
    tpu.vector_store %arg10[%c1_357, %c0_358], %348 {strides = array<i32>} : memref<20x64xf32, #tpu.memory_space<vmem>>, vector<2x64xf32>,
    %cst_359 = arith.constant 0.000000e+00 : f32
    %350 = vector.broadcast %cst_359 : f32 to vector<1x64xf32>
    %c10_360 = arith.constant 10 : index
    %c0_361 = arith.constant 0 : index
    %351 = vector.load %arg10[%c10_360, %c0_361] : memref<20x64xf32, #tpu.memory_space<vmem>>, vector<1x64xf32>
    tpu.vector_store %arg10[%c10_360, %c0_361], %350 {strides = array<i32>} : memref<20x64xf32, #tpu.memory_space<vmem>>, vector<1x64xf32>,
    %cst_362 = arith.constant 0.000000e+00 : f32
    %352 = vector.broadcast %cst_362 : f32 to vector<1x64xf32>
    %c13_363 = arith.constant 13 : index
    %c0_364 = arith.constant 0 : index
    %353 = vector.load %arg10[%c13_363, %c0_364] : memref<20x64xf32, #tpu.memory_space<vmem>>, vector<1x64xf32>
    tpu.vector_store %arg10[%c13_363, %c0_364], %352 {strides = array<i32>} : memref<20x64xf32, #tpu.memory_space<vmem>>, vector<1x64xf32>,
    %354 = vector.extract_strided_slice %343 {offsets = [2, 0], sizes = [2, 64], strides = [1, 1]} : vector<4x64xf32> to vector<2x64xf32>
    %c11_365 = arith.constant 11 : index
    %c0_366 = arith.constant 0 : index
    %355 = vector.load %arg10[%c11_365, %c0_366] : memref<20x64xf32, #tpu.memory_space<vmem>>, vector<2x64xf32>
    tpu.vector_store %arg10[%c11_365, %c0_366], %354 {strides = array<i32>} : memref<20x64xf32, #tpu.memory_space<vmem>>, vector<2x64xf32>,
    %c1_367 = arith.constant 1 : index
    %c0_368 = arith.constant 0 : index
    %356 = tpu.strided_load %arg10[%c1_367, %c0_368] {strides = array<i32: 2, 1>} : memref<20x64xf32, #tpu.memory_space<vmem>>, vector<1x64xf32>
    %c11_369 = arith.constant 11 : index
    %c0_370 = arith.constant 0 : index
    %357 = tpu.strided_load %arg10[%c11_369, %c0_370] {strides = array<i32: 2, 1>} : memref<20x64xf32, #tpu.memory_space<vmem>>, vector<1x64xf32>
    %358 = tpu.concatenate %356, %357 in 0 : vector<1x64xf32>, vector<1x64xf32> -> vector<2x64xf32>
    %359 = arith.truncf %358 : vector<2x64xf32> to vector<2x64xbf16>
    %c2_371 = arith.constant 2 : index
    %c0_372 = arith.constant 0 : index
    %c0_373 = arith.constant 0 : index
    %360 = vector.load %arg4[%c2_371, %c0_372, %c0_373] : memref<3x64x64xbf16, #tpu.memory_space<vmem>>, vector<1x64x64xbf16>
    %361 = vector.shape_cast %360 : vector<1x64x64xbf16> to vector<64x64xbf16>
    %cst_374 = arith.constant dense<0.000000e+00> : vector<2x64xf32>
    %362 = tpu.matmul %359, %361, %cst_374 {dimension_numbers = #tpu.dot_dimension_numbers<[1], [0], [0], [1], [0, 0, 1, 1], [], []>} : vector<2x64xbf16>, vector<64x64xbf16>, vector<2x64xf32> -> vector<2x64xf32>
    %c27 = arith.constant 27 : index
    %c0_375 = arith.constant 0 : index
    %363 = vector.load %arg5[%c27, %c0_375] : memref<28x64xf32, #tpu.memory_space<vmem>>, vector<1x64xf32>
    %364 = vector.broadcast %363 : vector<1x64xf32> to vector<2x64xf32>
    %365 = arith.addf %362, %364 : vector<2x64xf32>
    %c17 = arith.constant 17 : index
    %c0_376 = arith.constant 0 : index
    %366 = vector.load %arg5[%c17, %c0_376] : memref<28x64xf32, #tpu.memory_space<vmem>>, vector<1x64xf32>
    %367 = vector.broadcast %366 : vector<1x64xf32> to vector<4x64xf32>
    %368 = arith.mulf %343, %367 : vector<4x64xf32>
    %c18 = arith.constant 18 : index
    %c0_377 = arith.constant 0 : index
    %369 = vector.load %arg5[%c18, %c0_377] : memref<28x64xf32, #tpu.memory_space<vmem>>, vector<1x64xf32>
    %370 = vector.broadcast %369 : vector<1x64xf32> to vector<4x64xf32>
    %371 = arith.addf %368, %370 : vector<4x64xf32>
    %cst_378 = arith.constant 0.000000e+00 : f32
    %372 = vector.broadcast %cst_378 : f32 to vector<4x64xf32>
    %373 = arith.maximumf %371, %372 : vector<4x64xf32>
    %c8_379 = arith.constant 8 : index
    %c0_380 = arith.constant 0 : index
    %c0_381 = arith.constant 0 : index
    %374 = vector.load %arg3[%c8_379, %c0_380, %c0_381] : memref<12x192x64xbf16, #tpu.memory_space<vmem>>, vector<1x192x64xbf16>
    %375 = vector.shape_cast %374 : vector<1x192x64xbf16> to vector<192x64xbf16>
    %cst_382 = arith.constant 0.000000e+00 : f32
    %376 = vector.broadcast %cst_382 : f32 to vector<1x64xf32>
    %c0_383 = arith.constant 0 : index
    %c0_384 = arith.constant 0 : index
    %377 = vector.load %arg10[%c0_383, %c0_384] : memref<20x64xf32, #tpu.memory_space<vmem>>, vector<1x64xf32>
    tpu.vector_store %arg10[%c0_383, %c0_384], %376 {strides = array<i32>} : memref<20x64xf32, #tpu.memory_space<vmem>>, vector<1x64xf32>,
    %cst_385 = arith.constant 0.000000e+00 : f32
    %378 = vector.broadcast %cst_385 : f32 to vector<1x64xf32>
    %c3_386 = arith.constant 3 : index
    %c0_387 = arith.constant 0 : index
    %379 = vector.load %arg10[%c3_386, %c0_387] : memref<20x64xf32, #tpu.memory_space<vmem>>, vector<1x64xf32>
    tpu.vector_store %arg10[%c3_386, %c0_387], %378 {strides = array<i32>} : memref<20x64xf32, #tpu.memory_space<vmem>>, vector<1x64xf32>,
    %380 = vector.extract_strided_slice %373 {offsets = [0, 0], sizes = [2, 64], strides = [1, 1]} : vector<4x64xf32> to vector<2x64xf32>
    %c1_388 = arith.constant 1 : index
    %c0_389 = arith.constant 0 : index
    %381 = vector.load %arg10[%c1_388, %c0_389] : memref<20x64xf32, #tpu.memory_space<vmem>>, vector<2x64xf32>
    tpu.vector_store %arg10[%c1_388, %c0_389], %380 {strides = array<i32>} : memref<20x64xf32, #tpu.memory_space<vmem>>, vector<2x64xf32>,
    %cst_390 = arith.constant 0.000000e+00 : f32
    %382 = vector.broadcast %cst_390 : f32 to vector<1x64xf32>
    %c10_391 = arith.constant 10 : index
    %c0_392 = arith.constant 0 : index
    %383 = vector.load %arg10[%c10_391, %c0_392] : memref<20x64xf32, #tpu.memory_space<vmem>>, vector<1x64xf32>
    tpu.vector_store %arg10[%c10_391, %c0_392], %382 {strides = array<i32>} : memref<20x64xf32, #tpu.memory_space<vmem>>, vector<1x64xf32>,
    %cst_393 = arith.constant 0.000000e+00 : f32
    %384 = vector.broadcast %cst_393 : f32 to vector<1x64xf32>
    %c13_394 = arith.constant 13 : index
    %c0_395 = arith.constant 0 : index
    %385 = vector.load %arg10[%c13_394, %c0_395] : memref<20x64xf32, #tpu.memory_space<vmem>>, vector<1x64xf32>
    tpu.vector_store %arg10[%c13_394, %c0_395], %384 {strides = array<i32>} : memref<20x64xf32, #tpu.memory_space<vmem>>, vector<1x64xf32>,
    %386 = vector.extract_strided_slice %373 {offsets = [2, 0], sizes = [2, 64], strides = [1, 1]} : vector<4x64xf32> to vector<2x64xf32>
    %c11_396 = arith.constant 11 : index
    %c0_397 = arith.constant 0 : index
    %387 = vector.load %arg10[%c11_396, %c0_397] : memref<20x64xf32, #tpu.memory_space<vmem>>, vector<2x64xf32>
    tpu.vector_store %arg10[%c11_396, %c0_397], %386 {strides = array<i32>} : memref<20x64xf32, #tpu.memory_space<vmem>>, vector<2x64xf32>,
    %c0_398 = arith.constant 0 : index
    %c0_399 = arith.constant 0 : index
    %388 = tpu.strided_load %arg10[%c0_398, %c0_399] {strides = array<i32: 2, 1>} : memref<20x64xf32, #tpu.memory_space<vmem>>, vector<1x64xf32>
    %c10_400 = arith.constant 10 : index
    %c0_401 = arith.constant 0 : index
    %389 = tpu.strided_load %arg10[%c10_400, %c0_401] {strides = array<i32: 2, 1>} : memref<20x64xf32, #tpu.memory_space<vmem>>, vector<1x64xf32>
    %390 = tpu.concatenate %388, %389 in 0 : vector<1x64xf32>, vector<1x64xf32> -> vector<2x64xf32>
    %c1_402 = arith.constant 1 : index
    %c0_403 = arith.constant 0 : index
    %391 = tpu.strided_load %arg10[%c1_402, %c0_403] {strides = array<i32: 2, 1>} : memref<20x64xf32, #tpu.memory_space<vmem>>, vector<1x64xf32>
    %c11_404 = arith.constant 11 : index
    %c0_405 = arith.constant 0 : index
    %392 = tpu.strided_load %arg10[%c11_404, %c0_405] {strides = array<i32: 2, 1>} : memref<20x64xf32, #tpu.memory_space<vmem>>, vector<1x64xf32>
    %393 = tpu.concatenate %391, %392 in 0 : vector<1x64xf32>, vector<1x64xf32> -> vector<2x64xf32>
    %c2_406 = arith.constant 2 : index
    %c0_407 = arith.constant 0 : index
    %394 = tpu.strided_load %arg10[%c2_406, %c0_407] {strides = array<i32: 2, 1>} : memref<20x64xf32, #tpu.memory_space<vmem>>, vector<1x64xf32>
    %c12_408 = arith.constant 12 : index
    %c0_409 = arith.constant 0 : index
    %395 = tpu.strided_load %arg10[%c12_408, %c0_409] {strides = array<i32: 2, 1>} : memref<20x64xf32, #tpu.memory_space<vmem>>, vector<1x64xf32>
    %396 = tpu.concatenate %394, %395 in 0 : vector<1x64xf32>, vector<1x64xf32> -> vector<2x64xf32>
    %397 = tpu.concatenate %390, %393, %396 in 1 : vector<2x64xf32>, vector<2x64xf32>, vector<2x64xf32> -> vector<2x192xf32>
    %398 = arith.truncf %397 : vector<2x192xf32> to vector<2x192xbf16>
    %cst_410 = arith.constant dense<0.000000e+00> : vector<2x64xf32>
    %399 = tpu.matmul %398, %375, %cst_410 {dimension_numbers = #tpu.dot_dimension_numbers<[1], [0], [0], [1], [0, 0, 1, 1], [], []>} : vector<2x192xbf16>, vector<192x64xbf16>, vector<2x64xf32> -> vector<2x64xf32>
    %c19_411 = arith.constant 19 : index
    %c0_412 = arith.constant 0 : index
    %400 = vector.load %arg5[%c19_411, %c0_412] : memref<28x64xf32, #tpu.memory_space<vmem>>, vector<1x64xf32>
    %401 = vector.broadcast %400 : vector<1x64xf32> to vector<2x64xf32>
    %402 = arith.mulf %399, %401 : vector<2x64xf32>
    %c20 = arith.constant 20 : index
    %c0_413 = arith.constant 0 : index
    %403 = vector.load %arg5[%c20, %c0_413] : memref<28x64xf32, #tpu.memory_space<vmem>>, vector<1x64xf32>
    %404 = vector.broadcast %403 : vector<1x64xf32> to vector<2x64xf32>
    %405 = arith.addf %402, %404 : vector<2x64xf32>
    %cst_414 = arith.constant 0.000000e+00 : f32
    %406 = vector.broadcast %cst_414 : f32 to vector<2x64xf32>
    %407 = arith.maximumf %405, %406 : vector<2x64xf32>
    %c9_415 = arith.constant 9 : index
    %c0_416 = arith.constant 0 : index
    %c0_417 = arith.constant 0 : index
    %408 = vector.load %arg3[%c9_415, %c0_416, %c0_417] : memref<12x192x64xbf16, #tpu.memory_space<vmem>>, vector<1x192x64xbf16>
    %409 = vector.shape_cast %408 : vector<1x192x64xbf16> to vector<192x64xbf16>
    %cst_418 = arith.constant 0.000000e+00 : f32
    %410 = vector.broadcast %cst_418 : f32 to vector<1x64xf32>
    %c0_419 = arith.constant 0 : index
    %c0_420 = arith.constant 0 : index
    %411 = vector.load %arg10[%c0_419, %c0_420] : memref<20x64xf32, #tpu.memory_space<vmem>>, vector<1x64xf32>
    tpu.vector_store %arg10[%c0_419, %c0_420], %410 {strides = array<i32>} : memref<20x64xf32, #tpu.memory_space<vmem>>, vector<1x64xf32>,
    %cst_421 = arith.constant 0.000000e+00 : f32
    %412 = vector.broadcast %cst_421 : f32 to vector<1x64xf32>
    %c2_422 = arith.constant 2 : index
    %c0_423 = arith.constant 0 : index
    %413 = vector.load %arg10[%c2_422, %c0_423] : memref<20x64xf32, #tpu.memory_space<vmem>>, vector<1x64xf32>
    tpu.vector_store %arg10[%c2_422, %c0_423], %412 {strides = array<i32>} : memref<20x64xf32, #tpu.memory_space<vmem>>, vector<1x64xf32>,
    %414 = vector.extract_strided_slice %407 {offsets = [0, 0], sizes = [1, 64], strides = [1, 1]} : vector<2x64xf32> to vector<1x64xf32>
    %c1_424 = arith.constant 1 : index
    %c0_425 = arith.constant 0 : index
    %415 = vector.load %arg10[%c1_424, %c0_425] : memref<20x64xf32, #tpu.memory_space<vmem>>, vector<1x64xf32>
    tpu.vector_store %arg10[%c1_424, %c0_425], %414 {strides = array<i32>} : memref<20x64xf32, #tpu.memory_space<vmem>>, vector<1x64xf32>,
    %cst_426 = arith.constant 0.000000e+00 : f32
    %416 = vector.broadcast %cst_426 : f32 to vector<1x64xf32>
    %c10_427 = arith.constant 10 : index
    %c0_428 = arith.constant 0 : index
    %417 = vector.load %arg10[%c10_427, %c0_428] : memref<20x64xf32, #tpu.memory_space<vmem>>, vector<1x64xf32>
    tpu.vector_store %arg10[%c10_427, %c0_428], %416 {strides = array<i32>} : memref<20x64xf32, #tpu.memory_space<vmem>>, vector<1x64xf32>,
    %cst_429 = arith.constant 0.000000e+00 : f32
    %418 = vector.broadcast %cst_429 : f32 to vector<1x64xf32>
    %c12_430 = arith.constant 12 : index
    %c0_431 = arith.constant 0 : index
    %419 = vector.load %arg10[%c12_430, %c0_431] : memref<20x64xf32, #tpu.memory_space<vmem>>, vector<1x64xf32>
    tpu.vector_store %arg10[%c12_430, %c0_431], %418 {strides = array<i32>} : memref<20x64xf32, #tpu.memory_space<vmem>>, vector<1x64xf32>,
    %420 = vector.extract_strided_slice %407 {offsets = [1, 0], sizes = [1, 64], strides = [1, 1]} : vector<2x64xf32> to vector<1x64xf32>
    %c11_432 = arith.constant 11 : index
    %c0_433 = arith.constant 0 : index
    %421 = vector.load %arg10[%c11_432, %c0_433] : memref<20x64xf32, #tpu.memory_space<vmem>>, vector<1x64xf32>
    tpu.vector_store %arg10[%c11_432, %c0_433], %420 {strides = array<i32>} : memref<20x64xf32, #tpu.memory_space<vmem>>, vector<1x64xf32>,
    %c0_434 = arith.constant 0 : index
    %c0_435 = arith.constant 0 : index
    %422 = vector.load %arg10[%c0_434, %c0_435] : memref<20x64xf32, #tpu.memory_space<vmem>>, vector<1x64xf32>
    %c10_436 = arith.constant 10 : index
    %c0_437 = arith.constant 0 : index
    %423 = vector.load %arg10[%c10_436, %c0_437] : memref<20x64xf32, #tpu.memory_space<vmem>>, vector<1x64xf32>
    %424 = tpu.concatenate %422, %423 in 0 : vector<1x64xf32>, vector<1x64xf32> -> vector<2x64xf32>
    %c2_438 = arith.constant 2 : index
    %c0_439 = arith.constant 0 : index
    %425 = vector.load %arg10[%c2_438, %c0_439] : memref<20x64xf32, #tpu.memory_space<vmem>>, vector<1x64xf32>
    %c12_440 = arith.constant 12 : index
    %c0_441 = arith.constant 0 : index
    %426 = vector.load %arg10[%c12_440, %c0_441] : memref<20x64xf32, #tpu.memory_space<vmem>>, vector<1x64xf32>
    %427 = tpu.concatenate %425, %426 in 0 : vector<1x64xf32>, vector<1x64xf32> -> vector<2x64xf32>
    %428 = tpu.concatenate %424, %407, %427 in 1 : vector<2x64xf32>, vector<2x64xf32>, vector<2x64xf32> -> vector<2x192xf32>
    %429 = arith.truncf %428 : vector<2x192xf32> to vector<2x192xbf16>
    %cst_442 = arith.constant dense<0.000000e+00> : vector<2x64xf32>
    %430 = tpu.matmul %429, %409, %cst_442 {dimension_numbers = #tpu.dot_dimension_numbers<[1], [0], [0], [1], [0, 0, 1, 1], [], []>} : vector<2x192xbf16>, vector<192x64xbf16>, vector<2x64xf32> -> vector<2x64xf32>
    %431 = arith.addf %430, %365 : vector<2x64xf32>
    %c21 = arith.constant 21 : index
    %c0_443 = arith.constant 0 : index
    %432 = vector.load %arg5[%c21, %c0_443] : memref<28x64xf32, #tpu.memory_space<vmem>>, vector<1x64xf32>
    %433 = vector.broadcast %432 : vector<1x64xf32> to vector<2x64xf32>
    %434 = arith.mulf %431, %433 : vector<2x64xf32>
    %c22 = arith.constant 22 : index
    %c0_444 = arith.constant 0 : index
    %435 = vector.load %arg5[%c22, %c0_444] : memref<28x64xf32, #tpu.memory_space<vmem>>, vector<1x64xf32>
    %436 = vector.broadcast %435 : vector<1x64xf32> to vector<2x64xf32>
    %437 = arith.addf %434, %436 : vector<2x64xf32>
    %cst_445 = arith.constant 0.000000e+00 : f32
    %438 = vector.broadcast %cst_445 : f32 to vector<2x64xf32>
    %439 = arith.maximumf %437, %438 : vector<2x64xf32>
    %c10_446 = arith.constant 10 : index
    %c0_447 = arith.constant 0 : index
    %c0_448 = arith.constant 0 : index
    %440 = vector.load %arg3[%c10_446, %c0_447, %c0_448] : memref<12x192x64xbf16, #tpu.memory_space<vmem>>, vector<1x192x64xbf16>
    %441 = vector.shape_cast %440 : vector<1x192x64xbf16> to vector<192x64xbf16>
    %cst_449 = arith.constant 0.000000e+00 : f32
    %442 = vector.broadcast %cst_449 : f32 to vector<1x64xf32>
    %c0_450 = arith.constant 0 : index
    %c0_451 = arith.constant 0 : index
    %443 = vector.load %arg10[%c0_450, %c0_451] : memref<20x64xf32, #tpu.memory_space<vmem>>, vector<1x64xf32>
    tpu.vector_store %arg10[%c0_450, %c0_451], %442 {strides = array<i32>} : memref<20x64xf32, #tpu.memory_space<vmem>>, vector<1x64xf32>,
    %cst_452 = arith.constant 0.000000e+00 : f32
    %444 = vector.broadcast %cst_452 : f32 to vector<1x64xf32>
    %c2_453 = arith.constant 2 : index
    %c0_454 = arith.constant 0 : index
    %445 = vector.load %arg10[%c2_453, %c0_454] : memref<20x64xf32, #tpu.memory_space<vmem>>, vector<1x64xf32>
    tpu.vector_store %arg10[%c2_453, %c0_454], %444 {strides = array<i32>} : memref<20x64xf32, #tpu.memory_space<vmem>>, vector<1x64xf32>,
    %446 = vector.extract_strided_slice %439 {offsets = [0, 0], sizes = [1, 64], strides = [1, 1]} : vector<2x64xf32> to vector<1x64xf32>
    %c1_455 = arith.constant 1 : index
    %c0_456 = arith.constant 0 : index
    %447 = vector.load %arg10[%c1_455, %c0_456] : memref<20x64xf32, #tpu.memory_space<vmem>>, vector<1x64xf32>
    tpu.vector_store %arg10[%c1_455, %c0_456], %446 {strides = array<i32>} : memref<20x64xf32, #tpu.memory_space<vmem>>, vector<1x64xf32>,
    %cst_457 = arith.constant 0.000000e+00 : f32
    %448 = vector.broadcast %cst_457 : f32 to vector<1x64xf32>
    %c10_458 = arith.constant 10 : index
    %c0_459 = arith.constant 0 : index
    %449 = vector.load %arg10[%c10_458, %c0_459] : memref<20x64xf32, #tpu.memory_space<vmem>>, vector<1x64xf32>
    tpu.vector_store %arg10[%c10_458, %c0_459], %448 {strides = array<i32>} : memref<20x64xf32, #tpu.memory_space<vmem>>, vector<1x64xf32>,
    %cst_460 = arith.constant 0.000000e+00 : f32
    %450 = vector.broadcast %cst_460 : f32 to vector<1x64xf32>
    %c12_461 = arith.constant 12 : index
    %c0_462 = arith.constant 0 : index
    %451 = vector.load %arg10[%c12_461, %c0_462] : memref<20x64xf32, #tpu.memory_space<vmem>>, vector<1x64xf32>
    tpu.vector_store %arg10[%c12_461, %c0_462], %450 {strides = array<i32>} : memref<20x64xf32, #tpu.memory_space<vmem>>, vector<1x64xf32>,
    %452 = vector.extract_strided_slice %439 {offsets = [1, 0], sizes = [1, 64], strides = [1, 1]} : vector<2x64xf32> to vector<1x64xf32>
    %c11_463 = arith.constant 11 : index
    %c0_464 = arith.constant 0 : index
    %453 = vector.load %arg10[%c11_463, %c0_464] : memref<20x64xf32, #tpu.memory_space<vmem>>, vector<1x64xf32>
    tpu.vector_store %arg10[%c11_463, %c0_464], %452 {strides = array<i32>} : memref<20x64xf32, #tpu.memory_space<vmem>>, vector<1x64xf32>,
    %c0_465 = arith.constant 0 : index
    %c0_466 = arith.constant 0 : index
    %454 = vector.load %arg10[%c0_465, %c0_466] : memref<20x64xf32, #tpu.memory_space<vmem>>, vector<1x64xf32>
    %c10_467 = arith.constant 10 : index
    %c0_468 = arith.constant 0 : index
    %455 = vector.load %arg10[%c10_467, %c0_468] : memref<20x64xf32, #tpu.memory_space<vmem>>, vector<1x64xf32>
    %456 = tpu.concatenate %454, %455 in 0 : vector<1x64xf32>, vector<1x64xf32> -> vector<2x64xf32>
    %c2_469 = arith.constant 2 : index
    %c0_470 = arith.constant 0 : index
    %457 = vector.load %arg10[%c2_469, %c0_470] : memref<20x64xf32, #tpu.memory_space<vmem>>, vector<1x64xf32>
    %c12_471 = arith.constant 12 : index
    %c0_472 = arith.constant 0 : index
    %458 = vector.load %arg10[%c12_471, %c0_472] : memref<20x64xf32, #tpu.memory_space<vmem>>, vector<1x64xf32>
    %459 = tpu.concatenate %457, %458 in 0 : vector<1x64xf32>, vector<1x64xf32> -> vector<2x64xf32>
    %460 = tpu.concatenate %456, %439, %459 in 1 : vector<2x64xf32>, vector<2x64xf32>, vector<2x64xf32> -> vector<2x192xf32>
    %461 = arith.truncf %460 : vector<2x192xf32> to vector<2x192xbf16>
    %cst_473 = arith.constant dense<0.000000e+00> : vector<2x64xf32>
    %462 = tpu.matmul %461, %441, %cst_473 {dimension_numbers = #tpu.dot_dimension_numbers<[1], [0], [0], [1], [0, 0, 1, 1], [], []>} : vector<2x192xbf16>, vector<192x64xbf16>, vector<2x64xf32> -> vector<2x64xf32>
    %c23 = arith.constant 23 : index
    %c0_474 = arith.constant 0 : index
    %463 = vector.load %arg5[%c23, %c0_474] : memref<28x64xf32, #tpu.memory_space<vmem>>, vector<1x64xf32>
    %464 = vector.broadcast %463 : vector<1x64xf32> to vector<2x64xf32>
    %465 = arith.mulf %462, %464 : vector<2x64xf32>
    %c24 = arith.constant 24 : index
    %c0_475 = arith.constant 0 : index
    %466 = vector.load %arg5[%c24, %c0_475] : memref<28x64xf32, #tpu.memory_space<vmem>>, vector<1x64xf32>
    %467 = vector.broadcast %466 : vector<1x64xf32> to vector<2x64xf32>
    %468 = arith.addf %465, %467 : vector<2x64xf32>
    %cst_476 = arith.constant 0.000000e+00 : f32
    %469 = vector.broadcast %cst_476 : f32 to vector<2x64xf32>
    %470 = arith.maximumf %468, %469 : vector<2x64xf32>
    %c11_477 = arith.constant 11 : index
    %c0_478 = arith.constant 0 : index
    %c0_479 = arith.constant 0 : index
    %471 = vector.load %arg3[%c11_477, %c0_478, %c0_479] : memref<12x192x64xbf16, #tpu.memory_space<vmem>>, vector<1x192x64xbf16>
    %472 = vector.shape_cast %471 : vector<1x192x64xbf16> to vector<192x64xbf16>
    %cst_480 = arith.constant 0.000000e+00 : f32
    %473 = vector.broadcast %cst_480 : f32 to vector<1x64xf32>
    %c0_481 = arith.constant 0 : index
    %c0_482 = arith.constant 0 : index
    %474 = vector.load %arg10[%c0_481, %c0_482] : memref<20x64xf32, #tpu.memory_space<vmem>>, vector<1x64xf32>
    tpu.vector_store %arg10[%c0_481, %c0_482], %473 {strides = array<i32>} : memref<20x64xf32, #tpu.memory_space<vmem>>, vector<1x64xf32>,
    %cst_483 = arith.constant 0.000000e+00 : f32
    %475 = vector.broadcast %cst_483 : f32 to vector<1x64xf32>
    %c2_484 = arith.constant 2 : index
    %c0_485 = arith.constant 0 : index
    %476 = vector.load %arg10[%c2_484, %c0_485] : memref<20x64xf32, #tpu.memory_space<vmem>>, vector<1x64xf32>
    tpu.vector_store %arg10[%c2_484, %c0_485], %475 {strides = array<i32>} : memref<20x64xf32, #tpu.memory_space<vmem>>, vector<1x64xf32>,
    %477 = vector.extract_strided_slice %470 {offsets = [0, 0], sizes = [1, 64], strides = [1, 1]} : vector<2x64xf32> to vector<1x64xf32>
    %c1_486 = arith.constant 1 : index
    %c0_487 = arith.constant 0 : index
    %478 = vector.load %arg10[%c1_486, %c0_487] : memref<20x64xf32, #tpu.memory_space<vmem>>, vector<1x64xf32>
    tpu.vector_store %arg10[%c1_486, %c0_487], %477 {strides = array<i32>} : memref<20x64xf32, #tpu.memory_space<vmem>>, vector<1x64xf32>,
    %cst_488 = arith.constant 0.000000e+00 : f32
    %479 = vector.broadcast %cst_488 : f32 to vector<1x64xf32>
    %c10_489 = arith.constant 10 : index
    %c0_490 = arith.constant 0 : index
    %480 = vector.load %arg10[%c10_489, %c0_490] : memref<20x64xf32, #tpu.memory_space<vmem>>, vector<1x64xf32>
    tpu.vector_store %arg10[%c10_489, %c0_490], %479 {strides = array<i32>} : memref<20x64xf32, #tpu.memory_space<vmem>>, vector<1x64xf32>,
    %cst_491 = arith.constant 0.000000e+00 : f32
    %481 = vector.broadcast %cst_491 : f32 to vector<1x64xf32>
    %c12_492 = arith.constant 12 : index
    %c0_493 = arith.constant 0 : index
    %482 = vector.load %arg10[%c12_492, %c0_493] : memref<20x64xf32, #tpu.memory_space<vmem>>, vector<1x64xf32>
    tpu.vector_store %arg10[%c12_492, %c0_493], %481 {strides = array<i32>} : memref<20x64xf32, #tpu.memory_space<vmem>>, vector<1x64xf32>,
    %483 = vector.extract_strided_slice %470 {offsets = [1, 0], sizes = [1, 64], strides = [1, 1]} : vector<2x64xf32> to vector<1x64xf32>
    %c11_494 = arith.constant 11 : index
    %c0_495 = arith.constant 0 : index
    %484 = vector.load %arg10[%c11_494, %c0_495] : memref<20x64xf32, #tpu.memory_space<vmem>>, vector<1x64xf32>
    tpu.vector_store %arg10[%c11_494, %c0_495], %483 {strides = array<i32>} : memref<20x64xf32, #tpu.memory_space<vmem>>, vector<1x64xf32>,
    %c0_496 = arith.constant 0 : index
    %c0_497 = arith.constant 0 : index
    %485 = vector.load %arg10[%c0_496, %c0_497] : memref<20x64xf32, #tpu.memory_space<vmem>>, vector<1x64xf32>
    %c10_498 = arith.constant 10 : index
    %c0_499 = arith.constant 0 : index
    %486 = vector.load %arg10[%c10_498, %c0_499] : memref<20x64xf32, #tpu.memory_space<vmem>>, vector<1x64xf32>
    %487 = tpu.concatenate %485, %486 in 0 : vector<1x64xf32>, vector<1x64xf32> -> vector<2x64xf32>
    %c2_500 = arith.constant 2 : index
    %c0_501 = arith.constant 0 : index
    %488 = vector.load %arg10[%c2_500, %c0_501] : memref<20x64xf32, #tpu.memory_space<vmem>>, vector<1x64xf32>
    %c12_502 = arith.constant 12 : index
    %c0_503 = arith.constant 0 : index
    %489 = vector.load %arg10[%c12_502, %c0_503] : memref<20x64xf32, #tpu.memory_space<vmem>>, vector<1x64xf32>
    %490 = tpu.concatenate %488, %489 in 0 : vector<1x64xf32>, vector<1x64xf32> -> vector<2x64xf32>
    %491 = tpu.concatenate %487, %470, %490 in 1 : vector<2x64xf32>, vector<2x64xf32>, vector<2x64xf32> -> vector<2x192xf32>
    %492 = arith.truncf %491 : vector<2x192xf32> to vector<2x192xbf16>
    %cst_504 = arith.constant dense<0.000000e+00> : vector<2x64xf32>
    %493 = tpu.matmul %492, %472, %cst_504 {dimension_numbers = #tpu.dot_dimension_numbers<[1], [0], [0], [1], [0, 0, 1, 1], [], []>} : vector<2x192xbf16>, vector<192x64xbf16>, vector<2x64xf32> -> vector<2x64xf32>
    %494 = arith.addf %493, %431 : vector<2x64xf32>
    %495 = vector.extract_strided_slice %494 {offsets = [0, 0], sizes = [1, 64], strides = [1, 1]} : vector<2x64xf32> to vector<1x64xf32>
    %cst_505 = arith.constant dense<0.000000e+00> : vector<64xf32>
    %496 = vector.multi_reduction <add>, %495, %cst_505 [0] : vector<1x64xf32> to vector<64xf32>
    %497 = vector.shape_cast %496 : vector<64xf32> to vector<1x64xf32>
    %cst_506 = arith.constant 1.000000e+00 : f32
    %498 = vector.broadcast %cst_506 : f32 to vector<1x64xf32>
    %499 = arith.divf %497, %498 : vector<1x64xf32>
    %500 = vector.extract_strided_slice %494 {offsets = [1, 0], sizes = [1, 64], strides = [1, 1]} : vector<2x64xf32> to vector<1x64xf32>
    %cst_507 = arith.constant dense<0.000000e+00> : vector<64xf32>
    %501 = vector.multi_reduction <add>, %500, %cst_507 [0] : vector<1x64xf32> to vector<64xf32>
    %502 = vector.shape_cast %501 : vector<64xf32> to vector<1x64xf32>
    %cst_508 = arith.constant 1.000000e+00 : f32
    %503 = vector.broadcast %cst_508 : f32 to vector<1x64xf32>
    %504 = arith.divf %502, %503 : vector<1x64xf32>
    %505 = tpu.concatenate %499, %504 in 0 : vector<1x64xf32>, vector<1x64xf32> -> vector<2x64xf32>
    %c0_509 = arith.constant 0 : index
    %c0_510 = arith.constant 0 : index
    %506 = vector.load %arg6[%c0_509, %c0_510] : memref<64x128xf32, #tpu.memory_space<vmem>>, vector<64x128xf32>
    %cst_511 = arith.constant dense<0.000000e+00> : vector<2x128xf32>
    %507 = tpu.matmul %505, %506, %cst_511 {dimension_numbers = #tpu.dot_dimension_numbers<[1], [0], [0], [1], [0, 0, 1, 1], [], []>} : vector<2x64xf32>, vector<64x128xf32>, vector<2x128xf32> -> vector<2x128xf32>
    %c0_512 = arith.constant 0 : index
    %c0_513 = arith.constant 0 : index
    %508 = vector.load %arg7[%c0_512, %c0_513] : memref<1x128xf32, #tpu.memory_space<vmem>>, vector<1x128xf32>
    %509 = vector.broadcast %508 : vector<1x128xf32> to vector<2x128xf32>
    %510 = arith.addf %507, %509 : vector<2x128xf32>
    %511 = vector.extract_strided_slice %510 {offsets = [0, 0], sizes = [1, 128], strides = [1, 1]} : vector<2x128xf32> to vector<1x128xf32>
    %512 = vector.shape_cast %511 : vector<1x128xf32> to vector<1x1x128xf32>
    %c0_514 = arith.constant 0 : index
    %c0_515 = arith.constant 0 : index
    %c0_516 = arith.constant 0 : index
    %513 = vector.load %arg8[%c0_514, %c0_515, %c0_516] : memref<2x1x128xf32, #tpu.memory_space<vmem>>, vector<1x1x128xf32>
    tpu.vector_store %arg8[%c0_514, %c0_515, %c0_516], %512 {strides = array<i32>} : memref<2x1x128xf32, #tpu.memory_space<vmem>>, vector<1x1x128xf32>,
    %514 = vector.extract_strided_slice %510 {offsets = [1, 0], sizes = [1, 128], strides = [1, 1]} : vector<2x128xf32> to vector<1x128xf32>
    %515 = vector.shape_cast %514 : vector<1x128xf32> to vector<1x1x128xf32>
    %c1_517 = arith.constant 1 : index
    %c0_518 = arith.constant 0 : index
    %c0_519 = arith.constant 0 : index
    %516 = vector.load %arg8[%c1_517, %c0_518, %c0_519] : memref<2x1x128xf32, #tpu.memory_space<vmem>>, vector<1x1x128xf32>
    tpu.vector_store %arg8[%c1_517, %c0_518, %c0_519], %515 {strides = array<i32>} : memref<2x1x128xf32, #tpu.memory_space<vmem>>, vector<1x1x128xf32>,
    return
  }
  func.func @transform_0(%arg0: i32) -> (i32, i32, i32) {
    %c0_i32 = arith.constant 0 : i32
    %c0_i32_0 = arith.constant 0 : i32
    %c0_i32_1 = arith.constant 0 : i32
    return %arg0, %c0_i32, %c0_i32_0 : i32, i32, i32
  }
  func.func @transform_1(%arg0: i32) -> (i32, i32, i32) {
    %c0_i32 = arith.constant 0 : i32
    %c0_i32_0 = arith.constant 0 : i32
    %c0_i32_1 = arith.constant 0 : i32
    %c0_i32_2 = arith.constant 0 : i32
    return %c0_i32, %c0_i32_0, %c0_i32_1 : i32, i32, i32
  }
  func.func @transform_2(%arg0: i32) -> (i32, i32, i32) {
    %c0_i32 = arith.constant 0 : i32
    %c0_i32_0 = arith.constant 0 : i32
    %c0_i32_1 = arith.constant 0 : i32
    %c0_i32_2 = arith.constant 0 : i32
    return %c0_i32, %c0_i32_0, %c0_i32_1 : i32, i32, i32
  }
  func.func @transform_3(%arg0: i32) -> (i32, i32, i32) {
    %c0_i32 = arith.constant 0 : i32
    %c0_i32_0 = arith.constant 0 : i32
    %c0_i32_1 = arith.constant 0 : i32
    %c0_i32_2 = arith.constant 0 : i32
    return %c0_i32, %c0_i32_0, %c0_i32_1 : i32, i32, i32
  }
  func.func @transform_4(%arg0: i32) -> (i32, i32) {
    %c0_i32 = arith.constant 0 : i32
    %c0_i32_0 = arith.constant 0 : i32
    %c0_i32_1 = arith.constant 0 : i32
    return %c0_i32, %c0_i32_0 : i32, i32
  }
  func.func @transform_5(%arg0: i32) -> (i32, i32) {
    %c0_i32 = arith.constant 0 : i32
    %c0_i32_0 = arith.constant 0 : i32
    %c0_i32_1 = arith.constant 0 : i32
    return %c0_i32, %c0_i32_0 : i32, i32
  }
  func.func @transform_6(%arg0: i32) -> (i32, i32) {
    %c0_i32 = arith.constant 0 : i32
    %c0_i32_0 = arith.constant 0 : i32
    %c0_i32_1 = arith.constant 0 : i32
    return %c0_i32, %c0_i32_0 : i32, i32
  }
  func.func @transform_7(%arg0: i32) -> (i32, i32, i32) {
    %c0_i32 = arith.constant 0 : i32
    %c0_i32_0 = arith.constant 0 : i32
    %c0_i32_1 = arith.constant 0 : i32
    return %arg0, %c0_i32, %c0_i32_0 : i32, i32, i32
  }
}

</mosaic_0001>

<llo_original>
// kernel: rnafm_for_reg_forward.1
$region0: #{rnafm_for_reg_forward.1}
  #allocation0 [shape = 'u32[]', space=smem, size = 0x4, offset = 0x4, fixed_abs, tag = 'smem constant byte address 0x4 - core index']
  #allocation1 [shape = 'u32[144,128]{1,0:T(1,128)}', space=vmem, size = 0x12000, scoped, tag = 'internal scratch']
  #allocation2 [shape = 'f32[20,640]{1,0:T(8,128)}', space=vmem, size = 0xf000, scoped, tag = 'scratch operand']
  #allocation3 [shape = 'f32[20,64]{1,0:T(8,128)}', space=vmem, size = 0x3000, scoped, tag = 'scratch operand']
  %s0 = inlined_call_operand.vmem [shape: bf16[2,8,640], index: 0, kind: input, shape index: {}]
  %s1 = inlined_call_operand.hbm [shape: bf16[3,640,64], index: 1, kind: input, shape index: {}]
  %s2 = inlined_call_operand.hbm [shape: bf16[12,192,64], index: 2, kind: input, shape index: {}]
  %s3 = inlined_call_operand.vmem [shape: bf16[3,64,64], index: 3, kind: input, shape index: {}]
  %s4 = inlined_call_operand.vmem [shape: f32[28,64], index: 4, kind: input, shape index: {}]
  %s5 = inlined_call_operand.vmem [shape: f32[64,128], index: 5, kind: input, shape index: {}]
  %s6 = inlined_call_operand.vmem [shape: f32[1,128], index: 6, kind: input, shape index: {}]
  %s7 = inlined_call_operand.vmem [shape: f32[2,1,128], index: 7, kind: output, shape index: {}]
  %s8 = sld [smem:[#allocation0]]
  $region46: #{rnafm_for_reg_forward.1} parent=0
    _
  %s10 = ssub.s32 1, %s8
  %s11 = scalar_select 0, %s10, %s8
  $region1: #{rnafm_for_reg_forward.1} parent=0
    #allocation4 [shape = 'u8[491520]{0}', space=vmem, size = 0x78000, scoped, tag = 'input window, operand 1, single buffered']
    #allocation5 [shape = 's32[1]{0}', space=sflag, size = 0x4, scoped, tag = 'scoped memory for rnafm_for_reg_forward.1']
    #allocation6 [shape = 'u8[589824]{0}', space=vmem, size = 0x90000, scoped, tag = 'input window, operand 2, single buffered']
    #allocation7 [shape = 's32[1]{0}', space=sflag, size = 0x4, scoped, tag = 'scoped memory for rnafm_for_reg_forward.1']
    %12 = vsyncpa [#allocation5], 0
    %13 = vsyncpa [#allocation7], 0
    // Predicated region
    $region2: #{rnafm_for_reg_forward.1} parent=1 // pred_check
      _
    $region3: #{rnafm_for_reg_forward.1} parent=1 // pred_check_branch
      %15 = sbr.rel (0) target = $region5
    $region4: #{rnafm_for_reg_forward.1} parent=1 // pred_region
      _
    $region5: #{rnafm_for_reg_forward.1} parent=1 // pred_fallthru
      _
    // Predicated region
    $region6: #{rnafm_for_reg_forward.1} parent=1 // pred_check
      _
    $region7: #{rnafm_for_reg_forward.1} parent=1 // pred_check_branch
      %17 = sbr.rel (0) target = $region9
    $region8: #{rnafm_for_reg_forward.1} parent=1 // pred_region
      %s19 = ssub.s32 15360, 15360
      %20 = vsyncadd [#allocation5], %s19
      %s21 = sshll.u32 [#allocation4], 4
      %s22 = int_to_ptr.vmem [resolvable:$true] %s21
      %27 = dma.hbm_to_vmem [thread:$0]  %s1, 15360, %s22, [#allocation5], 64, 64, 4
    $region9: #{rnafm_for_reg_forward.1} parent=1 // pred_fallthru
      _
    // Predicated region
    $region10: #{rnafm_for_reg_forward.1} parent=1 // pred_check
      _
    $region11: #{rnafm_for_reg_forward.1} parent=1 // pred_check_branch
      %29 = sbr.rel (0) target = $region13
    $region12: #{rnafm_for_reg_forward.1} parent=1 // pred_region
      %s31 = ssub.s32 18432, 18432
      %32 = vsyncadd [#allocation7], %s31
      %s33 = sshll.u32 [#allocation6], 4
      %s34 = int_to_ptr.vmem [resolvable:$true] %s33
      %39 = dma.hbm_to_vmem [thread:$0]  %s2, 18432, %s34, [#allocation7], 64, 64, 4
    $region13: #{rnafm_for_reg_forward.1} parent=1 // pred_fallthru
      _
    // Predicated region
    $region14: #{rnafm_for_reg_forward.1} parent=1 // pred_check
      _
    $region15: #{rnafm_for_reg_forward.1} parent=1 // pred_check_branch
      %41 = sbr.rel (0) target = $region17
    $region16: #{rnafm_for_reg_forward.1} parent=1 // pred_region
      _
    $region17: #{rnafm_for_reg_forward.1} parent=1 // pred_fallthru
      _
    // Predicated region
    $region18: #{rnafm_for_reg_forward.1} parent=1 // pred_check
      _
    $region19: #{rnafm_for_reg_forward.1} parent=1 // pred_check_branch
      %43 = sbr.rel (0) target = $region21
    $region20: #{rnafm_for_reg_forward.1} parent=1 // pred_region
      _
    $region21: #{rnafm_for_reg_forward.1} parent=1 // pred_fallthru
      _
    // Predicated region
    $region22: #{rnafm_for_reg_forward.1} parent=1 // pred_check
      _
    $region23: #{rnafm_for_reg_forward.1} parent=1 // pred_check_branch
      %45 = sbr.rel (0) target = $region25
    $region24: #{rnafm_for_reg_forward.1} parent=1 // pred_region
      _
    $region25: #{rnafm_for_reg_forward.1} parent=1 // pred_fallthru
      _
    // Predicated region
    $region26: #{rnafm_for_reg_forward.1} parent=1 // pred_check
      _
    $region27: #{rnafm_for_reg_forward.1} parent=1 // pred_check_branch
      %47 = sbr.rel (0) target = $region29
    $region28: #{rnafm_for_reg_forward.1} parent=1 // pred_region
      _
    $region29: #{rnafm_for_reg_forward.1} parent=1 // pred_fallthru
      _
    // Predicated region
    $region30: #{rnafm_for_reg_forward.1} parent=1 // pred_check
      _
    $region31: #{rnafm_for_reg_forward.1} parent=1 // pred_check_branch
      %49 = sbr.rel (0) target = $region33
    $region32: #{rnafm_for_reg_forward.1} parent=1 // pred_region
      %50 = dma.done [#allocation5], 15360
    $region33: #{rnafm_for_reg_forward.1} parent=1 // pred_fallthru
      _
    // Predicated region
    $region34: #{rnafm_for_reg_forward.1} parent=1 // pred_check
      _
    $region35: #{rnafm_for_reg_forward.1} parent=1 // pred_check_branch
      %52 = sbr.rel (0) target = $region37
    $region36: #{rnafm_for_reg_forward.1} parent=1 // pred_region
      %53 = dma.done [#allocation7], 18432
    $region37: #{rnafm_for_reg_forward.1} parent=1 // pred_fallthru
      _
    %v55 = vlaneseq
    %vm56 = vcmp.ge.s32.totalorder %v55, 0
    %vm57 = vcmp.lt.s32.totalorder %v55, 640
    %vm58 = vmand %vm56, %vm57
    %59 = vst.msk [vmem:[#allocation2] ss:$8 sm:$0xf] %vm58, 0.0
    %60 = vst.msk [vmem:[#allocation2] ss:$8 sm:$0x10] %vm58, 0.0
    %s61 = scalar_lea.vmem [#allocation2], 41
    %62 = vst.msk [vmem:[%s61] ss:$8 sm:$0xf] %vm58, 0.0
    %63 = vst.msk [vmem:[%s61] ss:$8 sm:$0x10] %vm58, 0.0
    %v64 = vld [vmem:[%s0] sm:$0xff]
    %v65 = vld [vmem:[%s0 + $0x8] sm:$0xff]
    %v66 = vld [vmem:[%s0 + $0x10] sm:$0xf]
    %v67 = vunpack.c.l.bf16 %v64
    %v68 = vunpack.c.h.bf16 %v64
    %v69 = vunpack.c.l.bf16 %v65
    %v70 = vunpack.c.h.bf16 %v65
    %v71 = vunpack.c.l.bf16 %v66
    %v77 = vrot.slane %v67, 7
    %v78 = vrot.slane %v68, 7
    %v79 = vrot.slane %v69, 7
    %v80 = vrot.slane %v70, 7
    %v81 = vrot.slane %v71, 7
    %87 = vst [vmem:[#allocation2] sm:$0xfe] %v77
    %88 = vst [vmem:[#allocation2 + $0x8] sm:$0xfe] %v78
    %89 = vst [vmem:[#allocation2 + $0x10] sm:$0xfe] %v79
    %90 = vst [vmem:[#allocation2 + $0x18] sm:$0xfe] %v80
    %91 = vst [vmem:[#allocation2 + $0x20] sm:$0xfe] %v81
    %92 = vst [vmem:[#allocation2 + $0x28] sm:$0x1] %v77
    %93 = vst [vmem:[#allocation2 + $0x30] sm:$0x1] %v78
    %94 = vst [vmem:[#allocation2 + $0x38] sm:$0x1] %v79
    %95 = vst [vmem:[#allocation2 + $0x40] sm:$0x1] %v80
    %96 = vst [vmem:[#allocation2 + $0x48] sm:$0x1] %v81
    %s97 = scalar_lea.vmem [#allocation2], 42
    %98 = vst.msk [vmem:[%s97] ss:$8 sm:$0xf] %vm58, 0.0
    %99 = vst.msk [vmem:[%s97] ss:$8 sm:$0x10] %vm58, 0.0
    %s100 = scalar_lea.vmem [#allocation2], 83
    %101 = vst.msk [vmem:[%s100] ss:$8 sm:$0xf] %vm58, 0.0
    %102 = vst.msk [vmem:[%s100] ss:$8 sm:$0x10] %vm58, 0.0
    %s103 = scalar_lea.vmem %s0, 20
    %v104 = vld [vmem:[%s103] sm:$0xff]
    %v105 = vld [vmem:[%s103 + $0x8] sm:$0xff]
    %v106 = vld [vmem:[%s103 + $0x10] sm:$0xf]
    %v107 = vunpack.c.l.bf16 %v104
    %v108 = vunpack.c.h.bf16 %v104
    %v109 = vunpack.c.l.bf16 %v105
    %v110 = vunpack.c.h.bf16 %v105
    %v111 = vunpack.c.l.bf16 %v106
    %v117 = vrot.slane %v107, 5
    %v118 = vrot.slane %v108, 5
    %v119 = vrot.slane %v109, 5
    %v120 = vrot.slane %v110, 5
    %v121 = vrot.slane %v111, 5
    %127 = vst [vmem:[#allocation2 + $0x28] sm:$0xf8] %v117
    %128 = vst [vmem:[#allocation2 + $0x30] sm:$0xf8] %v118
    %129 = vst [vmem:[#allocation2 + $0x38] sm:$0xf8] %v119
    %130 = vst [vmem:[#allocation2 + $0x40] sm:$0xf8] %v120
    %131 = vst [vmem:[#allocation2 + $0x48] sm:$0xf8] %v121
    %132 = vst [vmem:[#allocation2 + $0x50] sm:$0x7] %v117
    %133 = vst [vmem:[#allocation2 + $0x58] sm:$0x7] %v118
    %134 = vst [vmem:[#allocation2 + $0x60] sm:$0x7] %v119
    %135 = vst [vmem:[#allocation2 + $0x68] sm:$0x7] %v120
    %136 = vst [vmem:[#allocation2 + $0x70] sm:$0x7] %v121
    %v137 = vld [vmem:[#allocation2] sm:$0xff]
    %v138 = vld [vmem:[#allocation2 + $0x8] sm:$0xff]
    %v139 = vld [vmem:[#allocation2 + $0x10] sm:$0xff]
    %v140 = vld [vmem:[#allocation2 + $0x18] sm:$0xff]
    %v141 = vld [vmem:[#allocation2 + $0x20] sm:$0xff]
    %v142 = vld [vmem:[#allocation2 + $0x28] sm:$0xfc]
    %v143 = vld [vmem:[#allocation2 + $0x30] sm:$0xfc]
    %v144 = vld [vmem:[#allocation2 + $0x38] sm:$0xfc]
    %v145 = vld [vmem:[#allocation2 + $0x40] sm:$0xfc]
    %v146 = vld [vmem:[#allocation2 + $0x48] sm:$0xfc]
    %v147 = vld [vmem:[#allocation2 + $0x50] sm:$0x3]
    %v148 = vld [vmem:[#allocation2 + $0x58] sm:$0x3]
    %v149 = vld [vmem:[#allocation2 + $0x60] sm:$0x3]
    %v150 = vld [vmem:[#allocation2 + $0x68] sm:$0x3]
    %v151 = vld [vmem:[#allocation2 + $0x70] sm:$0x3]
    %vm162 = vcmask 1045504
    %v163 = vrot.slane %v142, 2
    %v164 = vrot.slane %v147, 2
    %v165 = vsel %vm162, %v163, %v164
    %v166 = vrot.slane %v143, 2
    %v167 = vrot.slane %v148, 2
    %v168 = vsel %vm162, %v166, %v167
    %v169 = vrot.slane %v144, 2
    %v170 = vrot.slane %v149, 2
    %v171 = vsel %vm162, %v169, %v170
    %v172 = vrot.slane %v145, 2
    %v173 = vrot.slane %v150, 2
    %v174 = vsel %vm162, %v172, %v173
    %v175 = vrot.slane %v146, 2
    %v176 = vrot.slane %v151, 2
    %v177 = vsel %vm162, %v175, %v176
    %v183 = vpack.c.bf16 %v165, %v137
    %v184 = vpack.c.bf16 %v168, %v138
    %v185 = vpack.c.bf16 %v171, %v139
    %v186 = vpack.c.bf16 %v174, %v140
    %v187 = vpack.c.bf16 %v177, %v141
    %v188 = vld [vmem:[#allocation4] sm:$0xf]
    %v189 = vld [vmem:[#allocation4 + $0x4] sm:$0xf]
    %v190 = vld [vmem:[#allocation4 + $0x8] sm:$0xf]
    %v191 = vld [vmem:[#allocation4 + $0xc] sm:$0xf]
    %v192 = vld [vmem:[#allocation4 + $0x10] sm:$0xf]
    %v193 = vld [vmem:[#allocation4 + $0x14] sm:$0xf]
    %v194 = vld [vmem:[#allocation4 + $0x18] sm:$0xf]
    %v195 = vld [vmem:[#allocation4 + $0x1c] sm:$0xf]
    %v196 = vld [vmem:[#allocation4 + $0x20] sm:$0xf]
    %v197 = vld [vmem:[#allocation4 + $0x24] sm:$0xf]
    %v198 = vld [vmem:[#allocation4 + $0x28] sm:$0xf]
    %v199 = vld [vmem:[#allocation4 + $0x2c] sm:$0xf]
    %v200 = vld [vmem:[#allocation4 + $0x30] sm:$0xf]
    %v201 = vld [vmem:[#allocation4 + $0x34] sm:$0xf]
    %v202 = vld [vmem:[#allocation4 + $0x38] sm:$0xf]
    %v203 = vld [vmem:[#allocation4 + $0x3c] sm:$0xf]
    %v204 = vld [vmem:[#allocation4 + $0x40] sm:$0xf]
    %v205 = vld [vmem:[#allocation4 + $0x44] sm:$0xf]
    %v206 = vld [vmem:[#allocation4 + $0x48] sm:$0xf]
    %v207 = vld [vmem:[#allocation4 + $0x4c] sm:$0xf]
    %v208 = vld [vmem:[#allocation4 + $0x50] sm:$0xf]
    %v209 = vld [vmem:[#allocation4 + $0x54] sm:$0xf]
    %v210 = vld [vmem:[#allocation4 + $0x58] sm:$0xf]
    %v211 = vld [vmem:[#allocation4 + $0x5c] sm:$0xf]
    %v212 = vld [vmem:[#allocation4 + $0x60] sm:$0xf]
    %v213 = vld [vmem:[#allocation4 + $0x64] sm:$0xf]
    %v214 = vld [vmem:[#allocation4 + $0x68] sm:$0xf]
    %v215 = vld [vmem:[#allocation4 + $0x6c] sm:$0xf]
    %v216 = vld [vmem:[#allocation4 + $0x70] sm:$0xf]
    %v217 = vld [vmem:[#allocation4 + $0x74] sm:$0xf]
    %v218 = vld [vmem:[#allocation4 + $0x78] sm:$0xf]
    %v219 = vld [vmem:[#allocation4 + $0x7c] sm:$0xf]
    %v220 = vld [vmem:[#allocation4 + $0x80] sm:$0xf]
    %v221 = vld [vmem:[#allocation4 + $0x84] sm:$0xf]
    %v222 = vld [vmem:[#allocation4 + $0x88] sm:$0xf]
    %v223 = vld [vmem:[#allocation4 + $0x8c] sm:$0xf]
    %v224 = vld [vmem:[#allocation4 + $0x90] sm:$0xf]
    %v225 = vld [vmem:[#allocation4 + $0x94] sm:$0xf]
    %v226 = vld [vmem:[#allocation4 + $0x98] sm:$0xf]
    %v227 = vld [vmem:[#allocation4 + $0x9c] sm:$0xf]
    %v228 = vld [vmem:[#allocation4 + $0xa0] sm:$0xf]
    %v229 = vld [vmem:[#allocation4 + $0xa4] sm:$0xf]
    %v230 = vld [vmem:[#allocation4 + $0xa8] sm:$0xf]
    %v231 = vld [vmem:[#allocation4 + $0xac] sm:$0xf]
    %v232 = vld [vmem:[#allocation4 + $0xb0] sm:$0xf]
    %v233 = vld [vmem:[#allocation4 + $0xb4] sm:$0xf]
    %v234 = vld [vmem:[#allocation4 + $0xb8] sm:$0xf]
    %v235 = vld [vmem:[#allocation4 + $0xbc] sm:$0xf]
    %v236 = vld [vmem:[#allocation4 + $0xc0] sm:$0xf]
    %v237 = vld [vmem:[#allocation4 + $0xc4] sm:$0xf]
    %v238 = vld [vmem:[#allocation4 + $0xc8] sm:$0xf]
    %v239 = vld [vmem:[#allocation4 + $0xcc] sm:$0xf]
    %v240 = vld [vmem:[#allocation4 + $0xd0] sm:$0xf]
    %v241 = vld [vmem:[#allocation4 + $0xd4] sm:$0xf]
    %v242 = vld [vmem:[#allocation4 + $0xd8] sm:$0xf]
    %v243 = vld [vmem:[#allocation4 + $0xdc] sm:$0xf]
    %v244 = vld [vmem:[#allocation4 + $0xe0] sm:$0xf]
    %v245 = vld [vmem:[#allocation4 + $0xe4] sm:$0xf]
    %v246 = vld [vmem:[#allocation4 + $0xe8] sm:$0xf]
    %v247 = vld [vmem:[#allocation4 + $0xec] sm:$0xf]
    %v248 = vld [vmem:[#allocation4 + $0xf0] sm:$0xf]
    %v249 = vld [vmem:[#allocation4 + $0xf4] sm:$0xf]
    %v250 = vld [vmem:[#allocation4 + $0xf8] sm:$0xf]
    %v251 = vld [vmem:[#allocation4 + $0xfc] sm:$0xf]
    %v252 = vld [vmem:[#allocation4 + $0x100] sm:$0xf]
    %v253 = vld [vmem:[#allocation4 + $0x104] sm:$0xf]
    %v254 = vld [vmem:[#allocation4 + $0x108] sm:$0xf]
    %v255 = vld [vmem:[#allocation4 + $0x10c] sm:$0xf]
    %v256 = vld [vmem:[#allocation4 + $0x110] sm:$0xf]
    %v257 = vld [vmem:[#allocation4 + $0x114] sm:$0xf]
    %v258 = vld [vmem:[#allocation4 + $0x118] sm:$0xf]
    %v259 = vld [vmem:[#allocation4 + $0x11c] sm:$0xf]
    %v260 = vld [vmem:[#allocation4 + $0x120] sm:$0xf]
    %v261 = vld [vmem:[#allocation4 + $0x124] sm:$0xf]
    %v262 = vld [vmem:[#allocation4 + $0x128] sm:$0xf]
    %v263 = vld [vmem:[#allocation4 + $0x12c] sm:$0xf]
    %v264 = vld [vmem:[#allocation4 + $0x130] sm:$0xf]
    %v265 = vld [vmem:[#allocation4 + $0x134] sm:$0xf]
    %v266 = vld [vmem:[#allocation4 + $0x138] sm:$0xf]
    %v267 = vld [vmem:[#allocation4 + $0x13c] sm:$0xf]
    %v268 = vld [vmem:[#allocation2] sm:$0xfe]
    %v269 = vld [vmem:[#allocation2 + $0x8] sm:$0xfe]
    %v270 = vld [vmem:[#allocation2 + $0x10] sm:$0xfe]
    %v271 = vld [vmem:[#allocation2 + $0x18] sm:$0xfe]
    %v272 = vld [vmem:[#allocation2 + $0x20] sm:$0xfe]
    %v273 = vld [vmem:[#allocation2 + $0x28] sm:$0x1]
    %v274 = vld [vmem:[#allocation2 + $0x30] sm:$0x1]
    %v275 = vld [vmem:[#allocation2 + $0x38] sm:$0x1]
    %v276 = vld [vmem:[#allocation2 + $0x40] sm:$0x1]
    %v277 = vld [vmem:[#allocation2 + $0x48] sm:$0x1]
    %v278 = vld [vmem:[#allocation2 + $0x28] sm:$0xf8]
    %v279 = vld [vmem:[#allocation2 + $0x30] sm:$0xf8]
    %v280 = vld [vmem:[#allocation2 + $0x38] sm:$0xf8]
    %v281 = vld [vmem:[#allocation2 + $0x40] sm:$0xf8]
    %v282 = vld [vmem:[#allocation2 + $0x48] sm:$0xf8]
    %v283 = vld [vmem:[#allocation2 + $0x50] sm:$0x7]
    %v284 = vld [vmem:[#allocation2 + $0x58] sm:$0x7]
    %v285 = vld [vmem:[#allocation2 + $0x60] sm:$0x7]
    %v286 = vld [vmem:[#allocation2 + $0x68] sm:$0x7]
    %v287 = vld [vmem:[#allocation2 + $0x70] sm:$0x7]
    %vm298 = vcmask 1046528
    %v299 = vrot.slane %v268, 1
    %v300 = vrot.slane %v273, 1
    %v301 = vsel %vm298, %v299, %v300
    %v302 = vrot.slane %v269, 1
    %v303 = vrot.slane %v274, 1
    %v304 = vsel %vm298, %v302, %v303
    %v305 = vrot.slane %v270, 1
    %v306 = vrot.slane %v275, 1
    %v307 = vsel %vm298, %v305, %v306
    %v308 = vrot.slane %v271, 1
    %v309 = vrot.slane %v276, 1
    %v310 = vsel %vm298, %v308, %v309
    %v311 = vrot.slane %v272, 1
    %v312 = vrot.slane %v277, 1
    %v313 = vsel %vm298, %v311, %v312
    %vm329 = vcmask 1044480
    %v330 = vrot.slane %v278, 3
    %v331 = vrot.slane %v283, 3
    %v332 = vsel %vm329, %v330, %v331
    %v333 = vrot.slane %v279, 3
    %v334 = vrot.slane %v284, 3
    %v335 = vsel %vm329, %v333, %v334
    %v336 = vrot.slane %v280, 3
    %v337 = vrot.slane %v285, 3
    %v338 = vsel %vm329, %v336, %v337
    %v339 = vrot.slane %v281, 3
    %v340 = vrot.slane %v286, 3
    %v341 = vsel %vm329, %v339, %v340
    %v342 = vrot.slane %v282, 3
    %v343 = vrot.slane %v287, 3
    %v344 = vsel %vm329, %v342, %v343
    %v350 = vpack.c.bf16 %v332, %v301
    %v351 = vpack.c.bf16 %v335, %v304
    %v352 = vpack.c.bf16 %v338, %v307
    %v353 = vpack.c.bf16 %v341, %v310
    %v354 = vpack.c.bf16 %v344, %v313
    %s355 = scalar_lea.vmem [#allocation4], 320
    %v356 = vld [vmem:[%s355] sm:$0xf]
    %v357 = vld [vmem:[%s355 + $0x4] sm:$0xf]
    %v358 = vld [vmem:[%s355 + $0x8] sm:$0xf]
    %v359 = vld [vmem:[%s355 + $0xc] sm:$0xf]
    %v360 = vld [vmem:[%s355 + $0x10] sm:$0xf]
    %v361 = vld [vmem:[%s355 + $0x14] sm:$0xf]
    %v362 = vld [vmem:[%s355 + $0x18] sm:$0xf]
    %v363 = vld [vmem:[%s355 + $0x1c] sm:$0xf]
    %v364 = vld [vmem:[%s355 + $0x20] sm:$0xf]
    %v365 = vld [vmem:[%s355 + $0x24] sm:$0xf]
    %v366 = vld [vmem:[%s355 + $0x28] sm:$0xf]
    %v367 = vld [vmem:[%s355 + $0x2c] sm:$0xf]
    %v368 = vld [vmem:[%s355 + $0x30] sm:$0xf]
    %v369 = vld [vmem:[%s355 + $0x34] sm:$0xf]
    %v370 = vld [vmem:[%s355 + $0x38] sm:$0xf]
    %v371 = vld [vmem:[%s355 + $0x3c] sm:$0xf]
    %v372 = vld [vmem:[%s355 + $0x40] sm:$0xf]
    %v373 = vld [vmem:[%s355 + $0x44] sm:$0xf]
    %v374 = vld [vmem:[%s355 + $0x48] sm:$0xf]
    %v375 = vld [vmem:[%s355 + $0x4c] sm:$0xf]
    %v376 = vld [vmem:[%s355 + $0x50] sm:$0xf]
    %v377 = vld [vmem:[%s355 + $0x54] sm:$0xf]
    %v378 = vld [vmem:[%s355 + $0x58] sm:$0xf]
    %v379 = vld [vmem:[%s355 + $0x5c] sm:$0xf]
    %v380 = vld [vmem:[%s355 + $0x60] sm:$0xf]
    %v381 = vld [vmem:[%s355 + $0x64] sm:$0xf]
    %v382 = vld [vmem:[%s355 + $0x68] sm:$0xf]
    %v383 = vld [vmem:[%s355 + $0x6c] sm:$0xf]
    %v384 = vld [vmem:[%s355 + $0x70] sm:$0xf]
    %v385 = vld [vmem:[%s355 + $0x74] sm:$0xf]
    %v386 = vld [vmem:[%s355 + $0x78] sm:$0xf]
    %v387 = vld [vmem:[%s355 + $0x7c] sm:$0xf]
    %v388 = vld [vmem:[%s355 + $0x80] sm:$0xf]
    %v389 = vld [vmem:[%s355 + $0x84] sm:$0xf]
    %v390 = vld [vmem:[%s355 + $0x88] sm:$0xf]
    %v391 = vld [vmem:[%s355 + $0x8c] sm:$0xf]
    %v392 = vld [vmem:[%s355 + $0x90] sm:$0xf]
    %v393 = vld [vmem:[%s355 + $0x94] sm:$0xf]
    %v394 = vld [vmem:[%s355 + $0x98] sm:$0xf]
    %v395 = vld [vmem:[%s355 + $0x9c] sm:$0xf]
    %v396 = vld [vmem:[%s355 + $0xa0] sm:$0xf]
    %v397 = vld [vmem:[%s355 + $0xa4] sm:$0xf]
    %v398 = vld [vmem:[%s355 + $0xa8] sm:$0xf]
    %v399 = vld [vmem:[%s355 + $0xac] sm:$0xf]
    %v400 = vld [vmem:[%s355 + $0xb0] sm:$0xf]
    %v401 = vld [vmem:[%s355 + $0xb4] sm:$0xf]
    %v402 = vld [vmem:[%s355 + $0xb8] sm:$0xf]
    %v403 = vld [vmem:[%s355 + $0xbc] sm:$0xf]
    %v404 = vld [vmem:[%s355 + $0xc0] sm:$0xf]
    %v405 = vld [vmem:[%s355 + $0xc4] sm:$0xf]
    %v406 = vld [vmem:[%s355 + $0xc8] sm:$0xf]
    %v407 = vld [vmem:[%s355 + $0xcc] sm:$0xf]
    %v408 = vld [vmem:[%s355 + $0xd0] sm:$0xf]
    %v409 = vld [vmem:[%s355 + $0xd4] sm:$0xf]
    %v410 = vld [vmem:[%s355 + $0xd8] sm:$0xf]
    %v411 = vld [vmem:[%s355 + $0xdc] sm:$0xf]
    %v412 = vld [vmem:[%s355 + $0xe0] sm:$0xf]
    %v413 = vld [vmem:[%s355 + $0xe4] sm:$0xf]
    %v414 = vld [vmem:[%s355 + $0xe8] sm:$0xf]
    %v415 = vld [vmem:[%s355 + $0xec] sm:$0xf]
    %v416 = vld [vmem:[%s355 + $0xf0] sm:$0xf]
    %v417 = vld [vmem:[%s355 + $0xf4] sm:$0xf]
    %v418 = vld [vmem:[%s355 + $0xf8] sm:$0xf]
    %v419 = vld [vmem:[%s355 + $0xfc] sm:$0xf]
    %v420 = vld [vmem:[%s355 + $0x100] sm:$0xf]
    %v421 = vld [vmem:[%s355 + $0x104] sm:$0xf]
    %v422 = vld [vmem:[%s355 + $0x108] sm:$0xf]
    %v423 = vld [vmem:[%s355 + $0x10c] sm:$0xf]
    %v424 = vld [vmem:[%s355 + $0x110] sm:$0xf]
    %v425 = vld [vmem:[%s355 + $0x114] sm:$0xf]
    %v426 = vld [vmem:[%s355 + $0x118] sm:$0xf]
    %v427 = vld [vmem:[%s355 + $0x11c] sm:$0xf]
    %v428 = vld [vmem:[%s355 + $0x120] sm:$0xf]
    %v429 = vld [vmem:[%s355 + $0x124] sm:$0xf]
    %v430 = vld [vmem:[%s355 + $0x128] sm:$0xf]
    %v431 = vld [vmem:[%s355 + $0x12c] sm:$0xf]
    %v432 = vld [vmem:[%s355 + $0x130] sm:$0xf]
    %v433 = vld [vmem:[%s355 + $0x134] sm:$0xf]
    %v434 = vld [vmem:[%s355 + $0x138] sm:$0xf]
    %v435 = vld [vmem:[%s355 + $0x13c] sm:$0xf]
    %v516 = vunpack.c.l.b16 %v356
    %v517 = vunpack.c.l.b16 %v357
    %v518 = vunpack.c.l.b16 %v358
    %v519 = vunpack.c.l.b16 %v359
    %v520 = vunpack.c.l.b16 %v360
    %v521 = vunpack.c.l.b16 %v361
    %v522 = vunpack.c.l.b16 %v362
    %v523 = vunpack.c.l.b16 %v363
    %v524 = vunpack.c.l.b16 %v364
    %v525 = vunpack.c.l.b16 %v365
    %v526 = vunpack.c.l.b16 %v366
    %v527 = vunpack.c.l.b16 %v367
    %v528 = vunpack.c.l.b16 %v368
    %v529 = vunpack.c.l.b16 %v369
    %v530 = vunpack.c.l.b16 %v370
    %v531 = vunpack.c.l.b16 %v371
    %v532 = vunpack.c.l.b16 %v372
    %v533 = vunpack.c.l.b16 %v373
    %v534 = vunpack.c.l.b16 %v374
    %v535 = vunpack.c.l.b16 %v375
    %v536 = vunpack.c.l.b16 %v376
    %v537 = vunpack.c.l.b16 %v377
    %v538 = vunpack.c.l.b16 %v378
    %v539 = vunpack.c.l.b16 %v379
    %v540 = vunpack.c.l.b16 %v380
    %v541 = vunpack.c.l.b16 %v381
    %v542 = vunpack.c.l.b16 %v382
    %v543 = vunpack.c.l.b16 %v383
    %v544 = vunpack.c.l.b16 %v384
    %v545 = vunpack.c.l.b16 %v385
    %v546 = vunpack.c.l.b16 %v386
    %v547 = vunpack.c.l.b16 %v387
    %v548 = vunpack.c.l.b16 %v388
    %v549 = vunpack.c.l.b16 %v389
    %v550 = vunpack.c.l.b16 %v390
    %v551 = vunpack.c.l.b16 %v391
    %v552 = vunpack.c.l.b16 %v392
    %v553 = vunpack.c.l.b16 %v393
    %v554 = vunpack.c.l.b16 %v394
    %v555 = vunpack.c.l.b16 %v395
    %v556 = vunpack.c.l.b16 %v396
    %v557 = vunpack.c.l.b16 %v397
    %v558 = vunpack.c.l.b16 %v398
    %v559 = vunpack.c.l.b16 %v399
    %v560 = vunpack.c.l.b16 %v400
    %v561 = vunpack.c.l.b16 %v401
    %v562 = vunpack.c.l.b16 %v402
    %v563 = vunpack.c.l.b16 %v403
    %v564 = vunpack.c.l.b16 %v404
    %v565 = vunpack.c.l.b16 %v405
    %v566 = vunpack.c.l.b16 %v406
    %v567 = vunpack.c.l.b16 %v407
    %v568 = vunpack.c.l.b16 %v408
    %v569 = vunpack.c.l.b16 %v409
    %v570 = vunpack.c.l.b16 %v410
    %v571 = vunpack.c.l.b16 %v411
    %v572 = vunpack.c.l.b16 %v412
    %v573 = vunpack.c.l.b16 %v413
    %v574 = vunpack.c.l.b16 %v414
    %v575 = vunpack.c.l.b16 %v415
    %v576 = vunpack.c.l.b16 %v416
    %v577 = vunpack.c.l.b16 %v417
    %v578 = vunpack.c.l.b16 %v418
    %v579 = vunpack.c.l.b16 %v419
    %v580 = vunpack.c.l.b16 %v420
    %v581 = vunpack.c.l.b16 %v421
    %v582 = vunpack.c.l.b16 %v422
    %v583 = vunpack.c.l.b16 %v423
    %v584 = vunpack.c.l.b16 %v424
    %v585 = vunpack.c.l.b16 %v425
    %v586 = vunpack.c.l.b16 %v426
    %v587 = vunpack.c.l.b16 %v427
    %v588 = vunpack.c.l.b16 %v428
    %v589 = vunpack.c.l.b16 %v429
    %v590 = vunpack.c.l.b16 %v430
    %v591 = vunpack.c.l.b16 %v431
    %v592 = vunpack.c.l.b16 %v432
    %v593 = vunpack.c.l.b16 %v433
    %v594 = vunpack.c.l.b16 %v434
    %v595 = vunpack.c.l.b16 %v435
    %v596 = vpack.c.b16 %v517, %v516
    %v597 = vpack.c.b16 %v519, %v518
    %v598 = vpack.c.b16 %v521, %v520
    %v599 = vpack.c.b16 %v523, %v522
    %v600 = vpack.c.b16 %v525, %v524
    %v601 = vpack.c.b16 %v527, %v526
    %v602 = vpack.c.b16 %v529, %v528
    %v603 = vpack.c.b16 %v531, %v530
    %v604 = vpack.c.b16 %v533, %v532
    %v605 = vpack.c.b16 %v535, %v534
    %v606 = vpack.c.b16 %v537, %v536
    %v607 = vpack.c.b16 %v539, %v538
    %v608 = vpack.c.b16 %v541, %v540
    %v609 = vpack.c.b16 %v543, %v542
    %v610 = vpack.c.b16 %v545, %v544
    %v611 = vpack.c.b16 %v547, %v546
    %v612 = vpack.c.b16 %v549, %v548
    %v613 = vpack.c.b16 %v551, %v550
    %v614 = vpack.c.b16 %v553, %v552
    %v615 = vpack.c.b16 %v555, %v554
    %v616 = vpack.c.b16 %v557, %v556
    %v617 = vpack.c.b16 %v559, %v558
    %v618 = vpack.c.b16 %v561, %v560
    %v619 = vpack.c.b16 %v563, %v562
    %v620 = vpack.c.b16 %v565, %v564
    %v621 = vpack.c.b16 %v567, %v566
    %v622 = vpack.c.b16 %v569, %v568
    %v623 = vpack.c.b16 %v571, %v570
    %v624 = vpack.c.b16 %v573, %v572
    %v625 = vpack.c.b16 %v575, %v574
    %v626 = vpack.c.b16 %v577, %v576
    %v627 = vpack.c.b16 %v579, %v578
    %v628 = vpack.c.b16 %v581, %v580
    %v629 = vpack.c.b16 %v583, %v582
    %v630 = vpack.c.b16 %v585, %v584
    %v631 = vpack.c.b16 %v587, %v586
    %v632 = vpack.c.b16 %v589, %v588
    %v633 = vpack.c.b16 %v591, %v590
    %v634 = vpack.c.b16 %v593, %v592
    %v635 = vpack.c.b16 %v595, %v594
    %676 = vmatprep.subr.bf16.mxu0 0
    %677 = vmatpush1.bf16.msra.mxu0 %v603
    %678 = vmatprep.subr.bf16.mxu0 0
    %679 = vmatpush1.bf16.msra.mxu0 %v602
    %680 = vmatprep.subr.bf16.mxu0 0
    %681 = vmatpush1.bf16.msra.mxu0 %v601
    %682 = vmatprep.subr.bf16.mxu0 0
    %683 = vmatpush1.bf16.msra.mxu0 %v600
    %684 = vmatprep.subr.bf16.mxu0 0
    %685 = vmatpush1.bf16.msra.mxu0 %v599
    %686 = vmatprep.subr.bf16.mxu0 0
    %687 = vmatpush1.bf16.msra.mxu0 %v598
    %688 = vmatprep.subr.bf16.mxu0 0
    %689 = vmatpush1.bf16.msra.mxu0 %v597
    %690 = vmatprep.subr.bf16.mxu0 0
    %691 = vmatpush1.bf16.msra.mxu0 %v596
    %692 = vmatprep.subr.bf16.mxu0 0
    %693 = vmatpush2.bf16.msra.mxu0 %v611
    %694 = vmatprep.subr.bf16.mxu0 0
    %695 = vmatpush2.bf16.msra.mxu0 %v610
    %696 = vmatprep.subr.bf16.mxu0 0
    %697 = vmatpush2.bf16.msra.mxu0 %v609
    %698 = vmatprep.subr.bf16.mxu0 0
    %699 = vmatpush2.bf16.msra.mxu0 %v608
    %700 = vmatprep.subr.bf16.mxu0 0
    %701 = vmatpush2.bf16.msra.mxu0 %v607
    %702 = vmatprep.subr.bf16.mxu0 0
    %703 = vmatpush2.bf16.msra.mxu0 %v606
    %704 = vmatprep.subr.bf16.mxu0 0
    %705 = vmatpush2.bf16.msra.mxu0 %v605
    %706 = vmatprep.subr.bf16.mxu0 0
    %707 = vmatpush2.bf16.msra.mxu0 %v604
    %708 = vmatprep.mubr.bf16.mxu0 %v351
    %709 = vmatmul.mubr.bf16.gmra.mxu0 %v350
    %v710 = vpop.f32.mrf.mxu0
    %v711 = vadd.f32 0.0, %v710
    %v712 = vpop.f32.mrf.mxu0
    %v713 = vpop.f32.mrf.mxu0
    %v714 = vadd.f32 0.0, %v713
    %v715 = vpop.f32.mrf.mxu0
    %716 = vdwg.mxu0
    %717 = vmatprep.subr.bf16.mxu0 0
    %718 = vmatpush1.bf16.msra.mxu0 %v619
    %719 = vmatprep.subr.bf16.mxu0 0
    %720 = vmatpush1.bf16.msra.mxu0 %v618
    %721 = vmatprep.subr.bf16.mxu0 0
    %722 = vmatpush1.bf16.msra.mxu0 %v617
    %723 = vmatprep.subr.bf16.mxu0 0
    %724 = vmatpush1.bf16.msra.mxu0 %v616
    %725 = vmatprep.subr.bf16.mxu0 0
    %726 = vmatpush1.bf16.msra.mxu0 %v615
    %727 = vmatprep.subr.bf16.mxu0 0
    %728 = vmatpush1.bf16.msra.mxu0 %v614
    %729 = vmatprep.subr.bf16.mxu0 0
    %730 = vmatpush1.bf16.msra.mxu0 %v613
    %731 = vmatprep.subr.bf16.mxu0 0
    %732 = vmatpush1.bf16.msra.mxu0 %v612
    %733 = vmatprep.subr.bf16.mxu0 0
    %734 = vmatpush2.bf16.msra.mxu0 %v627
    %735 = vmatprep.subr.bf16.mxu0 0
    %736 = vmatpush2.bf16.msra.mxu0 %v626
    %737 = vmatprep.subr.bf16.mxu0 0
    %738 = vmatpush2.bf16.msra.mxu0 %v625
    %739 = vmatprep.subr.bf16.mxu0 0
    %740 = vmatpush2.bf16.msra.mxu0 %v624
    %741 = vmatprep.subr.bf16.mxu0 0
    %742 = vmatpush2.bf16.msra.mxu0 %v623
    %743 = vmatprep.subr.bf16.mxu0 0
    %744 = vmatpush2.bf16.msra.mxu0 %v622
    %745 = vmatprep.subr.bf16.mxu0 0
    %746 = vmatpush2.bf16.msra.mxu0 %v621
    %747 = vmatprep.subr.bf16.mxu0 0
    %748 = vmatpush2.bf16.msra.mxu0 %v620
    %749 = vmatprep.mubr.bf16.mxu0 %v353
    %750 = vmatmul.mubr.bf16.gmra.mxu0 %v352
    %v751 = vpop.f32.mrf.mxu0
    %v752 = vadd.f32 %v711, %v751
    %v753 = vpop.f32.mrf.mxu0
    %v754 = vpop.f32.mrf.mxu0
    %v755 = vadd.f32 %v714, %v754
    %v756 = vpop.f32.mrf.mxu0
    %757 = vdwg.mxu0
    %758 = vmatprep.subr.bf16.mxu0 0
    %759 = vmatpush1.bf16.msra.mxu0 %v635
    %760 = vmatprep.subr.bf16.mxu0 0
    %761 = vmatpush1.bf16.msra.mxu0 %v634
    %762 = vmatprep.subr.bf16.mxu0 0
    %763 = vmatpush1.bf16.msra.mxu0 %v633
    %764 = vmatprep.subr.bf16.mxu0 0
    %765 = vmatpush1.bf16.msra.mxu0 %v632
    %766 = vmatprep.subr.bf16.mxu0 0
    %767 = vmatpush1.bf16.msra.mxu0 %v631
    %768 = vmatprep.subr.bf16.mxu0 0
    %769 = vmatpush1.bf16.msra.mxu0 %v630
    %770 = vmatprep.subr.bf16.mxu0 0
    %771 = vmatpush1.bf16.msra.mxu0 %v629
    %772 = vmatprep.subr.bf16.mxu0 0
    %773 = vmatpush1.bf16.msra.mxu0 %v628
    %774 = vmatprep.subr.bf16.mxu0 0
    %775 = vmatpush2.bf16.msra.mxu0 0
    %776 = vmatprep.subr.bf16.mxu0 0
    %777 = vmatpush2.bf16.msra.mxu0 0
    %778 = vmatprep.subr.bf16.mxu0 0
    %779 = vmatpush2.bf16.msra.mxu0 0
    %780 = vmatprep.subr.bf16.mxu0 0
    %781 = vmatpush2.bf16.msra.mxu0 0
    %782 = vmatprep.subr.bf16.mxu0 0
    %783 = vmatpush2.bf16.msra.mxu0 0
    %784 = vmatprep.subr.bf16.mxu0 0
    %785 = vmatpush2.bf16.msra.mxu0 0
    %786 = vmatprep.subr.bf16.mxu0 0
    %787 = vmatpush2.bf16.msra.mxu0 0
    %788 = vmatprep.subr.bf16.mxu0 0
    %789 = vmatpush2.bf16.msra.mxu0 0
    %790 = vmatprep.mubr.bf16.mxu0 0
    %791 = vmatmul.mubr.bf16.gmra.mxu0 %v354
    %v792 = vpop.f32.mrf.mxu0
    %v793 = vadd.f32 %v752, %v792
    %v794 = vpop.f32.mrf.mxu0
    %v795 = vpop.f32.mrf.mxu0
    %v796 = vadd.f32 %v755, %v795
    %v797 = vpop.f32.mrf.mxu0
    %798 = vdwg.mxu0
    %v879 = vunpack.c.l.b16 %v188
    %v880 = vunpack.c.l.b16 %v189
    %v881 = vunpack.c.l.b16 %v190
    %v882 = vunpack.c.l.b16 %v191
    %v883 = vunpack.c.l.b16 %v192
    %v884 = vunpack.c.l.b16 %v193
    %v885 = vunpack.c.l.b16 %v194
    %v886 = vunpack.c.l.b16 %v195
    %v887 = vunpack.c.l.b16 %v196
    %v888 = vunpack.c.l.b16 %v197
    %v889 = vunpack.c.l.b16 %v198
    %v890 = vunpack.c.l.b16 %v199
    %v891 = vunpack.c.l.b16 %v200
    %v892 = vunpack.c.l.b16 %v201
    %v893 = vunpack.c.l.b16 %v202
    %v894 = vunpack.c.l.b16 %v203
    %v895 = vunpack.c.l.b16 %v204
    %v896 = vunpack.c.l.b16 %v205
    %v897 = vunpack.c.l.b16 %v206
    %v898 = vunpack.c.l.b16 %v207
    %v899 = vunpack.c.l.b16 %v208
    %v900 = vunpack.c.l.b16 %v209
    %v901 = vunpack.c.l.b16 %v210
    %v902 = vunpack.c.l.b16 %v211
    %v903 = vunpack.c.l.b16 %v212
    %v904 = vunpack.c.l.b16 %v213
    %v905 = vunpack.c.l.b16 %v214
    %v906 = vunpack.c.l.b16 %v215
    %v907 = vunpack.c.l.b16 %v216
    %v908 = vunpack.c.l.b16 %v217
    %v909 = vunpack.c.l.b16 %v218
    %v910 = vunpack.c.l.b16 %v219
    %v911 = vunpack.c.l.b16 %v220
    %v912 = vunpack.c.l.b16 %v221
    %v913 = vunpack.c.l.b16 %v222
    %v914 = vunpack.c.l.b16 %v223
    %v915 = vunpack.c.l.b16 %v224
    %v916 = vunpack.c.l.b16 %v225
    %v917 = vunpack.c.l.b16 %v226
    %v918 = vunpack.c.l.b16 %v227
    %v919 = vunpack.c.l.b16 %v228
    %v920 = vunpack.c.l.b16 %v229
    %v921 = vunpack.c.l.b16 %v230
    %v922 = vunpack.c.l.b16 %v231
    %v923 = vunpack.c.l.b16 %v232
    %v924 = vunpack.c.l.b16 %v233
    %v925 = vunpack.c.l.b16 %v234
    %v926 = vunpack.c.l.b16 %v235
    %v927 = vunpack.c.l.b16 %v236
    %v928 = vunpack.c.l.b16 %v237
    %v929 = vunpack.c.l.b16 %v238
    %v930 = vunpack.c.l.b16 %v239
    %v931 = vunpack.c.l.b16 %v240
    %v932 = vunpack.c.l.b16 %v241
    %v933 = vunpack.c.l.b16 %v242
    %v934 = vunpack.c.l.b16 %v243
    %v935 = vunpack.c.l.b16 %v244
    %v936 = vunpack.c.l.b16 %v245
    %v937 = vunpack.c.l.b16 %v246
    %v938 = vunpack.c.l.b16 %v247
    %v939 = vunpack.c.l.b16 %v248
    %v940 = vunpack.c.l.b16 %v249
    %v941 = vunpack.c.l.b16 %v250
    %v942 = vunpack.c.l.b16 %v251
    %v943 = vunpack.c.l.b16 %v252
    %v944 = vunpack.c.l.b16 %v253
    %v945 = vunpack.c.l.b16 %v254
    %v946 = vunpack.c.l.b16 %v255
    %v947 = vunpack.c.l.b16 %v256
    %v948 = vunpack.c.l.b16 %v257
    %v949 = vunpack.c.l.b16 %v258
    %v950 = vunpack.c.l.b16 %v259
    %v951 = vunpack.c.l.b16 %v260
    %v952 = vunpack.c.l.b16 %v261
    %v953 = vunpack.c.l.b16 %v262
    %v954 = vunpack.c.l.b16 %v263
    %v955 = vunpack.c.l.b16 %v264
    %v956 = vunpack.c.l.b16 %v265
    %v957 = vunpack.c.l.b16 %v266
    %v958 = vunpack.c.l.b16 %v267
    %v959 = vpack.c.b16 %v880, %v879
    %v960 = vpack.c.b16 %v882, %v881
    %v961 = vpack.c.b16 %v884, %v883
    %v962 = vpack.c.b16 %v886, %v885
    %v963 = vpack.c.b16 %v888, %v887
    %v964 = vpack.c.b16 %v890, %v889
    %v965 = vpack.c.b16 %v892, %v891
    %v966 = vpack.c.b16 %v894, %v893
    %v967 = vpack.c.b16 %v896, %v895
    %v968 = vpack.c.b16 %v898, %v897
    %v969 = vpack.c.b16 %v900, %v899
    %v970 = vpack.c.b16 %v902, %v901
    %v971 = vpack.c.b16 %v904, %v903
    %v972 = vpack.c.b16 %v906, %v905
    %v973 = vpack.c.b16 %v908, %v907
    %v974 = vpack.c.b16 %v910, %v909
    %v975 = vpack.c.b16 %v912, %v911
    %v976 = vpack.c.b16 %v914, %v913
    %v977 = vpack.c.b16 %v916, %v915
    %v978 = vpack.c.b16 %v918, %v917
    %v979 = vpack.c.b16 %v920, %v919
    %v980 = vpack.c.b16 %v922, %v921
    %v981 = vpack.c.b16 %v924, %v923
    %v982 = vpack.c.b16 %v926, %v925
    %v983 = vpack.c.b16 %v928, %v927
    %v984 = vpack.c.b16 %v930, %v929
    %v985 = vpack.c.b16 %v932, %v931
    %v986 = vpack.c.b16 %v934, %v933
    %v987 = vpack.c.b16 %v936, %v935
    %v988 = vpack.c.b16 %v938, %v937
    %v989 = vpack.c.b16 %v940, %v939
    %v990 = vpack.c.b16 %v942, %v941
    %v991 = vpack.c.b16 %v944, %v943
    %v992 = vpack.c.b16 %v946, %v945
    %v993 = vpack.c.b16 %v948, %v947
    %v994 = vpack.c.b16 %v950, %v949
    %v995 = vpack.c.b16 %v952, %v951
    %v996 = vpack.c.b16 %v954, %v953
    %v997 = vpack.c.b16 %v956, %v955
    %v998 = vpack.c.b16 %v958, %v957
    %1039 = vmatprep.subr.bf16.mxu0 0
    %1040 = vmatpush1.bf16.msra.mxu0 %v966
    %1041 = vmatprep.subr.bf16.mxu0 0
    %1042 = vmatpush1.bf16.msra.mxu0 %v965
    %1043 = vmatprep.subr.bf16.mxu0 0
    %1044 = vmatpush1.bf16.msra.mxu0 %v964
    %1045 = vmatprep.subr.bf16.mxu0 0
    %1046 = vmatpush1.bf16.msra.mxu0 %v963
    %1047 = vmatprep.subr.bf16.mxu0 0
    %1048 = vmatpush1.bf16.msra.mxu0 %v962
    %1049 = vmatprep.subr.bf16.mxu0 0
    %1050 = vmatpush1.bf16.msra.mxu0 %v961
    %1051 = vmatprep.subr.bf16.mxu0 0
    %1052 = vmatpush1.bf16.msra.mxu0 %v960
    %1053 = vmatprep.subr.bf16.mxu0 0
    %1054 = vmatpush1.bf16.msra.mxu0 %v959
    %1055 = vmatprep.subr.bf16.mxu0 0
    %1056 = vmatpush2.bf16.msra.mxu0 %v974
    %1057 = vmatprep.subr.bf16.mxu0 0
    %1058 = vmatpush2.bf16.msra.mxu0 %v973
    %1059 = vmatprep.subr.bf16.mxu0 0
    %1060 = vmatpush2.bf16.msra.mxu0 %v972
    %1061 = vmatprep.subr.bf16.mxu0 0
    %1062 = vmatpush2.bf16.msra.mxu0 %v971
    %1063 = vmatprep.subr.bf16.mxu0 0
    %1064 = vmatpush2.bf16.msra.mxu0 %v970
    %1065 = vmatprep.subr.bf16.mxu0 0
    %1066 = vmatpush2.bf16.msra.mxu0 %v969
    %1067 = vmatprep.subr.bf16.mxu0 0
    %1068 = vmatpush2.bf16.msra.mxu0 %v968
    %1069 = vmatprep.subr.bf16.mxu0 0
    %1070 = vmatpush2.bf16.msra.mxu0 %v967
    %1071 = vmatprep.mubr.bf16.mxu0 %v184
    %1072 = vmatmul.mubr.bf16.gmra.mxu0 %v183
    %v1073 = vpop.f32.mrf.mxu0
    %v1074 = vadd.f32 %v793, %v1073
    %v1075 = vpop.f32.mrf.mxu0
    %v1076 = vpop.f32.mrf.mxu0
    %v1077 = vadd.f32 %v796, %v1076
    %v1078 = vpop.f32.mrf.mxu0
    %1079 = vdwg.mxu0
    %1080 = vmatprep.subr.bf16.mxu0 0
    %1081 = vmatpush1.bf16.msra.mxu0 %v982
    %1082 = vmatprep.subr.bf16.mxu0 0
    %1083 = vmatpush1.bf16.msra.mxu0 %v981
    %1084 = vmatprep.subr.bf16.mxu0 0
    %1085 = vmatpush1.bf16.msra.mxu0 %v980
    %1086 = vmatprep.subr.bf16.mxu0 0
    %1087 = vmatpush1.bf16.msra.mxu0 %v979
    %1088 = vmatprep.subr.bf16.mxu0 0
    %1089 = vmatpush1.bf16.msra.mxu0 %v978
    %1090 = vmatprep.subr.bf16.mxu0 0
    %1091 = vmatpush1.bf16.msra.mxu0 %v977
    %1092 = vmatprep.subr.bf16.mxu0 0
    %1093 = vmatpush1.bf16.msra.mxu0 %v976
    %1094 = vmatprep.subr.bf16.mxu0 0
    %1095 = vmatpush1.bf16.msra.mxu0 %v975
    %1096 = vmatprep.subr.bf16.mxu0 0
    %1097 = vmatpush2.bf16.msra.mxu0 %v990
    %1098 = vmatprep.subr.bf16.mxu0 0
    %1099 = vmatpush2.bf16.msra.mxu0 %v989
    %1100 = vmatprep.subr.bf16.mxu0 0
    %1101 = vmatpush2.bf16.msra.mxu0 %v988
    %1102 = vmatprep.subr.bf16.mxu0 0
    %1103 = vmatpush2.bf16.msra.mxu0 %v987
    %1104 = vmatprep.subr.bf16.mxu0 0
    %1105 = vmatpush2.bf16.msra.mxu0 %v986
    %1106 = vmatprep.subr.bf16.mxu0 0
    %1107 = vmatpush2.bf16.msra.mxu0 %v985
    %1108 = vmatprep.subr.bf16.mxu0 0
    %1109 = vmatpush2.bf16.msra.mxu0 %v984
    %1110 = vmatprep.subr.bf16.mxu0 0
    %1111 = vmatpush2.bf16.msra.mxu0 %v983
    %1112 = vmatprep.mubr.bf16.mxu0 %v186
    %1113 = vmatmul.mubr.bf16.gmra.mxu0 %v185
    %v1114 = vpop.f32.mrf.mxu0
    %v1115 = vadd.f32 %v1074, %v1114
    %v1116 = vpop.f32.mrf.mxu0
    %v1117 = vpop.f32.mrf.mxu0
    %v1118 = vadd.f32 %v1077, %v1117
    %v1119 = vpop.f32.mrf.mxu0
    %1120 = vdwg.mxu0
    %1121 = vmatprep.subr.bf16.mxu0 0
    %1122 = vmatpush1.bf16.msra.mxu0 %v998
    %1123 = vmatprep.subr.bf16.mxu0 0
    %1124 = vmatpush1.bf16.msra.mxu0 %v997
    %1125 = vmatprep.subr.bf16.mxu0 0
    %1126 = vmatpush1.bf16.msra.mxu0 %v996
    %1127 = vmatprep.subr.bf16.mxu0 0
    %1128 = vmatpush1.bf16.msra.mxu0 %v995
    %1129 = vmatprep.subr.bf16.mxu0 0
    %1130 = vmatpush1.bf16.msra.mxu0 %v994
    %1131 = vmatprep.subr.bf16.mxu0 0
    %1132 = vmatpush1.bf16.msra.mxu0 %v993
    %1133 = vmatprep.subr.bf16.mxu0 0
    %1134 = vmatpush1.bf16.msra.mxu0 %v992
    %1135 = vmatprep.subr.bf16.mxu0 0
    %1136 = vmatpush1.bf16.msra.mxu0 %v991
    %1137 = vmatprep.subr.bf16.mxu0 0
    %1138 = vmatpush2.bf16.msra.mxu0 0
    %1139 = vmatprep.subr.bf16.mxu0 0
    %1140 = vmatpush2.bf16.msra.mxu0 0
    %1141 = vmatprep.subr.bf16.mxu0 0
    %1142 = vmatpush2.bf16.msra.mxu0 0
    %1143 = vmatprep.subr.bf16.mxu0 0
    %1144 = vmatpush2.bf16.msra.mxu0 0
    %1145 = vmatprep.subr.bf16.mxu0 0
    %1146 = vmatpush2.bf16.msra.mxu0 0
    %1147 = vmatprep.subr.bf16.mxu0 0
    %1148 = vmatpush2.bf16.msra.mxu0 0
    %1149 = vmatprep.subr.bf16.mxu0 0
    %1150 = vmatpush2.bf16.msra.mxu0 0
    %1151 = vmatprep.subr.bf16.mxu0 0
    %1152 = vmatpush2.bf16.msra.mxu0 0
    %1153 = vmatprep.mubr.bf16.mxu0 0
    %1154 = vmatmul.mubr.bf16.gmra.mxu0 %v187
    %v1155 = vpop.f32.mrf.mxu0
    %v1156 = vadd.f32 %v1115, %v1155
    %v1157 = vpop.f32.mrf.mxu0
    %v1158 = vpop.f32.mrf.mxu0
    %v1159 = vadd.f32 %v1118, %v1158
    %v1160 = vpop.f32.mrf.mxu0
    %1161 = vdwg.mxu0
    %v1162 = vld [vmem:[#allocation2] sm:$0xfc]
    %v1163 = vld [vmem:[#allocation2 + $0x8] sm:$0xfc]
    %v1164 = vld [vmem:[#allocation2 + $0x10] sm:$0xfc]
    %v1165 = vld [vmem:[#allocation2 + $0x18] sm:$0xfc]
    %v1166 = vld [vmem:[#allocation2 + $0x20] sm:$0xfc]
    %v1167 = vld [vmem:[#allocation2 + $0x28] sm:$0x3]
    %v1168 = vld [vmem:[#allocation2 + $0x30] sm:$0x3]
    %v1169 = vld [vmem:[#allocation2 + $0x38] sm:$0x3]
    %v1170 = vld [vmem:[#allocation2 + $0x40] sm:$0x3]
    %v1171 = vld [vmem:[#allocation2 + $0x48] sm:$0x3]
    %v1172 = vld [vmem:[#allocation2 + $0x28] sm:$0xf0]
    %v1173 = vld [vmem:[#allocation2 + $0x30] sm:$0xf0]
    %v1174 = vld [vmem:[#allocation2 + $0x38] sm:$0xf0]
    %v1175 = vld [vmem:[#allocation2 + $0x40] sm:$0xf0]
    %v1176 = vld [vmem:[#allocation2 + $0x48] sm:$0xf0]
    %v1177 = vld [vmem:[#allocation2 + $0x50] sm:$0xf]
    %v1178 = vld [vmem:[#allocation2 + $0x58] sm:$0xf]
    %v1179 = vld [vmem:[#allocation2 + $0x60] sm:$0xf]
    %v1180 = vld [vmem:[#allocation2 + $0x68] sm:$0xf]
    %v1181 = vld [vmem:[#allocation2 + $0x70] sm:$0xf]
    %v1192 = vrot.slane %v1162, 2
    %v1193 = vrot.slane %v1167, 2
    %v1194 = vsel %vm162, %v1192, %v1193
    %v1195 = vrot.slane %v1163, 2
    %v1196 = vrot.slane %v1168, 2
    %v1197 = vsel %vm162, %v1195, %v1196
    %v1198 = vrot.slane %v1164, 2
    %v1199 = vrot.slane %v1169, 2
    %v1200 = vsel %vm162, %v1198, %v1199
    %v1201 = vrot.slane %v1165, 2
    %v1202 = vrot.slane %v1170, 2
    %v1203 = vsel %vm162, %v1201, %v1202
    %v1204 = vrot.slane %v1166, 2
    %v1205 = vrot.slane %v1171, 2
    %v1206 = vsel %vm162, %v1204, %v1205
    %vm1222 = vcmask 1043456
    %v1223 = vrot.slane %v1172, 4
    %v1224 = vrot.slane %v1177, 4
    %v1225 = vsel %vm1222, %v1223, %v1224
    %v1226 = vrot.slane %v1173, 4
    %v1227 = vrot.slane %v1178, 4
    %v1228 = vsel %vm1222, %v1226, %v1227
    %v1229 = vrot.slane %v1174, 4
    %v1230 = vrot.slane %v1179, 4
    %v1231 = vsel %vm1222, %v1229, %v1230
    %v1232 = vrot.slane %v1175, 4
    %v1233 = vrot.slane %v1180, 4
    %v1234 = vsel %vm1222, %v1232, %v1233
    %v1235 = vrot.slane %v1176, 4
    %v1236 = vrot.slane %v1181, 4
    %v1237 = vsel %vm1222, %v1235, %v1236
    %v1243 = vpack.c.bf16 %v1225, %v1194
    %v1244 = vpack.c.bf16 %v1228, %v1197
    %v1245 = vpack.c.bf16 %v1231, %v1200
    %v1246 = vpack.c.bf16 %v1234, %v1203
    %v1247 = vpack.c.bf16 %v1237, %v1206
    %s1248 = scalar_lea.vmem [#allocation4], 640
    %v1249 = vld [vmem:[%s1248] sm:$0xf]
    %v1250 = vld [vmem:[%s1248 + $0x4] sm:$0xf]
    %v1251 = vld [vmem:[%s1248 + $0x8] sm:$0xf]
    %v1252 = vld [vmem:[%s1248 + $0xc] sm:$0xf]
    %v1253 = vld [vmem:[%s1248 + $0x10] sm:$0xf]
    %v1254 = vld [vmem:[%s1248 + $0x14] sm:$0xf]
    %v1255 = vld [vmem:[%s1248 + $0x18] sm:$0xf]
    %v1256 = vld [vmem:[%s1248 + $0x1c] sm:$0xf]
    %v1257 = vld [vmem:[%s1248 + $0x20] sm:$0xf]
    %v1258 = vld [vmem:[%s1248 + $0x24] sm:$0xf]
    %v1259 = vld [vmem:[%s1248 + $0x28] sm:$0xf]
    %v1260 = vld [vmem:[%s1248 + $0x2c] sm:$0xf]
    %v1261 = vld [vmem:[%s1248 + $0x30] sm:$0xf]
    %v1262 = vld [vmem:[%s1248 + $0x34] sm:$0xf]
    %v1263 = vld [vmem:[%s1248 + $0x38] sm:$0xf]
    %v1264 = vld [vmem:[%s1248 + $0x3c] sm:$0xf]
    %v1265 = vld [vmem:[%s1248 + $0x40] sm:$0xf]
    %v1266 = vld [vmem:[%s1248 + $0x44] sm:$0xf]
    %v1267 = vld [vmem:[%s1248 + $0x48] sm:$0xf]
    %v1268 = vld [vmem:[%s1248 + $0x4c] sm:$0xf]
    %v1269 = vld [vmem:[%s1248 + $0x50] sm:$0xf]
    %v1270 = vld [vmem:[%s1248 + $0x54] sm:$0xf]
    %v1271 = vld [vmem:[%s1248 + $0x58] sm:$0xf]
    %v1272 = vld [vmem:[%s1248 + $0x5c] sm:$0xf]
    %v1273 = vld [vmem:[%s1248 + $0x60] sm:$0xf]
    %v1274 = vld [vmem:[%s1248 + $0x64] sm:$0xf]
    %v1275 = vld [vmem:[%s1248 + $0x68] sm:$0xf]
    %v1276 = vld [vmem:[%s1248 + $0x6c] sm:$0xf]
    %v1277 = vld [vmem:[%s1248 + $0x70] sm:$0xf]
    %v1278 = vld [vmem:[%s1248 + $0x74] sm:$0xf]
    %v1279 = vld [vmem:[%s1248 + $0x78] sm:$0xf]
    %v1280 = vld [vmem:[%s1248 + $0x7c] sm:$0xf]
    %v1281 = vld [vmem:[%s1248 + $0x80] sm:$0xf]
    %v1282 = vld [vmem:[%s1248 + $0x84] sm:$0xf]
    %v1283 = vld [vmem:[%s1248 + $0x88] sm:$0xf]
    %v1284 = vld [vmem:[%s1248 + $0x8c] sm:$0xf]
    %v1285 = vld [vmem:[%s1248 + $0x90] sm:$0xf]
    %v1286 = vld [vmem:[%s1248 + $0x94] sm:$0xf]
    %v1287 = vld [vmem:[%s1248 + $0x98] sm:$0xf]
    %v1288 = vld [vmem:[%s1248 + $0x9c] sm:$0xf]
    %v1289 = vld [vmem:[%s1248 + $0xa0] sm:$0xf]
    %v1290 = vld [vmem:[%s1248 + $0xa4] sm:$0xf]
    %v1291 = vld [vmem:[%s1248 + $0xa8] sm:$0xf]
    %v1292 = vld [vmem:[%s1248 + $0xac] sm:$0xf]
    %v1293 = vld [vmem:[%s1248 + $0xb0] sm:$0xf]
    %v1294 = vld [vmem:[%s1248 + $0xb4] sm:$0xf]
    %v1295 = vld [vmem:[%s1248 + $0xb8] sm:$0xf]
    %v1296 = vld [vmem:[%s1248 + $0xbc] sm:$0xf]
    %v1297 = vld [vmem:[%s1248 + $0xc0] sm:$0xf]
    %v1298 = vld [vmem:[%s1248 + $0xc4] sm:$0xf]
    %v1299 = vld [vmem:[%s1248 + $0xc8] sm:$0xf]
    %v1300 = vld [vmem:[%s1248 + $0xcc] sm:$0xf]
    %v1301 = vld [vmem:[%s1248 + $0xd0] sm:$0xf]
    %v1302 = vld [vmem:[%s1248 + $0xd4] sm:$0xf]
    %v1303 = vld [vmem:[%s1248 + $0xd8] sm:$0xf]
    %v1304 = vld [vmem:[%s1248 + $0xdc] sm:$0xf]
    %v1305 = vld [vmem:[%s1248 + $0xe0] sm:$0xf]
    %v1306 = vld [vmem:[%s1248 + $0xe4] sm:$0xf]
    %v1307 = vld [vmem:[%s1248 + $0xe8] sm:$0xf]
    %v1308 = vld [vmem:[%s1248 + $0xec] sm:$0xf]
    %v1309 = vld [vmem:[%s1248 + $0xf0] sm:$0xf]
    %v1310 = vld [vmem:[%s1248 + $0xf4] sm:$0xf]
    %v1311 = vld [vmem:[%s1248 + $0xf8] sm:$0xf]
    %v1312 = vld [vmem:[%s1248 + $0xfc] sm:$0xf]
    %v1313 = vld [vmem:[%s1248 + $0x100] sm:$0xf]
    %v1314 = vld [vmem:[%s1248 + $0x104] sm:$0xf]
    %v1315 = vld [vmem:[%s1248 + $0x108] sm:$0xf]
    %v1316 = vld [vmem:[%s1248 + $0x10c] sm:$0xf]
    %v1317 = vld [vmem:[%s1248 + $0x110] sm:$0xf]
    %v1318 = vld [vmem:[%s1248 + $0x114] sm:$0xf]
    %v1319 = vld [vmem:[%s1248 + $0x118] sm:$0xf]
    %v1320 = vld [vmem:[%s1248 + $0x11c] sm:$0xf]
    %v1321 = vld [vmem:[%s1248 + $0x120] sm:$0xf]
    %v1322 = vld [vmem:[%s1248 + $0x124] sm:$0xf]
    %v1323 = vld [vmem:[%s1248 + $0x128] sm:$0xf]
    %v1324 = vld [vmem:[%s1248 + $0x12c] sm:$0xf]
    %v1325 = vld [vmem:[%s1248 + $0x130] sm:$0xf]
    %v1326 = vld [vmem:[%s1248 + $0x134] sm:$0xf]
    %v1327 = vld [vmem:[%s1248 + $0x138] sm:$0xf]
    %v1328 = vld [vmem:[%s1248 + $0x13c] sm:$0xf]
    %v1409 = vunpack.c.l.b16 %v1249
    %v1410 = vunpack.c.l.b16 %v1250
    %v1411 = vunpack.c.l.b16 %v1251
    %v1412 = vunpack.c.l.b16 %v1252
    %v1413 = vunpack.c.l.b16 %v1253
    %v1414 = vunpack.c.l.b16 %v1254
    %v1415 = vunpack.c.l.b16 %v1255
    %v1416 = vunpack.c.l.b16 %v1256
    %v1417 = vunpack.c.l.b16 %v1257
    %v1418 = vunpack.c.l.b16 %v1258
    %v1419 = vunpack.c.l.b16 %v1259
    %v1420 = vunpack.c.l.b16 %v1260
    %v1421 = vunpack.c.l.b16 %v1261
    %v1422 = vunpack.c.l.b16 %v1262
    %v1423 = vunpack.c.l.b16 %v1263
    %v1424 = vunpack.c.l.b16 %v1264
    %v1425 = vunpack.c.l.b16 %v1265
    %v1426 = vunpack.c.l.b16 %v1266
    %v1427 = vunpack.c.l.b16 %v1267
    %v1428 = vunpack.c.l.b16 %v1268
    %v1429 = vunpack.c.l.b16 %v1269
    %v1430 = vunpack.c.l.b16 %v1270
    %v1431 = vunpack.c.l.b16 %v1271
    %v1432 = vunpack.c.l.b16 %v1272
    %v1433 = vunpack.c.l.b16 %v1273
    %v1434 = vunpack.c.l.b16 %v1274
    %v1435 = vunpack.c.l.b16 %v1275
    %v1436 = vunpack.c.l.b16 %v1276
    %v1437 = vunpack.c.l.b16 %v1277
    %v1438 = vunpack.c.l.b16 %v1278
    %v1439 = vunpack.c.l.b16 %v1279
    %v1440 = vunpack.c.l.b16 %v1280
    %v1441 = vunpack.c.l.b16 %v1281
    %v1442 = vunpack.c.l.b16 %v1282
    %v1443 = vunpack.c.l.b16 %v1283
    %v1444 = vunpack.c.l.b16 %v1284
    %v1445 = vunpack.c.l.b16 %v1285
    %v1446 = vunpack.c.l.b16 %v1286
    %v1447 = vunpack.c.l.b16 %v1287
    %v1448 = vunpack.c.l.b16 %v1288
    %v1449 = vunpack.c.l.b16 %v1289
    %v1450 = vunpack.c.l.b16 %v1290
    %v1451 = vunpack.c.l.b16 %v1291
    %v1452 = vunpack.c.l.b16 %v1292
    %v1453 = vunpack.c.l.b16 %v1293
    %v1454 = vunpack.c.l.b16 %v1294
    %v1455 = vunpack.c.l.b16 %v1295
    %v1456 = vunpack.c.l.b16 %v1296
    %v1457 = vunpack.c.l.b16 %v1297
    %v1458 = vunpack.c.l.b16 %v1298
    %v1459 = vunpack.c.l.b16 %v1299
    %v1460 = vunpack.c.l.b16 %v1300
    %v1461 = vunpack.c.l.b16 %v1301
    %v1462 = vunpack.c.l.b16 %v1302
    %v1463 = vunpack.c.l.b16 %v1303
    %v1464 = vunpack.c.l.b16 %v1304
    %v1465 = vunpack.c.l.b16 %v1305
    %v1466 = vunpack.c.l.b16 %v1306
    %v1467 = vunpack.c.l.b16 %v1307
    %v1468 = vunpack.c.l.b16 %v1308
    %v1469 = vunpack.c.l.b16 %v1309
    %v1470 = vunpack.c.l.b16 %v1310
    %v1471 = vunpack.c.l.b16 %v1311
    %v1472 = vunpack.c.l.b16 %v1312
    %v1473 = vunpack.c.l.b16 %v1313
    %v1474 = vunpack.c.l.b16 %v1314
    %v1475 = vunpack.c.l.b16 %v1315
    %v1476 = vunpack.c.l.b16 %v1316
    %v1477 = vunpack.c.l.b16 %v1317
    %v1478 = vunpack.c.l.b16 %v1318
    %v1479 = vunpack.c.l.b16 %v1319
    %v1480 = vunpack.c.l.b16 %v1320
    %v1481 = vunpack.c.l.b16 %v1321
    %v1482 = vunpack.c.l.b16 %v1322
    %v1483 = vunpack.c.l.b16 %v1323
    %v1484 = vunpack.c.l.b16 %v1324
    %v1485 = vunpack.c.l.b16 %v1325
    %v1486 = vunpack.c.l.b16 %v1326
    %v1487 = vunpack.c.l.b16 %v1327
    %v1488 = vunpack.c.l.b16 %v1328
    %v1489 = vpack.c.b16 %v1410, %v1409
    %v1490 = vpack.c.b16 %v1412, %v1411
    %v1491 = vpack.c.b16 %v1414, %v1413
    %v1492 = vpack.c.b16 %v1416, %v1415
    %v1493 = vpack.c.b16 %v1418, %v1417
    %v1494 = vpack.c.b16 %v1420, %v1419
    %v1495 = vpack.c.b16 %v1422, %v1421
    %v1496 = vpack.c.b16 %v1424, %v1423
    %v1497 = vpack.c.b16 %v1426, %v1425
    %v1498 = vpack.c.b16 %v1428, %v1427
    %v1499 = vpack.c.b16 %v1430, %v1429
    %v1500 = vpack.c.b16 %v1432, %v1431
    %v1501 = vpack.c.b16 %v1434, %v1433
    %v1502 = vpack.c.b16 %v1436, %v1435
    %v1503 = vpack.c.b16 %v1438, %v1437
    %v1504 = vpack.c.b16 %v1440, %v1439
    %v1505 = vpack.c.b16 %v1442, %v1441
    %v1506 = vpack.c.b16 %v1444, %v1443
    %v1507 = vpack.c.b16 %v1446, %v1445
    %v1508 = vpack.c.b16 %v1448, %v1447
    %v1509 = vpack.c.b16 %v1450, %v1449
    %v1510 = vpack.c.b16 %v1452, %v1451
    %v1511 = vpack.c.b16 %v1454, %v1453
    %v1512 = vpack.c.b16 %v1456, %v1455
    %v1513 = vpack.c.b16 %v1458, %v1457
    %v1514 = vpack.c.b16 %v1460, %v1459
    %v1515 = vpack.c.b16 %v1462, %v1461
    %v1516 = vpack.c.b16 %v1464, %v1463
    %v1517 = vpack.c.b16 %v1466, %v1465
    %v1518 = vpack.c.b16 %v1468, %v1467
    %v1519 = vpack.c.b16 %v1470, %v1469
    %v1520 = vpack.c.b16 %v1472, %v1471
    %v1521 = vpack.c.b16 %v1474, %v1473
    %v1522 = vpack.c.b16 %v1476, %v1475
    %v1523 = vpack.c.b16 %v1478, %v1477
    %v1524 = vpack.c.b16 %v1480, %v1479
    %v1525 = vpack.c.b16 %v1482, %v1481
    %v1526 = vpack.c.b16 %v1484, %v1483
    %v1527 = vpack.c.b16 %v1486, %v1485
    %v1528 = vpack.c.b16 %v1488, %v1487
    %1569 = vmatprep.subr.bf16.mxu0 0
    %1570 = vmatpush1.bf16.msra.mxu0 %v1496
    %1571 = vmatprep.subr.bf16.mxu0 0
    %1572 = vmatpush1.bf16.msra.mxu0 %v1495
    %1573 = vmatprep.subr.bf16.mxu0 0
    %1574 = vmatpush1.bf16.msra.mxu0 %v1494
    %1575 = vmatprep.subr.bf16.mxu0 0
    %1576 = vmatpush1.bf16.msra.mxu0 %v1493
    %1577 = vmatprep.subr.bf16.mxu0 0
    %1578 = vmatpush1.bf16.msra.mxu0 %v1492
    %1579 = vmatprep.subr.bf16.mxu0 0
    %1580 = vmatpush1.bf16.msra.mxu0 %v1491
    %1581 = vmatprep.subr.bf16.mxu0 0
    %1582 = vmatpush1.bf16.msra.mxu0 %v1490
    %1583 = vmatprep.subr.bf16.mxu0 0
    %1584 = vmatpush1.bf16.msra.mxu0 %v1489
    %1585 = vmatprep.subr.bf16.mxu0 0
    %1586 = vmatpush2.bf16.msra.mxu0 %v1504
    %1587 = vmatprep.subr.bf16.mxu0 0
    %1588 = vmatpush2.bf16.msra.mxu0 %v1503
    %1589 = vmatprep.subr.bf16.mxu0 0
    %1590 = vmatpush2.bf16.msra.mxu0 %v1502
    %1591 = vmatprep.subr.bf16.mxu0 0
    %1592 = vmatpush2.bf16.msra.mxu0 %v1501
    %1593 = vmatprep.subr.bf16.mxu0 0
    %1594 = vmatpush2.bf16.msra.mxu0 %v1500
    %1595 = vmatprep.subr.bf16.mxu0 0
    %1596 = vmatpush2.bf16.msra.mxu0 %v1499
    %1597 = vmatprep.subr.bf16.mxu0 0
    %1598 = vmatpush2.bf16.msra.mxu0 %v1498
    %1599 = vmatprep.subr.bf16.mxu0 0
    %1600 = vmatpush2.bf16.msra.mxu0 %v1497
    %1601 = vmatprep.mubr.bf16.mxu0 %v1244
    %1602 = vmatmul.mubr.bf16.gmra.mxu0 %v1243
    %v1603 = vpop.f32.mrf.mxu0
    %v1604 = vadd.f32 0.0, %v1603
    %v1605 = vpop.f32.mrf.mxu0
    %v1606 = vpop.f32.mrf.mxu0
    %v1607 = vadd.f32 0.0, %v1606
    %v1608 = vpop.f32.mrf.mxu0
    %1609 = vdwg.mxu0
    %1610 = vmatprep.subr.bf16.mxu0 0
    %1611 = vmatpush1.bf16.msra.mxu0 %v1512
    %1612 = vmatprep.subr.bf16.mxu0 0
    %1613 = vmatpush1.bf16.msra.mxu0 %v1511
    %1614 = vmatprep.subr.bf16.mxu0 0
    %1615 = vmatpush1.bf16.msra.mxu0 %v1510
    %1616 = vmatprep.subr.bf16.mxu0 0
    %1617 = vmatpush1.bf16.msra.mxu0 %v1509
    %1618 = vmatprep.subr.bf16.mxu0 0
    %1619 = vmatpush1.bf16.msra.mxu0 %v1508
    %1620 = vmatprep.subr.bf16.mxu0 0
    %1621 = vmatpush1.bf16.msra.mxu0 %v1507
    %1622 = vmatprep.subr.bf16.mxu0 0
    %1623 = vmatpush1.bf16.msra.mxu0 %v1506
    %1624 = vmatprep.subr.bf16.mxu0 0
    %1625 = vmatpush1.bf16.msra.mxu0 %v1505
    %1626 = vmatprep.subr.bf16.mxu0 0
    %1627 = vmatpush2.bf16.msra.mxu0 %v1520
    %1628 = vmatprep.subr.bf16.mxu0 0
    %1629 = vmatpush2.bf16.msra.mxu0 %v1519
    %1630 = vmatprep.subr.bf16.mxu0 0
    %1631 = vmatpush2.bf16.msra.mxu0 %v1518
    %1632 = vmatprep.subr.bf16.mxu0 0
    %1633 = vmatpush2.bf16.msra.mxu0 %v1517
    %1634 = vmatprep.subr.bf16.mxu0 0
    %1635 = vmatpush2.bf16.msra.mxu0 %v1516
    %1636 = vmatprep.subr.bf16.mxu0 0
    %1637 = vmatpush2.bf16.msra.mxu0 %v1515
    %1638 = vmatprep.subr.bf16.mxu0 0
    %1639 = vmatpush2.bf16.msra.mxu0 %v1514
    %1640 = vmatprep.subr.bf16.mxu0 0
    %1641 = vmatpush2.bf16.msra.mxu0 %v1513
    %1642 = vmatprep.mubr.bf16.mxu0 %v1246
    %1643 = vmatmul.mubr.bf16.gmra.mxu0 %v1245
    %v1644 = vpop.f32.mrf.mxu0
    %v1645 = vadd.f32 %v1604, %v1644
    %v1646 = vpop.f32.mrf.mxu0
    %v1647 = vpop.f32.mrf.mxu0
    %v1648 = vadd.f32 %v1607, %v1647
    %v1649 = vpop.f32.mrf.mxu0
    %1650 = vdwg.mxu0
    %1651 = vmatprep.subr.bf16.mxu0 0
    %1652 = vmatpush1.bf16.msra.mxu0 %v1528
    %1653 = vmatprep.subr.bf16.mxu0 0
    %1654 = vmatpush1.bf16.msra.mxu0 %v1527
    %1655 = vmatprep.subr.bf16.mxu0 0
    %1656 = vmatpush1.bf16.msra.mxu0 %v1526
    %1657 = vmatprep.subr.bf16.mxu0 0
    %1658 = vmatpush1.bf16.msra.mxu0 %v1525
    %1659 = vmatprep.subr.bf16.mxu0 0
    %1660 = vmatpush1.bf16.msra.mxu0 %v1524
    %1661 = vmatprep.subr.bf16.mxu0 0
    %1662 = vmatpush1.bf16.msra.mxu0 %v1523
    %1663 = vmatprep.subr.bf16.mxu0 0
    %1664 = vmatpush1.bf16.msra.mxu0 %v1522
    %1665 = vmatprep.subr.bf16.mxu0 0
    %1666 = vmatpush1.bf16.msra.mxu0 %v1521
    %1667 = vmatprep.subr.bf16.mxu0 0
    %1668 = vmatpush2.bf16.msra.mxu0 0
    %1669 = vmatprep.subr.bf16.mxu0 0
    %1670 = vmatpush2.bf16.msra.mxu0 0
    %1671 = vmatprep.subr.bf16.mxu0 0
    %1672 = vmatpush2.bf16.msra.mxu0 0
    %1673 = vmatprep.subr.bf16.mxu0 0
    %1674 = vmatpush2.bf16.msra.mxu0 0
    %1675 = vmatprep.subr.bf16.mxu0 0
    %1676 = vmatpush2.bf16.msra.mxu0 0
    %1677 = vmatprep.subr.bf16.mxu0 0
    %1678 = vmatpush2.bf16.msra.mxu0 0
    %1679 = vmatprep.subr.bf16.mxu0 0
    %1680 = vmatpush2.bf16.msra.mxu0 0
    %1681 = vmatprep.subr.bf16.mxu0 0
    %1682 = vmatpush2.bf16.msra.mxu0 0
    %1683 = vmatprep.mubr.bf16.mxu0 0
    %1684 = vmatmul.mubr.bf16.gmra.mxu0 %v1247
    %v1685 = vpop.f32.mrf.mxu0
    %v1686 = vadd.f32 %v1645, %v1685
    %v1687 = vpop.f32.mrf.mxu0
    %v1688 = vpop.f32.mrf.mxu0
    %v1689 = vadd.f32 %v1648, %v1688
    %v1690 = vpop.f32.mrf.mxu0
    %1691 = vdwg.mxu0
    %v1692 = vadd.f32 %v1156, %v1686
    %v1693 = vadd.f32 %v1159, %v1689
    %v1694 = vld [vmem:[%s4] sm:$0x1]
    %v1695 = vlaneseq
    %v1696 = vshrl.u32 %v1695, 7
    %v1697 = vsub.s32 0, %v1696
    %v1698 = vrot.slane %v1694, %v1697
    %v1699 = vadd.f32 %v1692, %v1698
    %v1700 = vadd.f32 %v1693, %v1698
    %vm1701 = vcmask 516096
    %1702 = vst.msk [vmem:[#allocation3] sm:$0x1] %vm1701, 0.0
    %1703 = vst.msk [vmem:[#allocation3 + $0x9] sm:$0x1] %vm1701, 0.0
    %vm1704 = vcmask 523264
    %1705 = vst.msk [vmem:[#allocation3 + $0x1] sm:$0xff] %vm1704, %v1699
    %1706 = vst.msk [vmem:[#allocation3 + $0xa] sm:$0x1] %vm1701, 0.0
    %1707 = vst.msk [vmem:[#allocation3 + $0x13] sm:$0x1] %vm1701, 0.0
    %1708 = vst.msk [vmem:[#allocation3 + $0xb] sm:$0xff] %vm1704, %v1700
    %s1709 = scalar_lea.vmem [#allocation3], 1
    %v1710 = vld [vmem:[%s1709] ss:$2 sm:$0xf]
    %s1711 = scalar_lea.vmem [#allocation3], 11
    %v1712 = vld [vmem:[%s1711] ss:$2 sm:$0xf]
    %v1714 = vrot.slane %v1712, 4
    %v1716 = vsel %vm1222, %v1710, %v1714
    %v1717 = vpack.c.bf16 %v1716, %v1716
    %v1718 = vld [vmem:[%s3] sm:$0xf]
    %v1719 = vld [vmem:[%s3 + $0x4] sm:$0xf]
    %v1720 = vld [vmem:[%s3 + $0x8] sm:$0xf]
    %v1721 = vld [vmem:[%s3 + $0xc] sm:$0xf]
    %v1722 = vld [vmem:[%s3 + $0x10] sm:$0xf]
    %v1723 = vld [vmem:[%s3 + $0x14] sm:$0xf]
    %v1724 = vld [vmem:[%s3 + $0x18] sm:$0xf]
    %v1725 = vld [vmem:[%s3 + $0x1c] sm:$0xf]
    %v1726 = vld [vmem:[%s4 + $0x19] sm:$0x1]
    %v1727 = vlaneseq
    %v1728 = vshrl.u32 %v1727, 7
    %v1729 = vsub.s32 0, %v1728
    %v1730 = vrot.slane %v1726, %v1729
    %v1739 = vunpack.c.l.b16 %v1718
    %v1740 = vunpack.c.l.b16 %v1719
    %v1741 = vunpack.c.l.b16 %v1720
    %v1742 = vunpack.c.l.b16 %v1721
    %v1743 = vunpack.c.l.b16 %v1722
    %v1744 = vunpack.c.l.b16 %v1723
    %v1745 = vunpack.c.l.b16 %v1724
    %v1746 = vunpack.c.l.b16 %v1725
    %v1747 = vpack.c.b16 %v1740, %v1739
    %v1748 = vpack.c.b16 %v1742, %v1741
    %v1749 = vpack.c.b16 %v1744, %v1743
    %v1750 = vpack.c.b16 %v1746, %v1745
    %v1756 = vsel %vm1704, %v1717, 0
    %1758 = vmatprep.subr.bf16.mxu0 0
    %1759 = vmatpush1.bf16.msra.mxu0 0
    %1760 = vmatprep.subr.bf16.mxu0 0
    %1761 = vmatpush1.bf16.msra.mxu0 0
    %1762 = vmatprep.subr.bf16.mxu0 0
    %1763 = vmatpush1.bf16.msra.mxu0 0
    %1764 = vmatprep.subr.bf16.mxu0 0
    %1765 = vmatpush1.bf16.msra.mxu0 0
    %1766 = vmatprep.subr.bf16.mxu0 0
    %1767 = vmatpush1.bf16.msra.mxu0 %v1750
    %1768 = vmatprep.subr.bf16.mxu0 0
    %1769 = vmatpush1.bf16.msra.mxu0 %v1749
    %1770 = vmatprep.subr.bf16.mxu0 0
    %1771 = vmatpush1.bf16.msra.mxu0 %v1748
    %1772 = vmatprep.subr.bf16.mxu0 0
    %1773 = vmatpush1.bf16.msra.mxu0 %v1747
    %1774 = vmatprep.subr.bf16.mxu0 0
    %1775 = vmatpush2.bf16.msra.mxu0 0
    %1776 = vmatprep.subr.bf16.mxu0 0
    %1777 = vmatpush2.bf16.msra.mxu0 0
    %1778 = vmatprep.subr.bf16.mxu0 0
    %1779 = vmatpush2.bf16.msra.mxu0 0
    %1780 = vmatprep.subr.bf16.mxu0 0
    %1781 = vmatpush2.bf16.msra.mxu0 0
    %1782 = vmatprep.subr.bf16.mxu0 0
    %1783 = vmatpush2.bf16.msra.mxu0 0
    %1784 = vmatprep.subr.bf16.mxu0 0
    %1785 = vmatpush2.bf16.msra.mxu0 0
    %1786 = vmatprep.subr.bf16.mxu0 0
    %1787 = vmatpush2.bf16.msra.mxu0 0
    %1788 = vmatprep.subr.bf16.mxu0 0
    %1789 = vmatpush2.bf16.msra.mxu0 0
    %1790 = vmatprep.mubr.bf16.mxu0 0
    %1791 = vmatmul.mubr.bf16.gmra.mxu0 %v1756
    %v1792 = vpop.f32.mrf.mxu0
    %v1793 = vadd.f32 %v1730, %v1792
    %v1794 = vpop.f32.mrf.mxu0
    %v1795 = vpop.f32.mrf.mxu0
    %v1796 = vpop.f32.mrf.mxu0
    %1797 = vdwg.mxu0
    %v1798 = vld [vmem:[%s4 + $0x1] sm:$0x1]
    %v1799 = vlaneseq
    %v1800 = vshrl.u32 %v1799, 7
    %v1801 = vsub.s32 0, %v1800
    %v1802 = vrot.slane %v1798, %v1801
    %v1803 = vmul.f32 %v1699, %v1802
    %v1804 = vmul.f32 %v1700, %v1802
    %v1805 = vld [vmem:[%s4 + $0x2] sm:$0x1]
    %v1806 = vlaneseq
    %v1807 = vshrl.u32 %v1806, 7
    %v1808 = vsub.s32 0, %v1807
    %v1809 = vrot.slane %v1805, %v1808
    %v1810 = vadd.f32 %v1803, %v1809
    %v1811 = vadd.f32 %v1804, %v1809
    %v1812 = vmax.f32 %v1810, 0.0
    %v1813 = vmax.f32 %v1811, 0.0
    %v1814 = vld [vmem:[#allocation6] sm:$0xf]
    %v1815 = vld [vmem:[#allocation6 + $0x4] sm:$0xf]
    %v1816 = vld [vmem:[#allocation6 + $0x8] sm:$0xf]
    %v1817 = vld [vmem:[#allocation6 + $0xc] sm:$0xf]
    %v1818 = vld [vmem:[#allocation6 + $0x10] sm:$0xf]
    %v1819 = vld [vmem:[#allocation6 + $0x14] sm:$0xf]
    %v1820 = vld [vmem:[#allocation6 + $0x18] sm:$0xf]
    %v1821 = vld [vmem:[#allocation6 + $0x1c] sm:$0xf]
    %v1822 = vld [vmem:[#allocation6 + $0x20] sm:$0xf]
    %v1823 = vld [vmem:[#allocation6 + $0x24] sm:$0xf]
    %v1824 = vld [vmem:[#allocation6 + $0x28] sm:$0xf]
    %v1825 = vld [vmem:[#allocation6 + $0x2c] sm:$0xf]
    %v1826 = vld [vmem:[#allocation6 + $0x30] sm:$0xf]
    %v1827 = vld [vmem:[#allocation6 + $0x34] sm:$0xf]
    %v1828 = vld [vmem:[#allocation6 + $0x38] sm:$0xf]
    %v1829 = vld [vmem:[#allocation6 + $0x3c] sm:$0xf]
    %v1830 = vld [vmem:[#allocation6 + $0x40] sm:$0xf]
    %v1831 = vld [vmem:[#allocation6 + $0x44] sm:$0xf]
    %v1832 = vld [vmem:[#allocation6 + $0x48] sm:$0xf]
    %v1833 = vld [vmem:[#allocation6 + $0x4c] sm:$0xf]
    %v1834 = vld [vmem:[#allocation6 + $0x50] sm:$0xf]
    %v1835 = vld [vmem:[#allocation6 + $0x54] sm:$0xf]
    %v1836 = vld [vmem:[#allocation6 + $0x58] sm:$0xf]
    %v1837 = vld [vmem:[#allocation6 + $0x5c] sm:$0xf]
    %1838 = vst.msk [vmem:[#allocation3] sm:$0x1] %vm1701, 0.0
    %1839 = vst.msk [vmem:[#allocation3 + $0x9] sm:$0x1] %vm1701, 0.0
    %1840 = vst.msk [vmem:[#allocation3 + $0x1] sm:$0xff] %vm1704, %v1812
    %1841 = vst.msk [vmem:[#allocation3 + $0xa] sm:$0x1] %vm1701, 0.0
    %1842 = vst.msk [vmem:[#allocation3 + $0x13] sm:$0x1] %vm1701, 0.0
    %1843 = vst.msk [vmem:[#allocation3 + $0xb] sm:$0xff] %vm1704, %v1813
    %v1844 = vld [vmem:[#allocation3] ss:$2 sm:$0xf]
    %s1845 = scalar_lea.vmem [#allocation3], 10
    %v1846 = vld [vmem:[%s1845] ss:$2 sm:$0xf]
    %v1848 = vrot.slane %v1846, 4
    %v1850 = vsel %vm1222, %v1844, %v1848
    %v1851 = vld [vmem:[%s1709] ss:$2 sm:$0xf]
    %v1852 = vld [vmem:[%s1711] ss:$2 sm:$0xf]
    %v1854 = vrot.slane %v1852, 4
    %v1856 = vsel %vm1222, %v1851, %v1854
    %s1857 = scalar_lea.vmem [#allocation3], 2
    %v1858 = vld [vmem:[%s1857] ss:$2 sm:$0xf]
    %s1859 = scalar_lea.vmem [#allocation3], 12
    %v1860 = vld [vmem:[%s1859] ss:$2 sm:$0xf]
    %v1862 = vrot.slane %v1860, 4
    %v1864 = vsel %vm1222, %v1858, %v1862
    %1866 = vrot.lane.b32.xlu0 %v1856, 64
    %v1867 = vpop.permute.xlu0 %1866
    %v1869 = vsel %vm1704, %v1850, %v1867
    %v1870 = vpack.c.bf16 %v1869, %v1869
    %v1871 = vpack.c.bf16 %v1864, %v1864
    %v1896 = vunpack.c.l.b16 %v1814
    %v1897 = vunpack.c.l.b16 %v1815
    %v1898 = vunpack.c.l.b16 %v1816
    %v1899 = vunpack.c.l.b16 %v1817
    %v1900 = vunpack.c.l.b16 %v1818
    %v1901 = vunpack.c.l.b16 %v1819
    %v1902 = vunpack.c.l.b16 %v1820
    %v1903 = vunpack.c.l.b16 %v1821
    %v1904 = vunpack.c.l.b16 %v1822
    %v1905 = vunpack.c.l.b16 %v1823
    %v1906 = vunpack.c.l.b16 %v1824
    %v1907 = vunpack.c.l.b16 %v1825
    %v1908 = vunpack.c.l.b16 %v1826
    %v1909 = vunpack.c.l.b16 %v1827
    %v1910 = vunpack.c.l.b16 %v1828
    %v1911 = vunpack.c.l.b16 %v1829
    %v1912 = vunpack.c.l.b16 %v1830
    %v1913 = vunpack.c.l.b16 %v1831
    %v1914 = vunpack.c.l.b16 %v1832
    %v1915 = vunpack.c.l.b16 %v1833
    %v1916 = vunpack.c.l.b16 %v1834
    %v1917 = vunpack.c.l.b16 %v1835
    %v1918 = vunpack.c.l.b16 %v1836
    %v1919 = vunpack.c.l.b16 %v1837
    %v1920 = vpack.c.b16 %v1897, %v1896
    %v1921 = vpack.c.b16 %v1899, %v1898
    %v1922 = vpack.c.b16 %v1901, %v1900
    %v1923 = vpack.c.b16 %v1903, %v1902
    %v1924 = vpack.c.b16 %v1905, %v1904
    %v1925 = vpack.c.b16 %v1907, %v1906
    %v1926 = vpack.c.b16 %v1909, %v1908
    %v1927 = vpack.c.b16 %v1911, %v1910
    %v1928 = vpack.c.b16 %v1913, %v1912
    %v1929 = vpack.c.b16 %v1915, %v1914
    %v1930 = vpack.c.b16 %v1917, %v1916
    %v1931 = vpack.c.b16 %v1919, %v1918
    %v1945 = vsel %vm1704, %v1871, 0
    %1947 = vmatprep.subr.bf16.mxu0 0
    %1948 = vmatpush1.bf16.msra.mxu0 %v1927
    %1949 = vmatprep.subr.bf16.mxu0 0
    %1950 = vmatpush1.bf16.msra.mxu0 %v1926
    %1951 = vmatprep.subr.bf16.mxu0 0
    %1952 = vmatpush1.bf16.msra.mxu0 %v1925
    %1953 = vmatprep.subr.bf16.mxu0 0
    %1954 = vmatpush1.bf16.msra.mxu0 %v1924
    %1955 = vmatprep.subr.bf16.mxu0 0
    %1956 = vmatpush1.bf16.msra.mxu0 %v1923
    %1957 = vmatprep.subr.bf16.mxu0 0
    %1958 = vmatpush1.bf16.msra.mxu0 %v1922
    %1959 = vmatprep.subr.bf16.mxu0 0
    %1960 = vmatpush1.bf16.msra.mxu0 %v1921
    %1961 = vmatprep.subr.bf16.mxu0 0
    %1962 = vmatpush1.bf16.msra.mxu0 %v1920
    %1963 = vmatprep.subr.bf16.mxu0 0
    %1964 = vmatpush2.bf16.msra.mxu0 0
    %1965 = vmatprep.subr.bf16.mxu0 0
    %1966 = vmatpush2.bf16.msra.mxu0 0
    %1967 = vmatprep.subr.bf16.mxu0 0
    %1968 = vmatpush2.bf16.msra.mxu0 0
    %1969 = vmatprep.subr.bf16.mxu0 0
    %1970 = vmatpush2.bf16.msra.mxu0 0
    %1971 = vmatprep.subr.bf16.mxu0 0
    %1972 = vmatpush2.bf16.msra.mxu0 %v1931
    %1973 = vmatprep.subr.bf16.mxu0 0
    %1974 = vmatpush2.bf16.msra.mxu0 %v1930
    %1975 = vmatprep.subr.bf16.mxu0 0
    %1976 = vmatpush2.bf16.msra.mxu0 %v1929
    %1977 = vmatprep.subr.bf16.mxu0 0
    %1978 = vmatpush2.bf16.msra.mxu0 %v1928
    %1979 = vmatprep.mubr.bf16.mxu0 %v1945
    %1980 = vmatmul.mubr.bf16.gmra.mxu0 %v1870
    %v1981 = vpop.f32.mrf.mxu0
    %v1982 = vadd.f32 0.0, %v1981
    %v1983 = vpop.f32.mrf.mxu0
    %v1984 = vpop.f32.mrf.mxu0
    %v1985 = vpop.f32.mrf.mxu0
    %1986 = vdwg.mxu0
    %v1987 = vld [vmem:[%s4 + $0x3] sm:$0x1]
    %v1988 = vlaneseq
    %v1989 = vshrl.u32 %v1988, 7
    %v1990 = vsub.s32 0, %v1989
    %v1991 = vrot.slane %v1987, %v1990
    %v1992 = vmul.f32 %v1982, %v1991
    %v1993 = vld [vmem:[%s4 + $0x4] sm:$0x1]
    %v1994 = vlaneseq
    %v1995 = vshrl.u32 %v1994, 7
    %v1996 = vsub.s32 0, %v1995
    %v1997 = vrot.slane %v1993, %v1996
    %v1998 = vadd.f32 %v1992, %v1997
    %v1999 = vmax.f32 %v1998, 0.0
    %s2000 = scalar_lea.vmem [#allocation6], 96
    %v2001 = vld [vmem:[%s2000] sm:$0xf]
    %v2002 = vld [vmem:[%s2000 + $0x4] sm:$0xf]
    %v2003 = vld [vmem:[%s2000 + $0x8] sm:$0xf]
    %v2004 = vld [vmem:[%s2000 + $0xc] sm:$0xf]
    %v2005 = vld [vmem:[%s2000 + $0x10] sm:$0xf]
    %v2006 = vld [vmem:[%s2000 + $0x14] sm:$0xf]
    %v2007 = vld [vmem:[%s2000 + $0x18] sm:$0xf]
    %v2008 = vld [vmem:[%s2000 + $0x1c] sm:$0xf]
    %v2009 = vld [vmem:[%s2000 + $0x20] sm:$0xf]
    %v2010 = vld [vmem:[%s2000 + $0x24] sm:$0xf]
    %v2011 = vld [vmem:[%s2000 + $0x28] sm:$0xf]
    %v2012 = vld [vmem:[%s2000 + $0x2c] sm:$0xf]
    %v2013 = vld [vmem:[%s2000 + $0x30] sm:$0xf]
    %v2014 = vld [vmem:[%s2000 + $0x34] sm:$0xf]
    %v2015 = vld [vmem:[%s2000 + $0x38] sm:$0xf]
    %v2016 = vld [vmem:[%s2000 + $0x3c] sm:$0xf]
    %v2017 = vld [vmem:[%s2000 + $0x40] sm:$0xf]
    %v2018 = vld [vmem:[%s2000 + $0x44] sm:$0xf]
    %v2019 = vld [vmem:[%s2000 + $0x48] sm:$0xf]
    %v2020 = vld [vmem:[%s2000 + $0x4c] sm:$0xf]
    %v2021 = vld [vmem:[%s2000 + $0x50] sm:$0xf]
    %v2022 = vld [vmem:[%s2000 + $0x54] sm:$0xf]
    %v2023 = vld [vmem:[%s2000 + $0x58] sm:$0xf]
    %v2024 = vld [vmem:[%s2000 + $0x5c] sm:$0xf]
    %2025 = vst.msk [vmem:[#allocation3] sm:$0x1] %vm1701, 0.0
    %2026 = vst.msk [vmem:[#allocation3 + $0x5] sm:$0x1] %vm1701, 0.0
    %vm2027 = vcmask 519168
    %2028 = vst.msk [vmem:[#allocation3 + $0x1] sm:$0xf] %vm2027, %v1999
    %2029 = vst.msk [vmem:[#allocation3 + $0xa] sm:$0x1] %vm1701, 0.0
    %2030 = vst.msk [vmem:[#allocation3 + $0xf] sm:$0x1] %vm1701, 0.0
    %vm2031 = vcmask 523268
    %2032 = vst.msk [vmem:[#allocation3 + $0x7] sm:$0xf0] %vm2031, %v1999
    %v2033 = vld [vmem:[#allocation3] sm:$0xf]
    %v2034 = vld [vmem:[#allocation3 + $0xa] sm:$0xf]
    %v2036 = vrot.slane %v2034, 4
    %v2038 = vsel %vm1222, %v2033, %v2036
    %v2039 = vld [vmem:[#allocation3 + $0x2] sm:$0xf]
    %v2040 = vld [vmem:[#allocation3 + $0xc] sm:$0xf]
    %v2042 = vrot.slane %v2040, 4
    %v2044 = vsel %vm1222, %v2039, %v2042
    %2046 = vrot.lane.b32.xlu0 %v1999, 64
    %v2047 = vpop.permute.xlu0 %2046
    %v2049 = vsel %vm1704, %v2038, %v2047
    %v2050 = vpack.c.bf16 %v2049, %v2049
    %v2051 = vpack.c.bf16 %v2044, %v2044
    %v2076 = vunpack.c.l.b16 %v2001
    %v2077 = vunpack.c.l.b16 %v2002
    %v2078 = vunpack.c.l.b16 %v2003
    %v2079 = vunpack.c.l.b16 %v2004
    %v2080 = vunpack.c.l.b16 %v2005
    %v2081 = vunpack.c.l.b16 %v2006
    %v2082 = vunpack.c.l.b16 %v2007
    %v2083 = vunpack.c.l.b16 %v2008
    %v2084 = vunpack.c.l.b16 %v2009
    %v2085 = vunpack.c.l.b16 %v2010
    %v2086 = vunpack.c.l.b16 %v2011
    %v2087 = vunpack.c.l.b16 %v2012
    %v2088 = vunpack.c.l.b16 %v2013
    %v2089 = vunpack.c.l.b16 %v2014
    %v2090 = vunpack.c.l.b16 %v2015
    %v2091 = vunpack.c.l.b16 %v2016
    %v2092 = vunpack.c.l.b16 %v2017
    %v2093 = vunpack.c.l.b16 %v2018
    %v2094 = vunpack.c.l.b16 %v2019
    %v2095 = vunpack.c.l.b16 %v2020
    %v2096 = vunpack.c.l.b16 %v2021
    %v2097 = vunpack.c.l.b16 %v2022
    %v2098 = vunpack.c.l.b16 %v2023
    %v2099 = vunpack.c.l.b16 %v2024
    %v2100 = vpack.c.b16 %v2077, %v2076
    %v2101 = vpack.c.b16 %v2079, %v2078
    %v2102 = vpack.c.b16 %v2081, %v2080
    %v2103 = vpack.c.b16 %v2083, %v2082
    %v2104 = vpack.c.b16 %v2085, %v2084
    %v2105 = vpack.c.b16 %v2087, %v2086
    %v2106 = vpack.c.b16 %v2089, %v2088
    %v2107 = vpack.c.b16 %v2091, %v2090
    %v2108 = vpack.c.b16 %v2093, %v2092
    %v2109 = vpack.c.b16 %v2095, %v2094
    %v2110 = vpack.c.b16 %v2097, %v2096
    %v2111 = vpack.c.b16 %v2099, %v2098
    %v2125 = vsel %vm1704, %v2051, 0
    %2127 = vmatprep.subr.bf16.mxu0 0
    %2128 = vmatpush1.bf16.msra.mxu0 %v2107
    %2129 = vmatprep.subr.bf16.mxu0 0
    %2130 = vmatpush1.bf16.msra.mxu0 %v2106
    %2131 = vmatprep.subr.bf16.mxu0 0
    %2132 = vmatpush1.bf16.msra.mxu0 %v2105
    %2133 = vmatprep.subr.bf16.mxu0 0
    %2134 = vmatpush1.bf16.msra.mxu0 %v2104
    %2135 = vmatprep.subr.bf16.mxu0 0
    %2136 = vmatpush1.bf16.msra.mxu0 %v2103
    %2137 = vmatprep.subr.bf16.mxu0 0
    %2138 = vmatpush1.bf16.msra.mxu0 %v2102
    %2139 = vmatprep.subr.bf16.mxu0 0
    %2140 = vmatpush1.bf16.msra.mxu0 %v2101
    %2141 = vmatprep.subr.bf16.mxu0 0
    %2142 = vmatpush1.bf16.msra.mxu0 %v2100
    %2143 = vmatprep.subr.bf16.mxu0 0
    %2144 = vmatpush2.bf16.msra.mxu0 0
    %2145 = vmatprep.subr.bf16.mxu0 0
    %2146 = vmatpush2.bf16.msra.mxu0 0
    %2147 = vmatprep.subr.bf16.mxu0 0
    %2148 = vmatpush2.bf16.msra.mxu0 0
    %2149 = vmatprep.subr.bf16.mxu0 0
    %2150 = vmatpush2.bf16.msra.mxu0 0
    %2151 = vmatprep.subr.bf16.mxu0 0
    %2152 = vmatpush2.bf16.msra.mxu0 %v2111
    %2153 = vmatprep.subr.bf16.mxu0 0
    %2154 = vmatpush2.bf16.msra.mxu0 %v2110
    %2155 = vmatprep.subr.bf16.mxu0 0
    %2156 = vmatpush2.bf16.msra.mxu0 %v2109
    %2157 = vmatprep.subr.bf16.mxu0 0
    %2158 = vmatpush2.bf16.msra.mxu0 %v2108
    %2159 = vmatprep.mubr.bf16.mxu0 %v2125
    %2160 = vmatmul.mubr.bf16.gmra.mxu0 %v2050
    %v2161 = vpop.f32.mrf.mxu0
    %v2162 = vadd.f32 %v1793, %v2161
    %v2163 = vpop.f32.mrf.mxu0
    %v2164 = vpop.f32.mrf.mxu0
    %v2165 = vpop.f32.mrf.mxu0
    %2166 = vdwg.mxu0
    %v2167 = vld [vmem:[%s4 + $0x5] sm:$0x1]
    %v2168 = vlaneseq
    %v2169 = vshrl.u32 %v2168, 7
    %v2170 = vsub.s32 0, %v2169
    %v2171 = vrot.slane %v2167, %v2170
    %v2172 = vmul.f32 %v2162, %v2171
    %v2173 = vld [vmem:[%s4 + $0x6] sm:$0x1]
    %v2174 = vlaneseq
    %v2175 = vshrl.u32 %v2174, 7
    %v2176 = vsub.s32 0, %v2175
    %v2177 = vrot.slane %v2173, %v2176
    %v2178 = vadd.f32 %v2172, %v2177
    %v2179 = vmax.f32 %v2178, 0.0
    %s2180 = scalar_lea.vmem [#allocation6], 192
    %v2181 = vld [vmem:[%s2180] sm:$0xf]
    %v2182 = vld [vmem:[%s2180 + $0x4] sm:$0xf]
    %v2183 = vld [vmem:[%s2180 + $0x8] sm:$0xf]
    %v2184 = vld [vmem:[%s2180 + $0xc] sm:$0xf]
    %v2185 = vld [vmem:[%s2180 + $0x10] sm:$0xf]
    %v2186 = vld [vmem:[%s2180 + $0x14] sm:$0xf]
    %v2187 = vld [vmem:[%s2180 + $0x18] sm:$0xf]
    %v2188 = vld [vmem:[%s2180 + $0x1c] sm:$0xf]
    %v2189 = vld [vmem:[%s2180 + $0x20] sm:$0xf]
    %v2190 = vld [vmem:[%s2180 + $0x24] sm:$0xf]
    %v2191 = vld [vmem:[%s2180 + $0x28] sm:$0xf]
    %v2192 = vld [vmem:[%s2180 + $0x2c] sm:$0xf]
    %v2193 = vld [vmem:[%s2180 + $0x30] sm:$0xf]
    %v2194 = vld [vmem:[%s2180 + $0x34] sm:$0xf]
    %v2195 = vld [vmem:[%s2180 + $0x38] sm:$0xf]
    %v2196 = vld [vmem:[%s2180 + $0x3c] sm:$0xf]
    %v2197 = vld [vmem:[%s2180 + $0x40] sm:$0xf]
    %v2198 = vld [vmem:[%s2180 + $0x44] sm:$0xf]
    %v2199 = vld [vmem:[%s2180 + $0x48] sm:$0xf]
    %v2200 = vld [vmem:[%s2180 + $0x4c] sm:$0xf]
    %v2201 = vld [vmem:[%s2180 + $0x50] sm:$0xf]
    %v2202 = vld [vmem:[%s2180 + $0x54] sm:$0xf]
    %v2203 = vld [vmem:[%s2180 + $0x58] sm:$0xf]
    %v2204 = vld [vmem:[%s2180 + $0x5c] sm:$0xf]
    %2205 = vst.msk [vmem:[#allocation3] sm:$0x1] %vm1701, 0.0
    %2206 = vst.msk [vmem:[#allocation3 + $0x5] sm:$0x1] %vm1701, 0.0
    %2207 = vst.msk [vmem:[#allocation3 + $0x1] sm:$0xf] %vm2027, %v2179
    %2208 = vst.msk [vmem:[#allocation3 + $0xa] sm:$0x1] %vm1701, 0.0
    %2209 = vst.msk [vmem:[#allocation3 + $0xf] sm:$0x1] %vm1701, 0.0
    %2210 = vst.msk [vmem:[#allocation3 + $0x7] sm:$0xf0] %vm2031, %v2179
    %v2211 = vld [vmem:[#allocation3] sm:$0xf]
    %v2212 = vld [vmem:[#allocation3 + $0xa] sm:$0xf]
    %v2214 = vrot.slane %v2212, 4
    %v2216 = vsel %vm1222, %v2211, %v2214
    %v2217 = vld [vmem:[#allocation3 + $0x2] sm:$0xf]
    %v2218 = vld [vmem:[#allocation3 + $0xc] sm:$0xf]
    %v2220 = vrot.slane %v2218, 4
    %v2222 = vsel %vm1222, %v2217, %v2220
    %2224 = vrot.lane.b32.xlu0 %v2179, 64
    %v2225 = vpop.permute.xlu0 %2224
    %v2227 = vsel %vm1704, %v2216, %v2225
    %v2228 = vpack.c.bf16 %v2227, %v2227
    %v2229 = vpack.c.bf16 %v2222, %v2222
    %v2254 = vunpack.c.l.b16 %v2181
    %v2255 = vunpack.c.l.b16 %v2182
    %v2256 = vunpack.c.l.b16 %v2183
    %v2257 = vunpack.c.l.b16 %v2184
    %v2258 = vunpack.c.l.b16 %v2185
    %v2259 = vunpack.c.l.b16 %v2186
    %v2260 = vunpack.c.l.b16 %v2187
    %v2261 = vunpack.c.l.b16 %v2188
    %v2262 = vunpack.c.l.b16 %v2189
    %v2263 = vunpack.c.l.b16 %v2190
    %v2264 = vunpack.c.l.b16 %v2191
    %v2265 = vunpack.c.l.b16 %v2192
    %v2266 = vunpack.c.l.b16 %v2193
    %v2267 = vunpack.c.l.b16 %v2194
    %v2268 = vunpack.c.l.b16 %v2195
    %v2269 = vunpack.c.l.b16 %v2196
    %v2270 = vunpack.c.l.b16 %v2197
    %v2271 = vunpack.c.l.b16 %v2198
    %v2272 = vunpack.c.l.b16 %v2199
    %v2273 = vunpack.c.l.b16 %v2200
    %v2274 = vunpack.c.l.b16 %v2201
    %v2275 = vunpack.c.l.b16 %v2202
    %v2276 = vunpack.c.l.b16 %v2203
    %v2277 = vunpack.c.l.b16 %v2204
    %v2278 = vpack.c.b16 %v2255, %v2254
    %v2279 = vpack.c.b16 %v2257, %v2256
    %v2280 = vpack.c.b16 %v2259, %v2258
    %v2281 = vpack.c.b16 %v2261, %v2260
    %v2282 = vpack.c.b16 %v2263, %v2262
    %v2283 = vpack.c.b16 %v2265, %v2264
    %v2284 = vpack.c.b16 %v2267, %v2266
    %v2285 = vpack.c.b16 %v2269, %v2268
    %v2286 = vpack.c.b16 %v2271, %v2270
    %v2287 = vpack.c.b16 %v2273, %v2272
    %v2288 = vpack.c.b16 %v2275, %v2274
    %v2289 = vpack.c.b16 %v2277, %v2276
    %v2303 = vsel %vm1704, %v2229, 0
    %2305 = vmatprep.subr.bf16.mxu0 0
    %2306 = vmatpush1.bf16.msra.mxu0 %v2285
    %2307 = vmatprep.subr.bf16.mxu0 0
    %2308 = vmatpush1.bf16.msra.mxu0 %v2284
    %2309 = vmatprep.subr.bf16.mxu0 0
    %2310 = vmatpush1.bf16.msra.mxu0 %v2283
    %2311 = vmatprep.subr.bf16.mxu0 0
    %2312 = vmatpush1.bf16.msra.mxu0 %v2282
    %2313 = vmatprep.subr.bf16.mxu0 0
    %2314 = vmatpush1.bf16.msra.mxu0 %v2281
    %2315 = vmatprep.subr.bf16.mxu0 0
    %2316 = vmatpush1.bf16.msra.mxu0 %v2280
    %2317 = vmatprep.subr.bf16.mxu0 0
    %2318 = vmatpush1.bf16.msra.mxu0 %v2279
    %2319 = vmatprep.subr.bf16.mxu0 0
    %2320 = vmatpush1.bf16.msra.mxu0 %v2278
    %2321 = vmatprep.subr.bf16.mxu0 0
    %2322 = vmatpush2.bf16.msra.mxu0 0
    %2323 = vmatprep.subr.bf16.mxu0 0
    %2324 = vmatpush2.bf16.msra.mxu0 0
    %2325 = vmatprep.subr.bf16.mxu0 0
    %2326 = vmatpush2.bf16.msra.mxu0 0
    %2327 = vmatprep.subr.bf16.mxu0 0
    %2328 = vmatpush2.bf16.msra.mxu0 0
    %2329 = vmatprep.subr.bf16.mxu0 0
    %2330 = vmatpush2.bf16.msra.mxu0 %v2289
    %2331 = vmatprep.subr.bf16.mxu0 0
    %2332 = vmatpush2.bf16.msra.mxu0 %v2288
    %2333 = vmatprep.subr.bf16.mxu0 0
    %2334 = vmatpush2.bf16.msra.mxu0 %v2287
    %2335 = vmatprep.subr.bf16.mxu0 0
    %2336 = vmatpush2.bf16.msra.mxu0 %v2286
    %2337 = vmatprep.mubr.bf16.mxu0 %v2303
    %2338 = vmatmul.mubr.bf16.gmra.mxu0 %v2228
    %v2339 = vpop.f32.mrf.mxu0
    %v2340 = vadd.f32 0.0, %v2339
    %v2341 = vpop.f32.mrf.mxu0
    %v2342 = vpop.f32.mrf.mxu0
    %v2343 = vpop.f32.mrf.mxu0
    %2344 = vdwg.mxu0
    %v2345 = vld [vmem:[%s4 + $0x7] sm:$0x1]
    %v2346 = vlaneseq
    %v2347 = vshrl.u32 %v2346, 7
    %v2348 = vsub.s32 0, %v2347
    %v2349 = vrot.slane %v2345, %v2348
    %v2350 = vmul.f32 %v2340, %v2349
    %v2351 = vld [vmem:[%s4 + $0x8] sm:$0x1]
    %v2352 = vlaneseq
    %v2353 = vshrl.u32 %v2352, 7
    %v2354 = vsub.s32 0, %v2353
    %v2355 = vrot.slane %v2351, %v2354
    %v2356 = vadd.f32 %v2350, %v2355
    %v2357 = vmax.f32 %v2356, 0.0
    %s2358 = scalar_lea.vmem [#allocation6], 288
    %v2359 = vld [vmem:[%s2358] sm:$0xf]
    %v2360 = vld [vmem:[%s2358 + $0x4] sm:$0xf]
    %v2361 = vld [vmem:[%s2358 + $0x8] sm:$0xf]
    %v2362 = vld [vmem:[%s2358 + $0xc] sm:$0xf]
    %v2363 = vld [vmem:[%s2358 + $0x10] sm:$0xf]
    %v2364 = vld [vmem:[%s2358 + $0x14] sm:$0xf]
    %v2365 = vld [vmem:[%s2358 + $0x18] sm:$0xf]
    %v2366 = vld [vmem:[%s2358 + $0x1c] sm:$0xf]
    %v2367 = vld [vmem:[%s2358 + $0x20] sm:$0xf]
    %v2368 = vld [vmem:[%s2358 + $0x24] sm:$0xf]
    %v2369 = vld [vmem:[%s2358 + $0x28] sm:$0xf]
    %v2370 = vld [vmem:[%s2358 + $0x2c] sm:$0xf]
    %v2371 = vld [vmem:[%s2358 + $0x30] sm:$0xf]
    %v2372 = vld [vmem:[%s2358 + $0x34] sm:$0xf]
    %v2373 = vld [vmem:[%s2358 + $0x38] sm:$0xf]
    %v2374 = vld [vmem:[%s2358 + $0x3c] sm:$0xf]
    %v2375 = vld [vmem:[%s2358 + $0x40] sm:$0xf]
    %v2376 = vld [vmem:[%s2358 + $0x44] sm:$0xf]
    %v2377 = vld [vmem:[%s2358 + $0x48] sm:$0xf]
    %v2378 = vld [vmem:[%s2358 + $0x4c] sm:$0xf]
    %v2379 = vld [vmem:[%s2358 + $0x50] sm:$0xf]
    %v2380 = vld [vmem:[%s2358 + $0x54] sm:$0xf]
    %v2381 = vld [vmem:[%s2358 + $0x58] sm:$0xf]
    %v2382 = vld [vmem:[%s2358 + $0x5c] sm:$0xf]
    %2383 = vst.msk [vmem:[#allocation3] sm:$0x1] %vm1701, 0.0
    %2384 = vst.msk [vmem:[#allocation3 + $0x5] sm:$0x1] %vm1701, 0.0
    %2385 = vst.msk [vmem:[#allocation3 + $0x1] sm:$0xf] %vm2027, %v2357
    %2386 = vst.msk [vmem:[#allocation3 + $0xa] sm:$0x1] %vm1701, 0.0
    %2387 = vst.msk [vmem:[#allocation3 + $0xf] sm:$0x1] %vm1701, 0.0
    %2388 = vst.msk [vmem:[#allocation3 + $0x7] sm:$0xf0] %vm2031, %v2357
    %v2389 = vld [vmem:[#allocation3] sm:$0xf]
    %v2390 = vld [vmem:[#allocation3 + $0xa] sm:$0xf]
    %v2392 = vrot.slane %v2390, 4
    %v2394 = vsel %vm1222, %v2389, %v2392
    %v2395 = vld [vmem:[#allocation3 + $0x2] sm:$0xf]
    %v2396 = vld [vmem:[#allocation3 + $0xc] sm:$0xf]
    %v2398 = vrot.slane %v2396, 4
    %v2400 = vsel %vm1222, %v2395, %v2398
    %2402 = vrot.lane.b32.xlu0 %v2357, 64
    %v2403 = vpop.permute.xlu0 %2402
    %v2405 = vsel %vm1704, %v2394, %v2403
    %v2406 = vpack.c.bf16 %v2405, %v2405
    %v2407 = vpack.c.bf16 %v2400, %v2400
    %v2432 = vunpack.c.l.b16 %v2359
    %v2433 = vunpack.c.l.b16 %v2360
    %v2434 = vunpack.c.l.b16 %v2361
    %v2435 = vunpack.c.l.b16 %v2362
    %v2436 = vunpack.c.l.b16 %v2363
    %v2437 = vunpack.c.l.b16 %v2364
    %v2438 = vunpack.c.l.b16 %v2365
    %v2439 = vunpack.c.l.b16 %v2366
    %v2440 = vunpack.c.l.b16 %v2367
    %v2441 = vunpack.c.l.b16 %v2368
    %v2442 = vunpack.c.l.b16 %v2369
    %v2443 = vunpack.c.l.b16 %v2370
    %v2444 = vunpack.c.l.b16 %v2371
    %v2445 = vunpack.c.l.b16 %v2372
    %v2446 = vunpack.c.l.b16 %v2373
    %v2447 = vunpack.c.l.b16 %v2374
    %v2448 = vunpack.c.l.b16 %v2375
    %v2449 = vunpack.c.l.b16 %v2376
    %v2450 = vunpack.c.l.b16 %v2377
    %v2451 = vunpack.c.l.b16 %v2378
    %v2452 = vunpack.c.l.b16 %v2379
    %v2453 = vunpack.c.l.b16 %v2380
    %v2454 = vunpack.c.l.b16 %v2381
    %v2455 = vunpack.c.l.b16 %v2382
    %v2456 = vpack.c.b16 %v2433, %v2432
    %v2457 = vpack.c.b16 %v2435, %v2434
    %v2458 = vpack.c.b16 %v2437, %v2436
    %v2459 = vpack.c.b16 %v2439, %v2438
    %v2460 = vpack.c.b16 %v2441, %v2440
    %v2461 = vpack.c.b16 %v2443, %v2442
    %v2462 = vpack.c.b16 %v2445, %v2444
    %v2463 = vpack.c.b16 %v2447, %v2446
    %v2464 = vpack.c.b16 %v2449, %v2448
    %v2465 = vpack.c.b16 %v2451, %v2450
    %v2466 = vpack.c.b16 %v2453, %v2452
    %v2467 = vpack.c.b16 %v2455, %v2454
    %v2481 = vsel %vm1704, %v2407, 0
    %2483 = vmatprep.subr.bf16.mxu0 0
    %2484 = vmatpush1.bf16.msra.mxu0 %v2463
    %2485 = vmatprep.subr.bf16.mxu0 0
    %2486 = vmatpush1.bf16.msra.mxu0 %v2462
    %2487 = vmatprep.subr.bf16.mxu0 0
    %2488 = vmatpush1.bf16.msra.mxu0 %v2461
    %2489 = vmatprep.subr.bf16.mxu0 0
    %2490 = vmatpush1.bf16.msra.mxu0 %v2460
    %2491 = vmatprep.subr.bf16.mxu0 0
    %2492 = vmatpush1.bf16.msra.mxu0 %v2459
    %2493 = vmatprep.subr.bf16.mxu0 0
    %2494 = vmatpush1.bf16.msra.mxu0 %v2458
    %2495 = vmatprep.subr.bf16.mxu0 0
    %2496 = vmatpush1.bf16.msra.mxu0 %v2457
    %2497 = vmatprep.subr.bf16.mxu0 0
    %2498 = vmatpush1.bf16.msra.mxu0 %v2456
    %2499 = vmatprep.subr.bf16.mxu0 0
    %2500 = vmatpush2.bf16.msra.mxu0 0
    %2501 = vmatprep.subr.bf16.mxu0 0
    %2502 = vmatpush2.bf16.msra.mxu0 0
    %2503 = vmatprep.subr.bf16.mxu0 0
    %2504 = vmatpush2.bf16.msra.mxu0 0
    %2505 = vmatprep.subr.bf16.mxu0 0
    %2506 = vmatpush2.bf16.msra.mxu0 0
    %2507 = vmatprep.subr.bf16.mxu0 0
    %2508 = vmatpush2.bf16.msra.mxu0 %v2467
    %2509 = vmatprep.subr.bf16.mxu0 0
    %2510 = vmatpush2.bf16.msra.mxu0 %v2466
    %2511 = vmatprep.subr.bf16.mxu0 0
    %2512 = vmatpush2.bf16.msra.mxu0 %v2465
    %2513 = vmatprep.subr.bf16.mxu0 0
    %2514 = vmatpush2.bf16.msra.mxu0 %v2464
    %2515 = vmatprep.mubr.bf16.mxu0 %v2481
    %2516 = vmatmul.mubr.bf16.gmra.mxu0 %v2406
    %v2517 = vpop.f32.mrf.mxu0
    %v2518 = vadd.f32 %v2162, %v2517
    %v2519 = vpop.f32.mrf.mxu0
    %v2520 = vpop.f32.mrf.mxu0
    %v2521 = vpop.f32.mrf.mxu0
    %2522 = vdwg.mxu0
    %2523 = vst.msk [vmem:[#allocation3] sm:$0x1] %vm1701, 0.0
    %2524 = vst.msk [vmem:[#allocation3 + $0x5] sm:$0x1] %vm1701, 0.0
    %2525 = vst.msk [vmem:[#allocation3 + $0x1] sm:$0xf] %vm2027, %v2518
    %2526 = vst.msk [vmem:[#allocation3 + $0xa] sm:$0x1] %vm1701, 0.0
    %2527 = vst.msk [vmem:[#allocation3 + $0xf] sm:$0x1] %vm1701, 0.0
    %2528 = vst.msk [vmem:[#allocation3 + $0x7] sm:$0xf0] %vm2031, %v2518
    %v2529 = vld [vmem:[%s1709] ss:$2 sm:$0x3]
    %v2530 = vld [vmem:[%s1711] ss:$2 sm:$0x3]
    %v2532 = vrot.slane %v2530, 6
    %vm2534 = vcmask 1041408
    %v2535 = vsel %vm2534, %v2529, %v2532
    %v2536 = vpack.c.bf16 %v2535, %v2535
    %s2537 = scalar_lea.vmem %s3, 32
    %v2538 = vld [vmem:[%s2537] sm:$0xf]
    %v2539 = vld [vmem:[%s2537 + $0x4] sm:$0xf]
    %v2540 = vld [vmem:[%s2537 + $0x8] sm:$0xf]
    %v2541 = vld [vmem:[%s2537 + $0xc] sm:$0xf]
    %v2542 = vld [vmem:[%s2537 + $0x10] sm:$0xf]
    %v2543 = vld [vmem:[%s2537 + $0x14] sm:$0xf]
    %v2544 = vld [vmem:[%s2537 + $0x18] sm:$0xf]
    %v2545 = vld [vmem:[%s2537 + $0x1c] sm:$0xf]
    %v2546 = vld [vmem:[%s4 + $0x1a] sm:$0x1]
    %v2547 = vlaneseq
    %v2548 = vshrl.u32 %v2547, 7
    %v2549 = vsub.s32 0, %v2548
    %v2550 = vrot.slane %v2546, %v2549
    %v2559 = vunpack.c.l.b16 %v2538
    %v2560 = vunpack.c.l.b16 %v2539
    %v2561 = vunpack.c.l.b16 %v2540
    %v2562 = vunpack.c.l.b16 %v2541
    %v2563 = vunpack.c.l.b16 %v2542
    %v2564 = vunpack.c.l.b16 %v2543
    %v2565 = vunpack.c.l.b16 %v2544
    %v2566 = vunpack.c.l.b16 %v2545
    %v2567 = vpack.c.b16 %v2560, %v2559
    %v2568 = vpack.c.b16 %v2562, %v2561
    %v2569 = vpack.c.b16 %v2564, %v2563
    %v2570 = vpack.c.b16 %v2566, %v2565
    %v2576 = vsel %vm1704, %v2536, 0
    %2578 = vmatprep.subr.bf16.mxu0 0
    %2579 = vmatpush1.bf16.msra.mxu0 0
    %2580 = vmatprep.subr.bf16.mxu0 0
    %2581 = vmatpush1.bf16.msra.mxu0 0
    %2582 = vmatprep.subr.bf16.mxu0 0
    %2583 = vmatpush1.bf16.msra.mxu0 0
    %2584 = vmatprep.subr.bf16.mxu0 0
    %2585 = vmatpush1.bf16.msra.mxu0 0
    %2586 = vmatprep.subr.bf16.mxu0 0
    %2587 = vmatpush1.bf16.msra.mxu0 %v2570
    %2588 = vmatprep.subr.bf16.mxu0 0
    %2589 = vmatpush1.bf16.msra.mxu0 %v2569
    %2590 = vmatprep.subr.bf16.mxu0 0
    %2591 = vmatpush1.bf16.msra.mxu0 %v2568
    %2592 = vmatprep.subr.bf16.mxu0 0
    %2593 = vmatpush1.bf16.msra.mxu0 %v2567
    %2594 = vmatprep.subr.bf16.mxu0 0
    %2595 = vmatpush2.bf16.msra.mxu0 0
    %2596 = vmatprep.subr.bf16.mxu0 0
    %2597 = vmatpush2.bf16.msra.mxu0 0
    %2598 = vmatprep.subr.bf16.mxu0 0
    %2599 = vmatpush2.bf16.msra.mxu0 0
    %2600 = vmatprep.subr.bf16.mxu0 0
    %2601 = vmatpush2.bf16.msra.mxu0 0
    %2602 = vmatprep.subr.bf16.mxu0 0
    %2603 = vmatpush2.bf16.msra.mxu0 0
    %2604 = vmatprep.subr.bf16.mxu0 0
    %2605 = vmatpush2.bf16.msra.mxu0 0
    %2606 = vmatprep.subr.bf16.mxu0 0
    %2607 = vmatpush2.bf16.msra.mxu0 0
    %2608 = vmatprep.subr.bf16.mxu0 0
    %2609 = vmatpush2.bf16.msra.mxu0 0
    %2610 = vmatprep.mubr.bf16.mxu0 0
    %2611 = vmatmul.mubr.bf16.gmra.mxu0 %v2576
    %v2612 = vpop.f32.mrf.mxu0
    %v2613 = vadd.f32 %v2550, %v2612
    %v2614 = vpop.f32.mrf.mxu0
    %v2615 = vpop.f32.mrf.mxu0
    %v2616 = vpop.f32.mrf.mxu0
    %2617 = vdwg.mxu0
    %v2618 = vld [vmem:[%s4 + $0x9] sm:$0x1]
    %v2619 = vlaneseq
    %v2620 = vshrl.u32 %v2619, 7
    %v2621 = vsub.s32 0, %v2620
    %v2622 = vrot.slane %v2618, %v2621
    %v2623 = vmul.f32 %v2518, %v2622
    %v2624 = vld [vmem:[%s4 + $0xa] sm:$0x1]
    %v2625 = vlaneseq
    %v2626 = vshrl.u32 %v2625, 7
    %v2627 = vsub.s32 0, %v2626
    %v2628 = vrot.slane %v2624, %v2627
    %v2629 = vadd.f32 %v2623, %v2628
    %v2630 = vmax.f32 %v2629, 0.0
    %s2631 = scalar_lea.vmem [#allocation6], 384
    %v2632 = vld [vmem:[%s2631] sm:$0xf]
    %v2633 = vld [vmem:[%s2631 + $0x4] sm:$0xf]
    %v2634 = vld [vmem:[%s2631 + $0x8] sm:$0xf]
    %v2635 = vld [vmem:[%s2631 + $0xc] sm:$0xf]
    %v2636 = vld [vmem:[%s2631 + $0x10] sm:$0xf]
    %v2637 = vld [vmem:[%s2631 + $0x14] sm:$0xf]
    %v2638 = vld [vmem:[%s2631 + $0x18] sm:$0xf]
    %v2639 = vld [vmem:[%s2631 + $0x1c] sm:$0xf]
    %v2640 = vld [vmem:[%s2631 + $0x20] sm:$0xf]
    %v2641 = vld [vmem:[%s2631 + $0x24] sm:$0xf]
    %v2642 = vld [vmem:[%s2631 + $0x28] sm:$0xf]
    %v2643 = vld [vmem:[%s2631 + $0x2c] sm:$0xf]
    %v2644 = vld [vmem:[%s2631 + $0x30] sm:$0xf]
    %v2645 = vld [vmem:[%s2631 + $0x34] sm:$0xf]
    %v2646 = vld [vmem:[%s2631 + $0x38] sm:$0xf]
    %v2647 = vld [vmem:[%s2631 + $0x3c] sm:$0xf]
    %v2648 = vld [vmem:[%s2631 + $0x40] sm:$0xf]
    %v2649 = vld [vmem:[%s2631 + $0x44] sm:$0xf]
    %v2650 = vld [vmem:[%s2631 + $0x48] sm:$0xf]
    %v2651 = vld [vmem:[%s2631 + $0x4c] sm:$0xf]
    %v2652 = vld [vmem:[%s2631 + $0x50] sm:$0xf]
    %v2653 = vld [vmem:[%s2631 + $0x54] sm:$0xf]
    %v2654 = vld [vmem:[%s2631 + $0x58] sm:$0xf]
    %v2655 = vld [vmem:[%s2631 + $0x5c] sm:$0xf]
    %2656 = vst.msk [vmem:[#allocation3] sm:$0x1] %vm1701, 0.0
    %2657 = vst.msk [vmem:[#allocation3 + $0x5] sm:$0x1] %vm1701, 0.0
    %2658 = vst.msk [vmem:[#allocation3 + $0x1] sm:$0xf] %vm2027, %v2630
    %2659 = vst.msk [vmem:[#allocation3 + $0xa] sm:$0x1] %vm1701, 0.0
    %2660 = vst.msk [vmem:[#allocation3 + $0xf] sm:$0x1] %vm1701, 0.0
    %2661 = vst.msk [vmem:[#allocation3 + $0x7] sm:$0xf0] %vm2031, %v2630
    %v2662 = vld [vmem:[#allocation3] ss:$2 sm:$0x3]
    %v2663 = vld [vmem:[%s1845] ss:$2 sm:$0x3]
    %v2665 = vrot.slane %v2663, 6
    %v2667 = vsel %vm2534, %v2662, %v2665
    %v2668 = vld [vmem:[%s1709] ss:$2 sm:$0x3]
    %v2669 = vld [vmem:[%s1711] ss:$2 sm:$0x3]
    %v2671 = vrot.slane %v2669, 6
    %v2673 = vsel %vm2534, %v2668, %v2671
    %v2674 = vld [vmem:[%s1857] ss:$2 sm:$0x3]
    %v2675 = vld [vmem:[%s1859] ss:$2 sm:$0x3]
    %v2677 = vrot.slane %v2675, 6
    %v2679 = vsel %vm2534, %v2674, %v2677
    %2681 = vrot.lane.b32.xlu0 %v2673, 64
    %v2682 = vpop.permute.xlu0 %2681
    %v2684 = vsel %vm1704, %v2667, %v2682
    %v2685 = vpack.c.bf16 %v2684, %v2684
    %v2686 = vpack.c.bf16 %v2679, %v2679
    %v2711 = vunpack.c.l.b16 %v2632
    %v2712 = vunpack.c.l.b16 %v2633
    %v2713 = vunpack.c.l.b16 %v2634
    %v2714 = vunpack.c.l.b16 %v2635
    %v2715 = vunpack.c.l.b16 %v2636
    %v2716 = vunpack.c.l.b16 %v2637
    %v2717 = vunpack.c.l.b16 %v2638
    %v2718 = vunpack.c.l.b16 %v2639
    %v2719 = vunpack.c.l.b16 %v2640
    %v2720 = vunpack.c.l.b16 %v2641
    %v2721 = vunpack.c.l.b16 %v2642
    %v2722 = vunpack.c.l.b16 %v2643
    %v2723 = vunpack.c.l.b16 %v2644
    %v2724 = vunpack.c.l.b16 %v2645
    %v2725 = vunpack.c.l.b16 %v2646
    %v2726 = vunpack.c.l.b16 %v2647
    %v2727 = vunpack.c.l.b16 %v2648
    %v2728 = vunpack.c.l.b16 %v2649
    %v2729 = vunpack.c.l.b16 %v2650
    %v2730 = vunpack.c.l.b16 %v2651
    %v2731 = vunpack.c.l.b16 %v2652
    %v2732 = vunpack.c.l.b16 %v2653
    %v2733 = vunpack.c.l.b16 %v2654
    %v2734 = vunpack.c.l.b16 %v2655
    %v2735 = vpack.c.b16 %v2712, %v2711
    %v2736 = vpack.c.b16 %v2714, %v2713
    %v2737 = vpack.c.b16 %v2716, %v2715
    %v2738 = vpack.c.b16 %v2718, %v2717
    %v2739 = vpack.c.b16 %v2720, %v2719
    %v2740 = vpack.c.b16 %v2722, %v2721
    %v2741 = vpack.c.b16 %v2724, %v2723
    %v2742 = vpack.c.b16 %v2726, %v2725
    %v2743 = vpack.c.b16 %v2728, %v2727
    %v2744 = vpack.c.b16 %v2730, %v2729
    %v2745 = vpack.c.b16 %v2732, %v2731
    %v2746 = vpack.c.b16 %v2734, %v2733
    %v2760 = vsel %vm1704, %v2686, 0
    %2762 = vmatprep.subr.bf16.mxu0 0
    %2763 = vmatpush1.bf16.msra.mxu0 %v2742
    %2764 = vmatprep.subr.bf16.mxu0 0
    %2765 = vmatpush1.bf16.msra.mxu0 %v2741
    %2766 = vmatprep.subr.bf16.mxu0 0
    %2767 = vmatpush1.bf16.msra.mxu0 %v2740
    %2768 = vmatprep.subr.bf16.mxu0 0
    %2769 = vmatpush1.bf16.msra.mxu0 %v2739
    %2770 = vmatprep.subr.bf16.mxu0 0
    %2771 = vmatpush1.bf16.msra.mxu0 %v2738
    %2772 = vmatprep.subr.bf16.mxu0 0
    %2773 = vmatpush1.bf16.msra.mxu0 %v2737
    %2774 = vmatprep.subr.bf16.mxu0 0
    %2775 = vmatpush1.bf16.msra.mxu0 %v2736
    %2776 = vmatprep.subr.bf16.mxu0 0
    %2777 = vmatpush1.bf16.msra.mxu0 %v2735
    %2778 = vmatprep.subr.bf16.mxu0 0
    %2779 = vmatpush2.bf16.msra.mxu0 0
    %2780 = vmatprep.subr.bf16.mxu0 0
    %2781 = vmatpush2.bf16.msra.mxu0 0
    %2782 = vmatprep.subr.bf16.mxu0 0
    %2783 = vmatpush2.bf16.msra.mxu0 0
    %2784 = vmatprep.subr.bf16.mxu0 0
    %2785 = vmatpush2.bf16.msra.mxu0 0
    %2786 = vmatprep.subr.bf16.mxu0 0
    %2787 = vmatpush2.bf16.msra.mxu0 %v2746
    %2788 = vmatprep.subr.bf16.mxu0 0
    %2789 = vmatpush2.bf16.msra.mxu0 %v2745
    %2790 = vmatprep.subr.bf16.mxu0 0
    %2791 = vmatpush2.bf16.msra.mxu0 %v2744
    %2792 = vmatprep.subr.bf16.mxu0 0
    %2793 = vmatpush2.bf16.msra.mxu0 %v2743
    %2794 = vmatprep.mubr.bf16.mxu0 %v2760
    %2795 = vmatmul.mubr.bf16.gmra.mxu0 %v2685
    %v2796 = vpop.f32.mrf.mxu0
    %v2797 = vadd.f32 0.0, %v2796
    %v2798 = vpop.f32.mrf.mxu0
    %v2799 = vpop.f32.mrf.mxu0
    %v2800 = vpop.f32.mrf.mxu0
    %2801 = vdwg.mxu0
    %v2802 = vld [vmem:[%s4 + $0xb] sm:$0x1]
    %v2803 = vlaneseq
    %v2804 = vshrl.u32 %v2803, 7
    %v2805 = vsub.s32 0, %v2804
    %v2806 = vrot.slane %v2802, %v2805
    %v2807 = vmul.f32 %v2797, %v2806
    %v2808 = vld [vmem:[%s4 + $0xc] sm:$0x1]
    %v2809 = vlaneseq
    %v2810 = vshrl.u32 %v2809, 7
    %v2811 = vsub.s32 0, %v2810
    %v2812 = vrot.slane %v2808, %v2811
    %v2813 = vadd.f32 %v2807, %v2812
    %v2814 = vmax.f32 %v2813, 0.0
    %s2815 = scalar_lea.vmem [#allocation6], 480
    %v2816 = vld [vmem:[%s2815] sm:$0xf]
    %v2817 = vld [vmem:[%s2815 + $0x4] sm:$0xf]
    %v2818 = vld [vmem:[%s2815 + $0x8] sm:$0xf]
    %v2819 = vld [vmem:[%s2815 + $0xc] sm:$0xf]
    %v2820 = vld [vmem:[%s2815 + $0x10] sm:$0xf]
    %v2821 = vld [vmem:[%s2815 + $0x14] sm:$0xf]
    %v2822 = vld [vmem:[%s2815 + $0x18] sm:$0xf]
    %v2823 = vld [vmem:[%s2815 + $0x1c] sm:$0xf]
    %v2824 = vld [vmem:[%s2815 + $0x20] sm:$0xf]
    %v2825 = vld [vmem:[%s2815 + $0x24] sm:$0xf]
    %v2826 = vld [vmem:[%s2815 + $0x28] sm:$0xf]
    %v2827 = vld [vmem:[%s2815 + $0x2c] sm:$0xf]
    %v2828 = vld [vmem:[%s2815 + $0x30] sm:$0xf]
    %v2829 = vld [vmem:[%s2815 + $0x34] sm:$0xf]
    %v2830 = vld [vmem:[%s2815 + $0x38] sm:$0xf]
    %v2831 = vld [vmem:[%s2815 + $0x3c] sm:$0xf]
    %v2832 = vld [vmem:[%s2815 + $0x40] sm:$0xf]
    %v2833 = vld [vmem:[%s2815 + $0x44] sm:$0xf]
    %v2834 = vld [vmem:[%s2815 + $0x48] sm:$0xf]
    %v2835 = vld [vmem:[%s2815 + $0x4c] sm:$0xf]
    %v2836 = vld [vmem:[%s2815 + $0x50] sm:$0xf]
    %v2837 = vld [vmem:[%s2815 + $0x54] sm:$0xf]
    %v2838 = vld [vmem:[%s2815 + $0x58] sm:$0xf]
    %v2839 = vld [vmem:[%s2815 + $0x5c] sm:$0xf]
    %2840 = vst.msk [vmem:[#allocation3] sm:$0x1] %vm1701, 0.0
    %2841 = vst.msk [vmem:[#allocation3 + $0x3] sm:$0x1] %vm1701, 0.0
    %vm2842 = vcmask 517120
    %2843 = vst.msk [vmem:[#allocation3 + $0x1] sm:$0x3] %vm2842, %v2814
    %2844 = vst.msk [vmem:[#allocation3 + $0xa] sm:$0x1] %vm1701, 0.0
    %2845 = vst.msk [vmem:[#allocation3 + $0xd] sm:$0x1] %vm1701, 0.0
    %vm2846 = vcmask 519170
    %2847 = vst.msk [vmem:[#allocation3 + $0x9] sm:$0xc] %vm2846, %v2814
    %v2848 = vld [vmem:[#allocation3] sm:$0x3]
    %v2849 = vld [vmem:[#allocation3 + $0xa] sm:$0x3]
    %v2851 = vrot.slane %v2849, 6
    %v2853 = vsel %vm2534, %v2848, %v2851
    %v2854 = vld [vmem:[#allocation3 + $0x2] sm:$0x3]
    %v2855 = vld [vmem:[#allocation3 + $0xc] sm:$0x3]
    %v2857 = vrot.slane %v2855, 6
    %v2859 = vsel %vm2534, %v2854, %v2857
    %2861 = vrot.lane.b32.xlu0 %v2814, 64
    %v2862 = vpop.permute.xlu0 %2861
    %v2864 = vsel %vm1704, %v2853, %v2862
    %v2865 = vpack.c.bf16 %v2864, %v2864
    %v2866 = vpack.c.bf16 %v2859, %v2859
    %v2891 = vunpack.c.l.b16 %v2816
    %v2892 = vunpack.c.l.b16 %v2817
    %v2893 = vunpack.c.l.b16 %v2818
    %v2894 = vunpack.c.l.b16 %v2819
    %v2895 = vunpack.c.l.b16 %v2820
    %v2896 = vunpack.c.l.b16 %v2821
    %v2897 = vunpack.c.l.b16 %v2822
    %v2898 = vunpack.c.l.b16 %v2823
    %v2899 = vunpack.c.l.b16 %v2824
    %v2900 = vunpack.c.l.b16 %v2825
    %v2901 = vunpack.c.l.b16 %v2826
    %v2902 = vunpack.c.l.b16 %v2827
    %v2903 = vunpack.c.l.b16 %v2828
    %v2904 = vunpack.c.l.b16 %v2829
    %v2905 = vunpack.c.l.b16 %v2830
    %v2906 = vunpack.c.l.b16 %v2831
    %v2907 = vunpack.c.l.b16 %v2832
    %v2908 = vunpack.c.l.b16 %v2833
    %v2909 = vunpack.c.l.b16 %v2834
    %v2910 = vunpack.c.l.b16 %v2835
    %v2911 = vunpack.c.l.b16 %v2836
    %v2912 = vunpack.c.l.b16 %v2837
    %v2913 = vunpack.c.l.b16 %v2838
    %v2914 = vunpack.c.l.b16 %v2839
    %v2915 = vpack.c.b16 %v2892, %v2891
    %v2916 = vpack.c.b16 %v2894, %v2893
    %v2917 = vpack.c.b16 %v2896, %v2895
    %v2918 = vpack.c.b16 %v2898, %v2897
    %v2919 = vpack.c.b16 %v2900, %v2899
    %v2920 = vpack.c.b16 %v2902, %v2901
    %v2921 = vpack.c.b16 %v2904, %v2903
    %v2922 = vpack.c.b16 %v2906, %v2905
    %v2923 = vpack.c.b16 %v2908, %v2907
    %v2924 = vpack.c.b16 %v2910, %v2909
    %v2925 = vpack.c.b16 %v2912, %v2911
    %v2926 = vpack.c.b16 %v2914, %v2913
    %v2940 = vsel %vm1704, %v2866, 0
    %2942 = vmatprep.subr.bf16.mxu0 0
    %2943 = vmatpush1.bf16.msra.mxu0 %v2922
    %2944 = vmatprep.subr.bf16.mxu0 0
    %2945 = vmatpush1.bf16.msra.mxu0 %v2921
    %2946 = vmatprep.subr.bf16.mxu0 0
    %2947 = vmatpush1.bf16.msra.mxu0 %v2920
    %2948 = vmatprep.subr.bf16.mxu0 0
    %2949 = vmatpush1.bf16.msra.mxu0 %v2919
    %2950 = vmatprep.subr.bf16.mxu0 0
    %2951 = vmatpush1.bf16.msra.mxu0 %v2918
    %2952 = vmatprep.subr.bf16.mxu0 0
    %2953 = vmatpush1.bf16.msra.mxu0 %v2917
    %2954 = vmatprep.subr.bf16.mxu0 0
    %2955 = vmatpush1.bf16.msra.mxu0 %v2916
    %2956 = vmatprep.subr.bf16.mxu0 0
    %2957 = vmatpush1.bf16.msra.mxu0 %v2915
    %2958 = vmatprep.subr.bf16.mxu0 0
    %2959 = vmatpush2.bf16.msra.mxu0 0
    %2960 = vmatprep.subr.bf16.mxu0 0
    %2961 = vmatpush2.bf16.msra.mxu0 0
    %2962 = vmatprep.subr.bf16.mxu0 0
    %2963 = vmatpush2.bf16.msra.mxu0 0
    %2964 = vmatprep.subr.bf16.mxu0 0
    %2965 = vmatpush2.bf16.msra.mxu0 0
    %2966 = vmatprep.subr.bf16.mxu0 0
    %2967 = vmatpush2.bf16.msra.mxu0 %v2926
    %2968 = vmatprep.subr.bf16.mxu0 0
    %2969 = vmatpush2.bf16.msra.mxu0 %v2925
    %2970 = vmatprep.subr.bf16.mxu0 0
    %2971 = vmatpush2.bf16.msra.mxu0 %v2924
    %2972 = vmatprep.subr.bf16.mxu0 0
    %2973 = vmatpush2.bf16.msra.mxu0 %v2923
    %2974 = vmatprep.mubr.bf16.mxu0 %v2940
    %2975 = vmatmul.mubr.bf16.gmra.mxu0 %v2865
    %v2976 = vpop.f32.mrf.mxu0
    %v2977 = vadd.f32 %v2613, %v2976
    %v2978 = vpop.f32.mrf.mxu0
    %v2979 = vpop.f32.mrf.mxu0
    %v2980 = vpop.f32.mrf.mxu0
    %2981 = vdwg.mxu0
    %v2982 = vld [vmem:[%s4 + $0xd] sm:$0x1]
    %v2983 = vlaneseq
    %v2984 = vshrl.u32 %v2983, 7
    %v2985 = vsub.s32 0, %v2984
    %v2986 = vrot.slane %v2982, %v2985
    %v2987 = vmul.f32 %v2977, %v2986
    %v2988 = vld [vmem:[%s4 + $0xe] sm:$0x1]
    %v2989 = vlaneseq
    %v2990 = vshrl.u32 %v2989, 7
    %v2991 = vsub.s32 0, %v2990
    %v2992 = vrot.slane %v2988, %v2991
    %v2993 = vadd.f32 %v2987, %v2992
    %v2994 = vmax.f32 %v2993, 0.0
    %s2995 = scalar_lea.vmem [#allocation6], 576
    %v2996 = vld [vmem:[%s2995] sm:$0xf]
    %v2997 = vld [vmem:[%s2995 + $0x4] sm:$0xf]
    %v2998 = vld [vmem:[%s2995 + $0x8] sm:$0xf]
    %v2999 = vld [vmem:[%s2995 + $0xc] sm:$0xf]
    %v3000 = vld [vmem:[%s2995 + $0x10] sm:$0xf]
    %v3001 = vld [vmem:[%s2995 + $0x14] sm:$0xf]
    %v3002 = vld [vmem:[%s2995 + $0x18] sm:$0xf]
    %v3003 = vld [vmem:[%s2995 + $0x1c] sm:$0xf]
    %v3004 = vld [vmem:[%s2995 + $0x20] sm:$0xf]
    %v3005 = vld [vmem:[%s2995 + $0x24] sm:$0xf]
    %v3006 = vld [vmem:[%s2995 + $0x28] sm:$0xf]
    %v3007 = vld [vmem:[%s2995 + $0x2c] sm:$0xf]
    %v3008 = vld [vmem:[%s2995 + $0x30] sm:$0xf]
    %v3009 = vld [vmem:[%s2995 + $0x34] sm:$0xf]
    %v3010 = vld [vmem:[%s2995 + $0x38] sm:$0xf]
    %v3011 = vld [vmem:[%s2995 + $0x3c] sm:$0xf]
    %v3012 = vld [vmem:[%s2995 + $0x40] sm:$0xf]
    %v3013 = vld [vmem:[%s2995 + $0x44] sm:$0xf]
    %v3014 = vld [vmem:[%s2995 + $0x48] sm:$0xf]
    %v3015 = vld [vmem:[%s2995 + $0x4c] sm:$0xf]
    %v3016 = vld [vmem:[%s2995 + $0x50] sm:$0xf]
    %v3017 = vld [vmem:[%s2995 + $0x54] sm:$0xf]
    %v3018 = vld [vmem:[%s2995 + $0x58] sm:$0xf]
    %v3019 = vld [vmem:[%s2995 + $0x5c] sm:$0xf]
    %3020 = vst.msk [vmem:[#allocation3] sm:$0x1] %vm1701, 0.0
    %3021 = vst.msk [vmem:[#allocation3 + $0x3] sm:$0x1] %vm1701, 0.0
    %3022 = vst.msk [vmem:[#allocation3 + $0x1] sm:$0x3] %vm2842, %v2994
    %3023 = vst.msk [vmem:[#allocation3 + $0xa] sm:$0x1] %vm1701, 0.0
    %3024 = vst.msk [vmem:[#allocation3 + $0xd] sm:$0x1] %vm1701, 0.0
    %3025 = vst.msk [vmem:[#allocation3 + $0x9] sm:$0xc] %vm2846, %v2994
    %v3026 = vld [vmem:[#allocation3] sm:$0x3]
    %v3027 = vld [vmem:[#allocation3 + $0xa] sm:$0x3]
    %v3029 = vrot.slane %v3027, 6
    %v3031 = vsel %vm2534, %v3026, %v3029
    %v3032 = vld [vmem:[#allocation3 + $0x2] sm:$0x3]
    %v3033 = vld [vmem:[#allocation3 + $0xc] sm:$0x3]
    %v3035 = vrot.slane %v3033, 6
    %v3037 = vsel %vm2534, %v3032, %v3035
    %3039 = vrot.lane.b32.xlu0 %v2994, 64
    %v3040 = vpop.permute.xlu0 %3039
    %v3042 = vsel %vm1704, %v3031, %v3040
    %v3043 = vpack.c.bf16 %v3042, %v3042
    %v3044 = vpack.c.bf16 %v3037, %v3037
    %v3069 = vunpack.c.l.b16 %v2996
    %v3070 = vunpack.c.l.b16 %v2997
    %v3071 = vunpack.c.l.b16 %v2998
    %v3072 = vunpack.c.l.b16 %v2999
    %v3073 = vunpack.c.l.b16 %v3000
    %v3074 = vunpack.c.l.b16 %v3001
    %v3075 = vunpack.c.l.b16 %v3002
    %v3076 = vunpack.c.l.b16 %v3003
    %v3077 = vunpack.c.l.b16 %v3004
    %v3078 = vunpack.c.l.b16 %v3005
    %v3079 = vunpack.c.l.b16 %v3006
    %v3080 = vunpack.c.l.b16 %v3007
    %v3081 = vunpack.c.l.b16 %v3008
    %v3082 = vunpack.c.l.b16 %v3009
    %v3083 = vunpack.c.l.b16 %v3010
    %v3084 = vunpack.c.l.b16 %v3011
    %v3085 = vunpack.c.l.b16 %v3012
    %v3086 = vunpack.c.l.b16 %v3013
    %v3087 = vunpack.c.l.b16 %v3014
    %v3088 = vunpack.c.l.b16 %v3015
    %v3089 = vunpack.c.l.b16 %v3016
    %v3090 = vunpack.c.l.b16 %v3017
    %v3091 = vunpack.c.l.b16 %v3018
    %v3092 = vunpack.c.l.b16 %v3019
    %v3093 = vpack.c.b16 %v3070, %v3069
    %v3094 = vpack.c.b16 %v3072, %v3071
    %v3095 = vpack.c.b16 %v3074, %v3073
    %v3096 = vpack.c.b16 %v3076, %v3075
    %v3097 = vpack.c.b16 %v3078, %v3077
    %v3098 = vpack.c.b16 %v3080, %v3079
    %v3099 = vpack.c.b16 %v3082, %v3081
    %v3100 = vpack.c.b16 %v3084, %v3083
    %v3101 = vpack.c.b16 %v3086, %v3085
    %v3102 = vpack.c.b16 %v3088, %v3087
    %v3103 = vpack.c.b16 %v3090, %v3089
    %v3104 = vpack.c.b16 %v3092, %v3091
    %v3118 = vsel %vm1704, %v3044, 0
    %3120 = vmatprep.subr.bf16.mxu0 0
    %3121 = vmatpush1.bf16.msra.mxu0 %v3100
    %3122 = vmatprep.subr.bf16.mxu0 0
    %3123 = vmatpush1.bf16.msra.mxu0 %v3099
    %3124 = vmatprep.subr.bf16.mxu0 0
    %3125 = vmatpush1.bf16.msra.mxu0 %v3098
    %3126 = vmatprep.subr.bf16.mxu0 0
    %3127 = vmatpush1.bf16.msra.mxu0 %v3097
    %3128 = vmatprep.subr.bf16.mxu0 0
    %3129 = vmatpush1.bf16.msra.mxu0 %v3096
    %3130 = vmatprep.subr.bf16.mxu0 0
    %3131 = vmatpush1.bf16.msra.mxu0 %v3095
    %3132 = vmatprep.subr.bf16.mxu0 0
    %3133 = vmatpush1.bf16.msra.mxu0 %v3094
    %3134 = vmatprep.subr.bf16.mxu0 0
    %3135 = vmatpush1.bf16.msra.mxu0 %v3093
    %3136 = vmatprep.subr.bf16.mxu0 0
    %3137 = vmatpush2.bf16.msra.mxu0 0
    %3138 = vmatprep.subr.bf16.mxu0 0
    %3139 = vmatpush2.bf16.msra.mxu0 0
    %3140 = vmatprep.subr.bf16.mxu0 0
    %3141 = vmatpush2.bf16.msra.mxu0 0
    %3142 = vmatprep.subr.bf16.mxu0 0
    %3143 = vmatpush2.bf16.msra.mxu0 0
    %3144 = vmatprep.subr.bf16.mxu0 0
    %3145 = vmatpush2.bf16.msra.mxu0 %v3104
    %3146 = vmatprep.subr.bf16.mxu0 0
    %3147 = vmatpush2.bf16.msra.mxu0 %v3103
    %3148 = vmatprep.subr.bf16.mxu0 0
    %3149 = vmatpush2.bf16.msra.mxu0 %v3102
    %3150 = vmatprep.subr.bf16.mxu0 0
    %3151 = vmatpush2.bf16.msra.mxu0 %v3101
    %3152 = vmatprep.mubr.bf16.mxu0 %v3118
    %3153 = vmatmul.mubr.bf16.gmra.mxu0 %v3043
    %v3154 = vpop.f32.mrf.mxu0
    %v3155 = vadd.f32 0.0, %v3154
    %v3156 = vpop.f32.mrf.mxu0
    %v3157 = vpop.f32.mrf.mxu0
    %v3158 = vpop.f32.mrf.mxu0
    %3159 = vdwg.mxu0
    %v3160 = vld [vmem:[%s4 + $0xf] sm:$0x1]
    %v3161 = vlaneseq
    %v3162 = vshrl.u32 %v3161, 7
    %v3163 = vsub.s32 0, %v3162
    %v3164 = vrot.slane %v3160, %v3163
    %v3165 = vmul.f32 %v3155, %v3164
    %v3166 = vld [vmem:[%s4 + $0x10] sm:$0x1]
    %v3167 = vlaneseq
    %v3168 = vshrl.u32 %v3167, 7
    %v3169 = vsub.s32 0, %v3168
    %v3170 = vrot.slane %v3166, %v3169
    %v3171 = vadd.f32 %v3165, %v3170
    %v3172 = vmax.f32 %v3171, 0.0
    %s3173 = scalar_lea.vmem [#allocation6], 672
    %v3174 = vld [vmem:[%s3173] sm:$0xf]
    %v3175 = vld [vmem:[%s3173 + $0x4] sm:$0xf]
    %v3176 = vld [vmem:[%s3173 + $0x8] sm:$0xf]
    %v3177 = vld [vmem:[%s3173 + $0xc] sm:$0xf]
    %v3178 = vld [vmem:[%s3173 + $0x10] sm:$0xf]
    %v3179 = vld [vmem:[%s3173 + $0x14] sm:$0xf]
    %v3180 = vld [vmem:[%s3173 + $0x18] sm:$0xf]
    %v3181 = vld [vmem:[%s3173 + $0x1c] sm:$0xf]
    %v3182 = vld [vmem:[%s3173 + $0x20] sm:$0xf]
    %v3183 = vld [vmem:[%s3173 + $0x24] sm:$0xf]
    %v3184 = vld [vmem:[%s3173 + $0x28] sm:$0xf]
    %v3185 = vld [vmem:[%s3173 + $0x2c] sm:$0xf]
    %v3186 = vld [vmem:[%s3173 + $0x30] sm:$0xf]
    %v3187 = vld [vmem:[%s3173 + $0x34] sm:$0xf]
    %v3188 = vld [vmem:[%s3173 + $0x38] sm:$0xf]
    %v3189 = vld [vmem:[%s3173 + $0x3c] sm:$0xf]
    %v3190 = vld [vmem:[%s3173 + $0x40] sm:$0xf]
    %v3191 = vld [vmem:[%s3173 + $0x44] sm:$0xf]
    %v3192 = vld [vmem:[%s3173 + $0x48] sm:$0xf]
    %v3193 = vld [vmem:[%s3173 + $0x4c] sm:$0xf]
    %v3194 = vld [vmem:[%s3173 + $0x50] sm:$0xf]
    %v3195 = vld [vmem:[%s3173 + $0x54] sm:$0xf]
    %v3196 = vld [vmem:[%s3173 + $0x58] sm:$0xf]
    %v3197 = vld [vmem:[%s3173 + $0x5c] sm:$0xf]
    %3198 = vst.msk [vmem:[#allocation3] sm:$0x1] %vm1701, 0.0
    %3199 = vst.msk [vmem:[#allocation3 + $0x3] sm:$0x1] %vm1701, 0.0
    %3200 = vst.msk [vmem:[#allocation3 + $0x1] sm:$0x3] %vm2842, %v3172
    %3201 = vst.msk [vmem:[#allocation3 + $0xa] sm:$0x1] %vm1701, 0.0
    %3202 = vst.msk [vmem:[#allocation3 + $0xd] sm:$0x1] %vm1701, 0.0
    %3203 = vst.msk [vmem:[#allocation3 + $0x9] sm:$0xc] %vm2846, %v3172
    %v3204 = vld [vmem:[#allocation3] sm:$0x3]
    %v3205 = vld [vmem:[#allocation3 + $0xa] sm:$0x3]
    %v3207 = vrot.slane %v3205, 6
    %v3209 = vsel %vm2534, %v3204, %v3207
    %v3210 = vld [vmem:[#allocation3 + $0x2] sm:$0x3]
    %v3211 = vld [vmem:[#allocation3 + $0xc] sm:$0x3]
    %v3213 = vrot.slane %v3211, 6
    %v3215 = vsel %vm2534, %v3210, %v3213
    %3217 = vrot.lane.b32.xlu0 %v3172, 64
    %v3218 = vpop.permute.xlu0 %3217
    %v3220 = vsel %vm1704, %v3209, %v3218
    %v3221 = vpack.c.bf16 %v3220, %v3220
    %v3222 = vpack.c.bf16 %v3215, %v3215
    %v3247 = vunpack.c.l.b16 %v3174
    %v3248 = vunpack.c.l.b16 %v3175
    %v3249 = vunpack.c.l.b16 %v3176
    %v3250 = vunpack.c.l.b16 %v3177
    %v3251 = vunpack.c.l.b16 %v3178
    %v3252 = vunpack.c.l.b16 %v3179
    %v3253 = vunpack.c.l.b16 %v3180
    %v3254 = vunpack.c.l.b16 %v3181
    %v3255 = vunpack.c.l.b16 %v3182
    %v3256 = vunpack.c.l.b16 %v3183
    %v3257 = vunpack.c.l.b16 %v3184
    %v3258 = vunpack.c.l.b16 %v3185
    %v3259 = vunpack.c.l.b16 %v3186
    %v3260 = vunpack.c.l.b16 %v3187
    %v3261 = vunpack.c.l.b16 %v3188
    %v3262 = vunpack.c.l.b16 %v3189
    %v3263 = vunpack.c.l.b16 %v3190
    %v3264 = vunpack.c.l.b16 %v3191
    %v3265 = vunpack.c.l.b16 %v3192
    %v3266 = vunpack.c.l.b16 %v3193
    %v3267 = vunpack.c.l.b16 %v3194
    %v3268 = vunpack.c.l.b16 %v3195
    %v3269 = vunpack.c.l.b16 %v3196
    %v3270 = vunpack.c.l.b16 %v3197
    %v3271 = vpack.c.b16 %v3248, %v3247
    %v3272 = vpack.c.b16 %v3250, %v3249
    %v3273 = vpack.c.b16 %v3252, %v3251
    %v3274 = vpack.c.b16 %v3254, %v3253
    %v3275 = vpack.c.b16 %v3256, %v3255
    %v3276 = vpack.c.b16 %v3258, %v3257
    %v3277 = vpack.c.b16 %v3260, %v3259
    %v3278 = vpack.c.b16 %v3262, %v3261
    %v3279 = vpack.c.b16 %v3264, %v3263
    %v3280 = vpack.c.b16 %v3266, %v3265
    %v3281 = vpack.c.b16 %v3268, %v3267
    %v3282 = vpack.c.b16 %v3270, %v3269
    %v3296 = vsel %vm1704, %v3222, 0
    %3298 = vmatprep.subr.bf16.mxu0 0
    %3299 = vmatpush1.bf16.msra.mxu0 %v3278
    %3300 = vmatprep.subr.bf16.mxu0 0
    %3301 = vmatpush1.bf16.msra.mxu0 %v3277
    %3302 = vmatprep.subr.bf16.mxu0 0
    %3303 = vmatpush1.bf16.msra.mxu0 %v3276
    %3304 = vmatprep.subr.bf16.mxu0 0
    %3305 = vmatpush1.bf16.msra.mxu0 %v3275
    %3306 = vmatprep.subr.bf16.mxu0 0
    %3307 = vmatpush1.bf16.msra.mxu0 %v3274
    %3308 = vmatprep.subr.bf16.mxu0 0
    %3309 = vmatpush1.bf16.msra.mxu0 %v3273
    %3310 = vmatprep.subr.bf16.mxu0 0
    %3311 = vmatpush1.bf16.msra.mxu0 %v3272
    %3312 = vmatprep.subr.bf16.mxu0 0
    %3313 = vmatpush1.bf16.msra.mxu0 %v3271
    %3314 = vmatprep.subr.bf16.mxu0 0
    %3315 = vmatpush2.bf16.msra.mxu0 0
    %3316 = vmatprep.subr.bf16.mxu0 0
    %3317 = vmatpush2.bf16.msra.mxu0 0
    %3318 = vmatprep.subr.bf16.mxu0 0
    %3319 = vmatpush2.bf16.msra.mxu0 0
    %3320 = vmatprep.subr.bf16.mxu0 0
    %3321 = vmatpush2.bf16.msra.mxu0 0
    %3322 = vmatprep.subr.bf16.mxu0 0
    %3323 = vmatpush2.bf16.msra.mxu0 %v3282
    %3324 = vmatprep.subr.bf16.mxu0 0
    %3325 = vmatpush2.bf16.msra.mxu0 %v3281
    %3326 = vmatprep.subr.bf16.mxu0 0
    %3327 = vmatpush2.bf16.msra.mxu0 %v3280
    %3328 = vmatprep.subr.bf16.mxu0 0
    %3329 = vmatpush2.bf16.msra.mxu0 %v3279
    %3330 = vmatprep.mubr.bf16.mxu0 %v3296
    %3331 = vmatmul.mubr.bf16.gmra.mxu0 %v3221
    %v3332 = vpop.f32.mrf.mxu0
    %v3333 = vadd.f32 %v2977, %v3332
    %v3334 = vpop.f32.mrf.mxu0
    %v3335 = vpop.f32.mrf.mxu0
    %v3336 = vpop.f32.mrf.mxu0
    %3337 = vdwg.mxu0
    %3338 = vst.msk [vmem:[#allocation3] sm:$0x1] %vm1701, 0.0
    %3339 = vst.msk [vmem:[#allocation3 + $0x3] sm:$0x1] %vm1701, 0.0
    %3340 = vst.msk [vmem:[#allocation3 + $0x1] sm:$0x3] %vm2842, %v3333
    %3341 = vst.msk [vmem:[#allocation3 + $0xa] sm:$0x1] %vm1701, 0.0
    %3342 = vst.msk [vmem:[#allocation3 + $0xd] sm:$0x1] %vm1701, 0.0
    %3343 = vst.msk [vmem:[#allocation3 + $0x9] sm:$0xc] %vm2846, %v3333
    %v3344 = vld [vmem:[%s1709] ss:$2 sm:$0x1]
    %v3345 = vld [vmem:[%s1711] ss:$2 sm:$0x1]
    %v3347 = vrot.slane %v3345, 7
    %vm3349 = vcmask 1040384
    %v3350 = vsel %vm3349, %v3344, %v3347
    %v3351 = vpack.c.bf16 %v3350, %v3350
    %s3352 = scalar_lea.vmem %s3, 64
    %v3353 = vld [vmem:[%s3352] sm:$0xf]
    %v3354 = vld [vmem:[%s3352 + $0x4] sm:$0xf]
    %v3355 = vld [vmem:[%s3352 + $0x8] sm:$0xf]
    %v3356 = vld [vmem:[%s3352 + $0xc] sm:$0xf]
    %v3357 = vld [vmem:[%s3352 + $0x10] sm:$0xf]
    %v3358 = vld [vmem:[%s3352 + $0x14] sm:$0xf]
    %v3359 = vld [vmem:[%s3352 + $0x18] sm:$0xf]
    %v3360 = vld [vmem:[%s3352 + $0x1c] sm:$0xf]
    %v3361 = vld [vmem:[%s4 + $0x1b] sm:$0x1]
    %v3362 = vlaneseq
    %v3363 = vshrl.u32 %v3362, 7
    %v3364 = vsub.s32 0, %v3363
    %v3365 = vrot.slane %v3361, %v3364
    %v3374 = vunpack.c.l.b16 %v3353
    %v3375 = vunpack.c.l.b16 %v3354
    %v3376 = vunpack.c.l.b16 %v3355
    %v3377 = vunpack.c.l.b16 %v3356
    %v3378 = vunpack.c.l.b16 %v3357
    %v3379 = vunpack.c.l.b16 %v3358
    %v3380 = vunpack.c.l.b16 %v3359
    %v3381 = vunpack.c.l.b16 %v3360
    %v3382 = vpack.c.b16 %v3375, %v3374
    %v3383 = vpack.c.b16 %v3377, %v3376
    %v3384 = vpack.c.b16 %v3379, %v3378
    %v3385 = vpack.c.b16 %v3381, %v3380
    %v3391 = vsel %vm1704, %v3351, 0
    %3393 = vmatprep.subr.bf16.mxu0 0
    %3394 = vmatpush1.bf16.msra.mxu0 0
    %3395 = vmatprep.subr.bf16.mxu0 0
    %3396 = vmatpush1.bf16.msra.mxu0 0
    %3397 = vmatprep.subr.bf16.mxu0 0
    %3398 = vmatpush1.bf16.msra.mxu0 0
    %3399 = vmatprep.subr.bf16.mxu0 0
    %3400 = vmatpush1.bf16.msra.mxu0 0
    %3401 = vmatprep.subr.bf16.mxu0 0
    %3402 = vmatpush1.bf16.msra.mxu0 %v3385
    %3403 = vmatprep.subr.bf16.mxu0 0
    %3404 = vmatpush1.bf16.msra.mxu0 %v3384
    %3405 = vmatprep.subr.bf16.mxu0 0
    %3406 = vmatpush1.bf16.msra.mxu0 %v3383
    %3407 = vmatprep.subr.bf16.mxu0 0
    %3408 = vmatpush1.bf16.msra.mxu0 %v3382
    %3409 = vmatprep.subr.bf16.mxu0 0
    %3410 = vmatpush2.bf16.msra.mxu0 0
    %3411 = vmatprep.subr.bf16.mxu0 0
    %3412 = vmatpush2.bf16.msra.mxu0 0
    %3413 = vmatprep.subr.bf16.mxu0 0
    %3414 = vmatpush2.bf16.msra.mxu0 0
    %3415 = vmatprep.subr.bf16.mxu0 0
    %3416 = vmatpush2.bf16.msra.mxu0 0
    %3417 = vmatprep.subr.bf16.mxu0 0
    %3418 = vmatpush2.bf16.msra.mxu0 0
    %3419 = vmatprep.subr.bf16.mxu0 0
    %3420 = vmatpush2.bf16.msra.mxu0 0
    %3421 = vmatprep.subr.bf16.mxu0 0
    %3422 = vmatpush2.bf16.msra.mxu0 0
    %3423 = vmatprep.subr.bf16.mxu0 0
    %3424 = vmatpush2.bf16.msra.mxu0 0
    %3425 = vmatprep.mubr.bf16.mxu0 0
    %3426 = vmatmul.mubr.bf16.gmra.mxu0 %v3391
    %v3427 = vpop.f32.mrf.mxu0
    %v3428 = vadd.f32 %v3365, %v3427
    %v3429 = vpop.f32.mrf.mxu0
    %v3430 = vpop.f32.mrf.mxu0
    %v3431 = vpop.f32.mrf.mxu0
    %3432 = vdwg.mxu0
    %v3433 = vld [vmem:[%s4 + $0x11] sm:$0x1]
    %v3434 = vlaneseq
    %v3435 = vshrl.u32 %v3434, 7
    %v3436 = vsub.s32 0, %v3435
    %v3437 = vrot.slane %v3433, %v3436
    %v3438 = vmul.f32 %v3333, %v3437
    %v3439 = vld [vmem:[%s4 + $0x12] sm:$0x1]
    %v3440 = vlaneseq
    %v3441 = vshrl.u32 %v3440, 7
    %v3442 = vsub.s32 0, %v3441
    %v3443 = vrot.slane %v3439, %v3442
    %v3444 = vadd.f32 %v3438, %v3443
    %v3445 = vmax.f32 %v3444, 0.0
    %s3446 = scalar_lea.vmem [#allocation6], 768
    %v3447 = vld [vmem:[%s3446] sm:$0xf]
    %v3448 = vld [vmem:[%s3446 + $0x4] sm:$0xf]
    %v3449 = vld [vmem:[%s3446 + $0x8] sm:$0xf]
    %v3450 = vld [vmem:[%s3446 + $0xc] sm:$0xf]
    %v3451 = vld [vmem:[%s3446 + $0x10] sm:$0xf]
    %v3452 = vld [vmem:[%s3446 + $0x14] sm:$0xf]
    %v3453 = vld [vmem:[%s3446 + $0x18] sm:$0xf]
    %v3454 = vld [vmem:[%s3446 + $0x1c] sm:$0xf]
    %v3455 = vld [vmem:[%s3446 + $0x20] sm:$0xf]
    %v3456 = vld [vmem:[%s3446 + $0x24] sm:$0xf]
    %v3457 = vld [vmem:[%s3446 + $0x28] sm:$0xf]
    %v3458 = vld [vmem:[%s3446 + $0x2c] sm:$0xf]
    %v3459 = vld [vmem:[%s3446 + $0x30] sm:$0xf]
    %v3460 = vld [vmem:[%s3446 + $0x34] sm:$0xf]
    %v3461 = vld [vmem:[%s3446 + $0x38] sm:$0xf]
    %v3462 = vld [vmem:[%s3446 + $0x3c] sm:$0xf]
    %v3463 = vld [vmem:[%s3446 + $0x40] sm:$0xf]
    %v3464 = vld [vmem:[%s3446 + $0x44] sm:$0xf]
    %v3465 = vld [vmem:[%s3446 + $0x48] sm:$0xf]
    %v3466 = vld [vmem:[%s3446 + $0x4c] sm:$0xf]
    %v3467 = vld [vmem:[%s3446 + $0x50] sm:$0xf]
    %v3468 = vld [vmem:[%s3446 + $0x54] sm:$0xf]
    %v3469 = vld [vmem:[%s3446 + $0x58] sm:$0xf]
    %v3470 = vld [vmem:[%s3446 + $0x5c] sm:$0xf]
    %3471 = vst.msk [vmem:[#allocation3] sm:$0x1] %vm1701, 0.0
    %3472 = vst.msk [vmem:[#allocation3 + $0x3] sm:$0x1] %vm1701, 0.0
    %3473 = vst.msk [vmem:[#allocation3 + $0x1] sm:$0x3] %vm2842, %v3445
    %3474 = vst.msk [vmem:[#allocation3 + $0xa] sm:$0x1] %vm1701, 0.0
    %3475 = vst.msk [vmem:[#allocation3 + $0xd] sm:$0x1] %vm1701, 0.0
    %3476 = vst.msk [vmem:[#allocation3 + $0x9] sm:$0xc] %vm2846, %v3445
    %v3477 = vld [vmem:[#allocation3] ss:$2 sm:$0x1]
    %v3478 = vld [vmem:[%s1845] ss:$2 sm:$0x1]
    %v3480 = vrot.slane %v3478, 7
    %v3482 = vsel %vm3349, %v3477, %v3480
    %v3483 = vld [vmem:[%s1709] ss:$2 sm:$0x1]
    %v3484 = vld [vmem:[%s1711] ss:$2 sm:$0x1]
    %v3486 = vrot.slane %v3484, 7
    %v3488 = vsel %vm3349, %v3483, %v3486
    %v3489 = vld [vmem:[%s1857] ss:$2 sm:$0x1]
    %v3490 = vld [vmem:[%s1859] ss:$2 sm:$0x1]
    %v3492 = vrot.slane %v3490, 7
    %v3494 = vsel %vm3349, %v3489, %v3492
    %3496 = vrot.lane.b32.xlu0 %v3488, 64
    %v3497 = vpop.permute.xlu0 %3496
    %v3499 = vsel %vm1704, %v3482, %v3497
    %v3500 = vpack.c.bf16 %v3499, %v3499
    %v3501 = vpack.c.bf16 %v3494, %v3494
    %v3526 = vunpack.c.l.b16 %v3447
    %v3527 = vunpack.c.l.b16 %v3448
    %v3528 = vunpack.c.l.b16 %v3449
    %v3529 = vunpack.c.l.b16 %v3450
    %v3530 = vunpack.c.l.b16 %v3451
    %v3531 = vunpack.c.l.b16 %v3452
    %v3532 = vunpack.c.l.b16 %v3453
    %v3533 = vunpack.c.l.b16 %v3454
    %v3534 = vunpack.c.l.b16 %v3455
    %v3535 = vunpack.c.l.b16 %v3456
    %v3536 = vunpack.c.l.b16 %v3457
    %v3537 = vunpack.c.l.b16 %v3458
    %v3538 = vunpack.c.l.b16 %v3459
    %v3539 = vunpack.c.l.b16 %v3460
    %v3540 = vunpack.c.l.b16 %v3461
    %v3541 = vunpack.c.l.b16 %v3462
    %v3542 = vunpack.c.l.b16 %v3463
    %v3543 = vunpack.c.l.b16 %v3464
    %v3544 = vunpack.c.l.b16 %v3465
    %v3545 = vunpack.c.l.b16 %v3466
    %v3546 = vunpack.c.l.b16 %v3467
    %v3547 = vunpack.c.l.b16 %v3468
    %v3548 = vunpack.c.l.b16 %v3469
    %v3549 = vunpack.c.l.b16 %v3470
    %v3550 = vpack.c.b16 %v3527, %v3526
    %v3551 = vpack.c.b16 %v3529, %v3528
    %v3552 = vpack.c.b16 %v3531, %v3530
    %v3553 = vpack.c.b16 %v3533, %v3532
    %v3554 = vpack.c.b16 %v3535, %v3534
    %v3555 = vpack.c.b16 %v3537, %v3536
    %v3556 = vpack.c.b16 %v3539, %v3538
    %v3557 = vpack.c.b16 %v3541, %v3540
    %v3558 = vpack.c.b16 %v3543, %v3542
    %v3559 = vpack.c.b16 %v3545, %v3544
    %v3560 = vpack.c.b16 %v3547, %v3546
    %v3561 = vpack.c.b16 %v3549, %v3548
    %v3575 = vsel %vm1704, %v3501, 0
    %3577 = vmatprep.subr.bf16.mxu0 0
    %3578 = vmatpush1.bf16.msra.mxu0 %v3557
    %3579 = vmatprep.subr.bf16.mxu0 0
    %3580 = vmatpush1.bf16.msra.mxu0 %v3556
    %3581 = vmatprep.subr.bf16.mxu0 0
    %3582 = vmatpush1.bf16.msra.mxu0 %v3555
    %3583 = vmatprep.subr.bf16.mxu0 0
    %3584 = vmatpush1.bf16.msra.mxu0 %v3554
    %3585 = vmatprep.subr.bf16.mxu0 0
    %3586 = vmatpush1.bf16.msra.mxu0 %v3553
    %3587 = vmatprep.subr.bf16.mxu0 0
    %3588 = vmatpush1.bf16.msra.mxu0 %v3552
    %3589 = vmatprep.subr.bf16.mxu0 0
    %3590 = vmatpush1.bf16.msra.mxu0 %v3551
    %3591 = vmatprep.subr.bf16.mxu0 0
    %3592 = vmatpush1.bf16.msra.mxu0 %v3550
    %3593 = vmatprep.subr.bf16.mxu0 0
    %3594 = vmatpush2.bf16.msra.mxu0 0
    %3595 = vmatprep.subr.bf16.mxu0 0
    %3596 = vmatpush2.bf16.msra.mxu0 0
    %3597 = vmatprep.subr.bf16.mxu0 0
    %3598 = vmatpush2.bf16.msra.mxu0 0
    %3599 = vmatprep.subr.bf16.mxu0 0
    %3600 = vmatpush2.bf16.msra.mxu0 0
    %3601 = vmatprep.subr.bf16.mxu0 0
    %3602 = vmatpush2.bf16.msra.mxu0 %v3561
    %3603 = vmatprep.subr.bf16.mxu0 0
    %3604 = vmatpush2.bf16.msra.mxu0 %v3560
    %3605 = vmatprep.subr.bf16.mxu0 0
    %3606 = vmatpush2.bf16.msra.mxu0 %v3559
    %3607 = vmatprep.subr.bf16.mxu0 0
    %3608 = vmatpush2.bf16.msra.mxu0 %v3558
    %3609 = vmatprep.mubr.bf16.mxu0 %v3575
    %3610 = vmatmul.mubr.bf16.gmra.mxu0 %v3500
    %v3611 = vpop.f32.mrf.mxu0
    %v3612 = vadd.f32 0.0, %v3611
    %v3613 = vpop.f32.mrf.mxu0
    %v3614 = vpop.f32.mrf.mxu0
    %v3615 = vpop.f32.mrf.mxu0
    %3616 = vdwg.mxu0
    %v3617 = vld [vmem:[%s4 + $0x13] sm:$0x1]
    %v3618 = vlaneseq
    %v3619 = vshrl.u32 %v3618, 7
    %v3620 = vsub.s32 0, %v3619
    %v3621 = vrot.slane %v3617, %v3620
    %v3622 = vmul.f32 %v3612, %v3621
    %v3623 = vld [vmem:[%s4 + $0x14] sm:$0x1]
    %v3624 = vlaneseq
    %v3625 = vshrl.u32 %v3624, 7
    %v3626 = vsub.s32 0, %v3625
    %v3627 = vrot.slane %v3623, %v3626
    %v3628 = vadd.f32 %v3622, %v3627
    %v3629 = vmax.f32 %v3628, 0.0
    %s3630 = scalar_lea.vmem [#allocation6], 864
    %v3631 = vld [vmem:[%s3630] sm:$0xf]
    %v3632 = vld [vmem:[%s3630 + $0x4] sm:$0xf]
    %v3633 = vld [vmem:[%s3630 + $0x8] sm:$0xf]
    %v3634 = vld [vmem:[%s3630 + $0xc] sm:$0xf]
    %v3635 = vld [vmem:[%s3630 + $0x10] sm:$0xf]
    %v3636 = vld [vmem:[%s3630 + $0x14] sm:$0xf]
    %v3637 = vld [vmem:[%s3630 + $0x18] sm:$0xf]
    %v3638 = vld [vmem:[%s3630 + $0x1c] sm:$0xf]
    %v3639 = vld [vmem:[%s3630 + $0x20] sm:$0xf]
    %v3640 = vld [vmem:[%s3630 + $0x24] sm:$0xf]
    %v3641 = vld [vmem:[%s3630 + $0x28] sm:$0xf]
    %v3642 = vld [vmem:[%s3630 + $0x2c] sm:$0xf]
    %v3643 = vld [vmem:[%s3630 + $0x30] sm:$0xf]
    %v3644 = vld [vmem:[%s3630 + $0x34] sm:$0xf]
    %v3645 = vld [vmem:[%s3630 + $0x38] sm:$0xf]
    %v3646 = vld [vmem:[%s3630 + $0x3c] sm:$0xf]
    %v3647 = vld [vmem:[%s3630 + $0x40] sm:$0xf]
    %v3648 = vld [vmem:[%s3630 + $0x44] sm:$0xf]
    %v3649 = vld [vmem:[%s3630 + $0x48] sm:$0xf]
    %v3650 = vld [vmem:[%s3630 + $0x4c] sm:$0xf]
    %v3651 = vld [vmem:[%s3630 + $0x50] sm:$0xf]
    %v3652 = vld [vmem:[%s3630 + $0x54] sm:$0xf]
    %v3653 = vld [vmem:[%s3630 + $0x58] sm:$0xf]
    %v3654 = vld [vmem:[%s3630 + $0x5c] sm:$0xf]
    %3655 = vst.msk [vmem:[#allocation3] sm:$0x1] %vm1701, 0.0
    %3656 = vst.msk [vmem:[#allocation3 + $0x2] sm:$0x1] %vm1701, 0.0
    %3657 = vst.msk [vmem:[#allocation3 + $0x1] sm:$0x1] %vm1701, %v3629
    %3658 = vst.msk [vmem:[#allocation3 + $0xa] sm:$0x1] %vm1701, 0.0
    %3659 = vst.msk [vmem:[#allocation3 + $0xc] sm:$0x1] %vm1701, 0.0
    %vm3660 = vcmask 517121
    %3661 = vst.msk [vmem:[#allocation3 + $0xa] sm:$0x2] %vm3660, %v3629
    %v3662 = vld [vmem:[#allocation3] sm:$0x1]
    %v3663 = vld [vmem:[#allocation3 + $0xa] sm:$0x1]
    %v3665 = vrot.slane %v3663, 7
    %v3667 = vsel %vm3349, %v3662, %v3665
    %v3668 = vld [vmem:[#allocation3 + $0x2] sm:$0x1]
    %v3669 = vld [vmem:[#allocation3 + $0xc] sm:$0x1]
    %v3671 = vrot.slane %v3669, 7
    %v3673 = vsel %vm3349, %v3668, %v3671
    %3675 = vrot.lane.b32.xlu0 %v3629, 64
    %v3676 = vpop.permute.xlu0 %3675
    %v3678 = vsel %vm1704, %v3667, %v3676
    %v3679 = vpack.c.bf16 %v3678, %v3678
    %v3680 = vpack.c.bf16 %v3673, %v3673
    %v3705 = vunpack.c.l.b16 %v3631
    %v3706 = vunpack.c.l.b16 %v3632
    %v3707 = vunpack.c.l.b16 %v3633
    %v3708 = vunpack.c.l.b16 %v3634
    %v3709 = vunpack.c.l.b16 %v3635
    %v3710 = vunpack.c.l.b16 %v3636
    %v3711 = vunpack.c.l.b16 %v3637
    %v3712 = vunpack.c.l.b16 %v3638
    %v3713 = vunpack.c.l.b16 %v3639
    %v3714 = vunpack.c.l.b16 %v3640
    %v3715 = vunpack.c.l.b16 %v3641
    %v3716 = vunpack.c.l.b16 %v3642
    %v3717 = vunpack.c.l.b16 %v3643
    %v3718 = vunpack.c.l.b16 %v3644
    %v3719 = vunpack.c.l.b16 %v3645
    %v3720 = vunpack.c.l.b16 %v3646
    %v3721 = vunpack.c.l.b16 %v3647
    %v3722 = vunpack.c.l.b16 %v3648
    %v3723 = vunpack.c.l.b16 %v3649
    %v3724 = vunpack.c.l.b16 %v3650
    %v3725 = vunpack.c.l.b16 %v3651
    %v3726 = vunpack.c.l.b16 %v3652
    %v3727 = vunpack.c.l.b16 %v3653
    %v3728 = vunpack.c.l.b16 %v3654
    %v3729 = vpack.c.b16 %v3706, %v3705
    %v3730 = vpack.c.b16 %v3708, %v3707
    %v3731 = vpack.c.b16 %v3710, %v3709
    %v3732 = vpack.c.b16 %v3712, %v3711
    %v3733 = vpack.c.b16 %v3714, %v3713
    %v3734 = vpack.c.b16 %v3716, %v3715
    %v3735 = vpack.c.b16 %v3718, %v3717
    %v3736 = vpack.c.b16 %v3720, %v3719
    %v3737 = vpack.c.b16 %v3722, %v3721
    %v3738 = vpack.c.b16 %v3724, %v3723
    %v3739 = vpack.c.b16 %v3726, %v3725
    %v3740 = vpack.c.b16 %v3728, %v3727
    %v3754 = vsel %vm1704, %v3680, 0
    %3756 = vmatprep.subr.bf16.mxu0 0
    %3757 = vmatpush1.bf16.msra.mxu0 %v3736
    %3758 = vmatprep.subr.bf16.mxu0 0
    %3759 = vmatpush1.bf16.msra.mxu0 %v3735
    %3760 = vmatprep.subr.bf16.mxu0 0
    %3761 = vmatpush1.bf16.msra.mxu0 %v3734
    %3762 = vmatprep.subr.bf16.mxu0 0
    %3763 = vmatpush1.bf16.msra.mxu0 %v3733
    %3764 = vmatprep.subr.bf16.mxu0 0
    %3765 = vmatpush1.bf16.msra.mxu0 %v3732
    %3766 = vmatprep.subr.bf16.mxu0 0
    %3767 = vmatpush1.bf16.msra.mxu0 %v3731
    %3768 = vmatprep.subr.bf16.mxu0 0
    %3769 = vmatpush1.bf16.msra.mxu0 %v3730
    %3770 = vmatprep.subr.bf16.mxu0 0
    %3771 = vmatpush1.bf16.msra.mxu0 %v3729
    %3772 = vmatprep.subr.bf16.mxu0 0
    %3773 = vmatpush2.bf16.msra.mxu0 0
    %3774 = vmatprep.subr.bf16.mxu0 0
    %3775 = vmatpush2.bf16.msra.mxu0 0
    %3776 = vmatprep.subr.bf16.mxu0 0
    %3777 = vmatpush2.bf16.msra.mxu0 0
    %3778 = vmatprep.subr.bf16.mxu0 0
    %3779 = vmatpush2.bf16.msra.mxu0 0
    %3780 = vmatprep.subr.bf16.mxu0 0
    %3781 = vmatpush2.bf16.msra.mxu0 %v3740
    %3782 = vmatprep.subr.bf16.mxu0 0
    %3783 = vmatpush2.bf16.msra.mxu0 %v3739
    %3784 = vmatprep.subr.bf16.mxu0 0
    %3785 = vmatpush2.bf16.msra.mxu0 %v3738
    %3786 = vmatprep.subr.bf16.mxu0 0
    %3787 = vmatpush2.bf16.msra.mxu0 %v3737
    %3788 = vmatprep.mubr.bf16.mxu0 %v3754
    %3789 = vmatmul.mubr.bf16.gmra.mxu0 %v3679
    %v3790 = vpop.f32.mrf.mxu0
    %v3791 = vadd.f32 %v3428, %v3790
    %v3792 = vpop.f32.mrf.mxu0
    %v3793 = vpop.f32.mrf.mxu0
    %v3794 = vpop.f32.mrf.mxu0
    %3795 = vdwg.mxu0
    %v3796 = vld [vmem:[%s4 + $0x15] sm:$0x1]
    %v3797 = vlaneseq
    %v3798 = vshrl.u32 %v3797, 7
    %v3799 = vsub.s32 0, %v3798
    %v3800 = vrot.slane %v3796, %v3799
    %v3801 = vmul.f32 %v3791, %v3800
    %v3802 = vld [vmem:[%s4 + $0x16] sm:$0x1]
    %v3803 = vlaneseq
    %v3804 = vshrl.u32 %v3803, 7
    %v3805 = vsub.s32 0, %v3804
    %v3806 = vrot.slane %v3802, %v3805
    %v3807 = vadd.f32 %v3801, %v3806
    %v3808 = vmax.f32 %v3807, 0.0
    %s3809 = scalar_lea.vmem [#allocation6], 960
    %v3810 = vld [vmem:[%s3809] sm:$0xf]
    %v3811 = vld [vmem:[%s3809 + $0x4] sm:$0xf]
    %v3812 = vld [vmem:[%s3809 + $0x8] sm:$0xf]
    %v3813 = vld [vmem:[%s3809 + $0xc] sm:$0xf]
    %v3814 = vld [vmem:[%s3809 + $0x10] sm:$0xf]
    %v3815 = vld [vmem:[%s3809 + $0x14] sm:$0xf]
    %v3816 = vld [vmem:[%s3809 + $0x18] sm:$0xf]
    %v3817 = vld [vmem:[%s3809 + $0x1c] sm:$0xf]
    %v3818 = vld [vmem:[%s3809 + $0x20] sm:$0xf]
    %v3819 = vld [vmem:[%s3809 + $0x24] sm:$0xf]
    %v3820 = vld [vmem:[%s3809 + $0x28] sm:$0xf]
    %v3821 = vld [vmem:[%s3809 + $0x2c] sm:$0xf]
    %v3822 = vld [vmem:[%s3809 + $0x30] sm:$0xf]
    %v3823 = vld [vmem:[%s3809 + $0x34] sm:$0xf]
    %v3824 = vld [vmem:[%s3809 + $0x38] sm:$0xf]
    %v3825 = vld [vmem:[%s3809 + $0x3c] sm:$0xf]
    %v3826 = vld [vmem:[%s3809 + $0x40] sm:$0xf]
    %v3827 = vld [vmem:[%s3809 + $0x44] sm:$0xf]
    %v3828 = vld [vmem:[%s3809 + $0x48] sm:$0xf]
    %v3829 = vld [vmem:[%s3809 + $0x4c] sm:$0xf]
    %v3830 = vld [vmem:[%s3809 + $0x50] sm:$0xf]
    %v3831 = vld [vmem:[%s3809 + $0x54] sm:$0xf]
    %v3832 = vld [vmem:[%s3809 + $0x58] sm:$0xf]
    %v3833 = vld [vmem:[%s3809 + $0x5c] sm:$0xf]
    %3834 = vst.msk [vmem:[#allocation3] sm:$0x1] %vm1701, 0.0
    %3835 = vst.msk [vmem:[#allocation3 + $0x2] sm:$0x1] %vm1701, 0.0
    %3836 = vst.msk [vmem:[#allocation3 + $0x1] sm:$0x1] %vm1701, %v3808
    %3837 = vst.msk [vmem:[#allocation3 + $0xa] sm:$0x1] %vm1701, 0.0
    %3838 = vst.msk [vmem:[#allocation3 + $0xc] sm:$0x1] %vm1701, 0.0
    %3839 = vst.msk [vmem:[#allocation3 + $0xa] sm:$0x2] %vm3660, %v3808
    %v3840 = vld [vmem:[#allocation3] sm:$0x1]
    %v3841 = vld [vmem:[#allocation3 + $0xa] sm:$0x1]
    %v3843 = vrot.slane %v3841, 7
    %v3845 = vsel %vm3349, %v3840, %v3843
    %v3846 = vld [vmem:[#allocation3 + $0x2] sm:$0x1]
    %v3847 = vld [vmem:[#allocation3 + $0xc] sm:$0x1]
    %v3849 = vrot.slane %v3847, 7
    %v3851 = vsel %vm3349, %v3846, %v3849
    %3853 = vrot.lane.b32.xlu0 %v3808, 64
    %v3854 = vpop.permute.xlu0 %3853
    %v3856 = vsel %vm1704, %v3845, %v3854
    %v3857 = vpack.c.bf16 %v3856, %v3856
    %v3858 = vpack.c.bf16 %v3851, %v3851
    %v3883 = vunpack.c.l.b16 %v3810
    %v3884 = vunpack.c.l.b16 %v3811
    %v3885 = vunpack.c.l.b16 %v3812
    %v3886 = vunpack.c.l.b16 %v3813
    %v3887 = vunpack.c.l.b16 %v3814
    %v3888 = vunpack.c.l.b16 %v3815
    %v3889 = vunpack.c.l.b16 %v3816
    %v3890 = vunpack.c.l.b16 %v3817
    %v3891 = vunpack.c.l.b16 %v3818
    %v3892 = vunpack.c.l.b16 %v3819
    %v3893 = vunpack.c.l.b16 %v3820
    %v3894 = vunpack.c.l.b16 %v3821
    %v3895 = vunpack.c.l.b16 %v3822
    %v3896 = vunpack.c.l.b16 %v3823
    %v3897 = vunpack.c.l.b16 %v3824
    %v3898 = vunpack.c.l.b16 %v3825
    %v3899 = vunpack.c.l.b16 %v3826
    %v3900 = vunpack.c.l.b16 %v3827
    %v3901 = vunpack.c.l.b16 %v3828
    %v3902 = vunpack.c.l.b16 %v3829
    %v3903 = vunpack.c.l.b16 %v3830
    %v3904 = vunpack.c.l.b16 %v3831
    %v3905 = vunpack.c.l.b16 %v3832
    %v3906 = vunpack.c.l.b16 %v3833
    %v3907 = vpack.c.b16 %v3884, %v3883
    %v3908 = vpack.c.b16 %v3886, %v3885
    %v3909 = vpack.c.b16 %v3888, %v3887
    %v3910 = vpack.c.b16 %v3890, %v3889
    %v3911 = vpack.c.b16 %v3892, %v3891
    %v3912 = vpack.c.b16 %v3894, %v3893
    %v3913 = vpack.c.b16 %v3896, %v3895
    %v3914 = vpack.c.b16 %v3898, %v3897
    %v3915 = vpack.c.b16 %v3900, %v3899
    %v3916 = vpack.c.b16 %v3902, %v3901
    %v3917 = vpack.c.b16 %v3904, %v3903
    %v3918 = vpack.c.b16 %v3906, %v3905
    %v3932 = vsel %vm1704, %v3858, 0
    %3934 = vmatprep.subr.bf16.mxu0 0
    %3935 = vmatpush1.bf16.msra.mxu0 %v3914
    %3936 = vmatprep.subr.bf16.mxu0 0
    %3937 = vmatpush1.bf16.msra.mxu0 %v3913
    %3938 = vmatprep.subr.bf16.mxu0 0
    %3939 = vmatpush1.bf16.msra.mxu0 %v3912
    %3940 = vmatprep.subr.bf16.mxu0 0
    %3941 = vmatpush1.bf16.msra.mxu0 %v3911
    %3942 = vmatprep.subr.bf16.mxu0 0
    %3943 = vmatpush1.bf16.msra.mxu0 %v3910
    %3944 = vmatprep.subr.bf16.mxu0 0
    %3945 = vmatpush1.bf16.msra.mxu0 %v3909
    %3946 = vmatprep.subr.bf16.mxu0 0
    %3947 = vmatpush1.bf16.msra.mxu0 %v3908
    %3948 = vmatprep.subr.bf16.mxu0 0
    %3949 = vmatpush1.bf16.msra.mxu0 %v3907
    %3950 = vmatprep.subr.bf16.mxu0 0
    %3951 = vmatpush2.bf16.msra.mxu0 0
    %3952 = vmatprep.subr.bf16.mxu0 0
    %3953 = vmatpush2.bf16.msra.mxu0 0
    %3954 = vmatprep.subr.bf16.mxu0 0
    %3955 = vmatpush2.bf16.msra.mxu0 0
    %3956 = vmatprep.subr.bf16.mxu0 0
    %3957 = vmatpush2.bf16.msra.mxu0 0
    %3958 = vmatprep.subr.bf16.mxu0 0
    %3959 = vmatpush2.bf16.msra.mxu0 %v3918
    %3960 = vmatprep.subr.bf16.mxu0 0
    %3961 = vmatpush2.bf16.msra.mxu0 %v3917
    %3962 = vmatprep.subr.bf16.mxu0 0
    %3963 = vmatpush2.bf16.msra.mxu0 %v3916
    %3964 = vmatprep.subr.bf16.mxu0 0
    %3965 = vmatpush2.bf16.msra.mxu0 %v3915
    %3966 = vmatprep.mubr.bf16.mxu0 %v3932
    %3967 = vmatmul.mubr.bf16.gmra.mxu0 %v3857
    %v3968 = vpop.f32.mrf.mxu0
    %v3969 = vadd.f32 0.0, %v3968
    %v3970 = vpop.f32.mrf.mxu0
    %v3971 = vpop.f32.mrf.mxu0
    %v3972 = vpop.f32.mrf.mxu0
    %3973 = vdwg.mxu0
    %v3974 = vld [vmem:[%s4 + $0x17] sm:$0x1]
    %v3975 = vlaneseq
    %v3976 = vshrl.u32 %v3975, 7
    %v3977 = vsub.s32 0, %v3976
    %v3978 = vrot.slane %v3974, %v3977
    %v3979 = vmul.f32 %v3969, %v3978
    %v3980 = vld [vmem:[%s4 + $0x18] sm:$0x1]
    %v3981 = vlaneseq
    %v3982 = vshrl.u32 %v3981, 7
    %v3983 = vsub.s32 0, %v3982
    %v3984 = vrot.slane %v3980, %v3983
    %v3985 = vadd.f32 %v3979, %v3984
    %v3986 = vmax.f32 %v3985, 0.0
    %s3987 = scalar_lea.vmem [#allocation6], 1056
    %v3988 = vld [vmem:[%s3987] sm:$0xf]
    %v3989 = vld [vmem:[%s3987 + $0x4] sm:$0xf]
    %v3990 = vld [vmem:[%s3987 + $0x8] sm:$0xf]
    %v3991 = vld [vmem:[%s3987 + $0xc] sm:$0xf]
    %v3992 = vld [vmem:[%s3987 + $0x10] sm:$0xf]
    %v3993 = vld [vmem:[%s3987 + $0x14] sm:$0xf]
    %v3994 = vld [vmem:[%s3987 + $0x18] sm:$0xf]
    %v3995 = vld [vmem:[%s3987 + $0x1c] sm:$0xf]
    %v3996 = vld [vmem:[%s3987 + $0x20] sm:$0xf]
    %v3997 = vld [vmem:[%s3987 + $0x24] sm:$0xf]
    %v3998 = vld [vmem:[%s3987 + $0x28] sm:$0xf]
    %v3999 = vld [vmem:[%s3987 + $0x2c] sm:$0xf]
    %v4000 = vld [vmem:[%s3987 + $0x30] sm:$0xf]
    %v4001 = vld [vmem:[%s3987 + $0x34] sm:$0xf]
    %v4002 = vld [vmem:[%s3987 + $0x38] sm:$0xf]
    %v4003 = vld [vmem:[%s3987 + $0x3c] sm:$0xf]
    %v4004 = vld [vmem:[%s3987 + $0x40] sm:$0xf]
    %v4005 = vld [vmem:[%s3987 + $0x44] sm:$0xf]
    %v4006 = vld [vmem:[%s3987 + $0x48] sm:$0xf]
    %v4007 = vld [vmem:[%s3987 + $0x4c] sm:$0xf]
    %v4008 = vld [vmem:[%s3987 + $0x50] sm:$0xf]
    %v4009 = vld [vmem:[%s3987 + $0x54] sm:$0xf]
    %v4010 = vld [vmem:[%s3987 + $0x58] sm:$0xf]
    %v4011 = vld [vmem:[%s3987 + $0x5c] sm:$0xf]
    %4012 = vst.msk [vmem:[#allocation3] sm:$0x1] %vm1701, 0.0
    %4013 = vst.msk [vmem:[#allocation3 + $0x2] sm:$0x1] %vm1701, 0.0
    %4014 = vst.msk [vmem:[#allocation3 + $0x1] sm:$0x1] %vm1701, %v3986
    %4015 = vst.msk [vmem:[#allocation3 + $0xa] sm:$0x1] %vm1701, 0.0
    %4016 = vst.msk [vmem:[#allocation3 + $0xc] sm:$0x1] %vm1701, 0.0
    %4017 = vst.msk [vmem:[#allocation3 + $0xa] sm:$0x2] %vm3660, %v3986
    %v4018 = vld [vmem:[#allocation3] sm:$0x1]
    %v4019 = vld [vmem:[#allocation3 + $0xa] sm:$0x1]
    %v4021 = vrot.slane %v4019, 7
    %v4023 = vsel %vm3349, %v4018, %v4021
    %v4024 = vld [vmem:[#allocation3 + $0x2] sm:$0x1]
    %v4025 = vld [vmem:[#allocation3 + $0xc] sm:$0x1]
    %v4027 = vrot.slane %v4025, 7
    %v4029 = vsel %vm3349, %v4024, %v4027
    %4031 = vrot.lane.b32.xlu0 %v3986, 64
    %v4032 = vpop.permute.xlu0 %4031
    %v4034 = vsel %vm1704, %v4023, %v4032
    %v4035 = vpack.c.bf16 %v4034, %v4034
    %v4036 = vpack.c.bf16 %v4029, %v4029
    %v4061 = vunpack.c.l.b16 %v3988
    %v4062 = vunpack.c.l.b16 %v3989
    %v4063 = vunpack.c.l.b16 %v3990
    %v4064 = vunpack.c.l.b16 %v3991
    %v4065 = vunpack.c.l.b16 %v3992
    %v4066 = vunpack.c.l.b16 %v3993
    %v4067 = vunpack.c.l.b16 %v3994
    %v4068 = vunpack.c.l.b16 %v3995
    %v4069 = vunpack.c.l.b16 %v3996
    %v4070 = vunpack.c.l.b16 %v3997
    %v4071 = vunpack.c.l.b16 %v3998
    %v4072 = vunpack.c.l.b16 %v3999
    %v4073 = vunpack.c.l.b16 %v4000
    %v4074 = vunpack.c.l.b16 %v4001
    %v4075 = vunpack.c.l.b16 %v4002
    %v4076 = vunpack.c.l.b16 %v4003
    %v4077 = vunpack.c.l.b16 %v4004
    %v4078 = vunpack.c.l.b16 %v4005
    %v4079 = vunpack.c.l.b16 %v4006
    %v4080 = vunpack.c.l.b16 %v4007
    %v4081 = vunpack.c.l.b16 %v4008
    %v4082 = vunpack.c.l.b16 %v4009
    %v4083 = vunpack.c.l.b16 %v4010
    %v4084 = vunpack.c.l.b16 %v4011
    %v4085 = vpack.c.b16 %v4062, %v4061
    %v4086 = vpack.c.b16 %v4064, %v4063
    %v4087 = vpack.c.b16 %v4066, %v4065
    %v4088 = vpack.c.b16 %v4068, %v4067
    %v4089 = vpack.c.b16 %v4070, %v4069
    %v4090 = vpack.c.b16 %v4072, %v4071
    %v4091 = vpack.c.b16 %v4074, %v4073
    %v4092 = vpack.c.b16 %v4076, %v4075
    %v4093 = vpack.c.b16 %v4078, %v4077
    %v4094 = vpack.c.b16 %v4080, %v4079
    %v4095 = vpack.c.b16 %v4082, %v4081
    %v4096 = vpack.c.b16 %v4084, %v4083
    %v4110 = vsel %vm1704, %v4036, 0
    %4112 = vmatprep.subr.bf16.mxu0 0
    %4113 = vmatpush1.bf16.msra.mxu0 %v4092
    %4114 = vmatprep.subr.bf16.mxu0 0
    %4115 = vmatpush1.bf16.msra.mxu0 %v4091
    %4116 = vmatprep.subr.bf16.mxu0 0
    %4117 = vmatpush1.bf16.msra.mxu0 %v4090
    %4118 = vmatprep.subr.bf16.mxu0 0
    %4119 = vmatpush1.bf16.msra.mxu0 %v4089
    %4120 = vmatprep.subr.bf16.mxu0 0
    %4121 = vmatpush1.bf16.msra.mxu0 %v4088
    %4122 = vmatprep.subr.bf16.mxu0 0
    %4123 = vmatpush1.bf16.msra.mxu0 %v4087
    %4124 = vmatprep.subr.bf16.mxu0 0
    %4125 = vmatpush1.bf16.msra.mxu0 %v4086
    %4126 = vmatprep.subr.bf16.mxu0 0
    %4127 = vmatpush1.bf16.msra.mxu0 %v4085
    %4128 = vmatprep.subr.bf16.mxu0 0
    %4129 = vmatpush2.bf16.msra.mxu0 0
    %4130 = vmatprep.subr.bf16.mxu0 0
    %4131 = vmatpush2.bf16.msra.mxu0 0
    %4132 = vmatprep.subr.bf16.mxu0 0
    %4133 = vmatpush2.bf16.msra.mxu0 0
    %4134 = vmatprep.subr.bf16.mxu0 0
    %4135 = vmatpush2.bf16.msra.mxu0 0
    %4136 = vmatprep.subr.bf16.mxu0 0
    %4137 = vmatpush2.bf16.msra.mxu0 %v4096
    %4138 = vmatprep.subr.bf16.mxu0 0
    %4139 = vmatpush2.bf16.msra.mxu0 %v4095
    %4140 = vmatprep.subr.bf16.mxu0 0
    %4141 = vmatpush2.bf16.msra.mxu0 %v4094
    %4142 = vmatprep.subr.bf16.mxu0 0
    %4143 = vmatpush2.bf16.msra.mxu0 %v4093
    %4144 = vmatprep.mubr.bf16.mxu0 %v4110
    %4145 = vmatmul.mubr.bf16.gmra.mxu0 %v4035
    %v4146 = vpop.f32.mrf.mxu0
    %v4147 = vadd.f32 %v3791, %v4146
    %v4148 = vpop.f32.mrf.mxu0
    %v4149 = vpop.f32.mrf.mxu0
    %v4150 = vpop.f32.mrf.mxu0
    %4151 = vdwg.mxu0
    %v4152 = vadd.f32 %v4147, 0.0
    %v4153 = vld [vmem:[%s5] sm:$0xff]
    %v4154 = vld [vmem:[%s5 + $0x8] sm:$0xff]
    %v4155 = vld [vmem:[%s5 + $0x10] sm:$0xff]
    %v4156 = vld [vmem:[%s5 + $0x18] sm:$0xff]
    %v4157 = vld [vmem:[%s5 + $0x20] sm:$0xff]
    %v4158 = vld [vmem:[%s5 + $0x28] sm:$0xff]
    %v4159 = vld [vmem:[%s5 + $0x30] sm:$0xff]
    %v4160 = vld [vmem:[%s5 + $0x38] sm:$0xff]
    %v4161 = vld [vmem:[%s6] sm:$0x1]
    %v4163 = vlaneseq
    %v4164 = vshrl.u32 %v4163, 7
    %v4165 = vsub.s32 0, %v4164
    %v4166 = vrot.slane %v4161, %v4165
    %v4169 = vsel %vm1704, %v4152, 0
    %4171 = vmatprep.subr.mxu0 0.0
    %4172 = vmatpush1.msra.mxu0 0.0
    %4173 = vmatprep.subr.mxu0 0.0
    %4174 = vmatpush1.msra.mxu0 0.0
    %4175 = vmatprep.subr.mxu0 0.0
    %4176 = vmatpush1.msra.mxu0 0.0
    %4177 = vmatprep.subr.mxu0 0.0
    %4178 = vmatpush1.msra.mxu0 0.0
    %4179 = vmatprep.subr.mxu0 0.0
    %4180 = vmatpush1.msra.mxu0 0.0
    %4181 = vmatprep.subr.mxu0 0.0
    %4182 = vmatpush1.msra.mxu0 0.0
    %4183 = vmatprep.subr.mxu0 0.0
    %4184 = vmatpush1.msra.mxu0 0.0
    %4185 = vmatprep.subr.mxu0 0.0
    %4186 = vmatpush1.msra.mxu0 0.0
    %4187 = vmatprep.subr.mxu0 0.0
    %4188 = vmatpush1.msra.mxu0 %v4160
    %4189 = vmatprep.subr.mxu0 0.0
    %4190 = vmatpush1.msra.mxu0 %v4159
    %4191 = vmatprep.subr.mxu0 0.0
    %4192 = vmatpush1.msra.mxu0 %v4158
    %4193 = vmatprep.subr.mxu0 0.0
    %4194 = vmatpush1.msra.mxu0 %v4157
    %4195 = vmatprep.subr.mxu0 0.0
    %4196 = vmatpush1.msra.mxu0 %v4156
    %4197 = vmatprep.subr.mxu0 0.0
    %4198 = vmatpush1.msra.mxu0 %v4155
    %4199 = vmatprep.subr.mxu0 0.0
    %4200 = vmatpush1.msra.mxu0 %v4154
    %4201 = vmatprep.subr.mxu0 0.0
    %4202 = vmatpush1.msra.mxu0 %v4153
    %4203 = vmatprep.subr.mxu0 0.0
    %4204 = vmatpush2.msra.mxu0 0.0
    %4205 = vmatprep.subr.mxu0 0.0
    %4206 = vmatpush2.msra.mxu0 0.0
    %4207 = vmatprep.subr.mxu0 0.0
    %4208 = vmatpush2.msra.mxu0 0.0
    %4209 = vmatprep.subr.mxu0 0.0
    %4210 = vmatpush2.msra.mxu0 0.0
    %4211 = vmatprep.subr.mxu0 0.0
    %4212 = vmatpush2.msra.mxu0 0.0
    %4213 = vmatprep.subr.mxu0 0.0
    %4214 = vmatpush2.msra.mxu0 0.0
    %4215 = vmatprep.subr.mxu0 0.0
    %4216 = vmatpush2.msra.mxu0 0.0
    %4217 = vmatprep.subr.mxu0 0.0
    %4218 = vmatpush2.msra.mxu0 0.0
    %4219 = vmatprep.subr.mxu0 0.0
    %4220 = vmatpush2.msra.mxu0 0.0
    %4221 = vmatprep.subr.mxu0 0.0
    %4222 = vmatpush2.msra.mxu0 0.0
    %4223 = vmatprep.subr.mxu0 0.0
    %4224 = vmatpush2.msra.mxu0 0.0
    %4225 = vmatprep.subr.mxu0 0.0
    %4226 = vmatpush2.msra.mxu0 0.0
    %4227 = vmatprep.subr.mxu0 0.0
    %4228 = vmatpush2.msra.mxu0 0.0
    %4229 = vmatprep.subr.mxu0 0.0
    %4230 = vmatpush2.msra.mxu0 0.0
    %4231 = vmatprep.subr.mxu0 0.0
    %4232 = vmatpush2.msra.mxu0 0.0
    %4233 = vmatprep.subr.mxu0 0.0
    %4234 = vmatpush2.msra.mxu0 0.0
    %4235 = vmatprep.mubr.f32.mxu0 0.0
    %4236 = vmatmul.mubr.f32.gmra.mxu0 %v4169
    %v4237 = vpop.f32.mrf.mxu0
    %v4238 = vadd.f32 %v4166, %v4237
    %v4239 = vpop.f32.mrf.mxu0
    %4240 = vdwg.mxu0
    %4241 = vst [vmem:[%s7] sm:$0x1] %v4238
    %s4242 = scalar_lea.vmem %s7, 1
    %4243 = vst [vmem:[%s4242 - $0x1] sm:$0x2] %v4238
    // Predicated region
    $region38: #{rnafm_for_reg_forward.1} parent=1 // pred_check
      _
    $region39: #{rnafm_for_reg_forward.1} parent=1 // pred_check_branch
      %4245 = sbr.rel (0) target = $region41
    $region40: #{rnafm_for_reg_forward.1} parent=1 // pred_region
      _
    $region41: #{rnafm_for_reg_forward.1} parent=1 // pred_fallthru
      _
    // Predicated region
    $region42: #{rnafm_for_reg_forward.1} parent=1 // pred_check
      _
    $region43: #{rnafm_for_reg_forward.1} parent=1 // pred_check_branch
      %4247 = sbr.rel (0) target = $region45
    $region44: #{rnafm_for_reg_forward.1} parent=1 // pred_region
      _
    $region45: #{rnafm_for_reg_forward.1} parent=1 // pred_fallthru
      _
    %4248 = vsyncpa [#allocation5], 1
    %4249 = vsyncpa [#allocation7], 1

</llo_original>
